<compile_context>
chip_gen: v7x
topology: tpu7x:2x2x1
jax: 0.10.0
libtpu: 0.0.40
codegen_flags: <defaults>
</compile_context>

<pallas_src>
import numpy as np

import jax
import jax.numpy as jnp
from jax import lax
from jax.experimental import pallas as pl
from jax.experimental.pallas import tpu as pltpu


_NUM_CLASSES = 10
_STEM_OUT = 8
_HEAD_OUT = 64
# Small MobileNetV2: (cin, cout, stride, expand_ratio) per inverted-residual.
# NOTE: the fused kernel below hard-codes this 3-block structure (no-expand /
# stride-2 expand / stride-1 expand); channel counts are taken from the params.
_BLOCK_CFG = ((8, 8, 1, 1), (8, 16, 2, 6), (16, 16, 1, 6))
_TAPS = tuple((dy, dx) for dy in range(3) for dx in range(3))

_COMPILER_PARAMS = pltpu.CompilerParams(
    dimension_semantics=("arbitrary",),       # single fused step
    vmem_limit_bytes=32 * 1024 * 1024,
)


def _relu6(x):
    return jnp.minimum(jnp.maximum(x, 0.0), 6.0)


def _const_spec(arr):
    """Full-array block with a constant index map (DMA'd once, kept resident)."""
    nd = arr.ndim
    return pl.BlockSpec(tuple(arr.shape), lambda i, _nd=nd: (0,) * _nd)


def _shift_rows(x, off):
    """y[i] = x[i + off]; zero-filled where i + off falls outside the slab."""
    if off == 0:
        return x
    if off > 0:
        return jnp.pad(x[off:, :], ((0, off), (0, 0)))
    return jnp.pad(x[:off, :], ((-off, 0), (0, 0)))


def _depthwise3x3(hid, dw_w, mask, g):
    """3x3 depthwise conv, stride 1, 'same' zero padding, on a flat row slab.

    hid:  (n*g*g, C) f32 value — images stacked along rows, row-major spatial.
    dw_w: (9, C)    f32 value — tap-major depthwise weights (BN-folded).
    mask: (9*n*g*g, 1) f32 value — zero where tap (dy,dx) of a position lands
          on that image's zero padding (also masks cross-image bleed of the
          flat shifts).
    Returns the un-biased, un-activated depthwise accumulation (n*g*g, C).
    """
    m = hid.shape[0]
    acc = None
    for k, (dy, dx) in enumerate(_TAPS):
        off = (dy - 1) * g + (dx - 1)
        if off == 0:
            tap = hid                                 # centre tap: mask is all 1
        else:
            tap = _shift_rows(hid, off) * mask[k * m:(k + 1) * m, :]
        term = tap * dw_w[k:k + 1, :]
        acc = term if acc is None else acc + term
    return acc


# ---------------------------------------------------------------------------
# The single fused kernel: stem -> block1 -> block2 -> block3 -> head -> FC.
# ---------------------------------------------------------------------------

def _make_kernel(g1, g2):
    def kernel(cols_ref, mask1_ref, sel_ref, mask2_ref, pool_ref,
               stem_w, stem_b,
               b1_dww, b1_dwb, b1_pjw, b1_pjb,
               b2_exw, b2_exb, b2_dww, b2_dwb, b2_pjw, b2_pjb,
               b3_exw, b3_exb, b3_dww, b3_dwb, b3_pjw, b3_pjb,
               head_w, head_b, fc_w, fc_b,
               o_ref):
        f32, bf16 = jnp.float32, jnp.bfloat16
        mask1 = mask1_ref[...]
        mask2 = mask2_ref[...]

        # --- Stem: 3x3/s2 ConvBNReLU6 (wrapper-side im2col) as one MXU matmul.
        x0 = _relu6(jnp.dot(cols_ref[...].astype(bf16), stem_w[...],
                            preferred_element_type=f32) + stem_b[...])

        # --- Block 1 (8->8, s=1, t=1): depthwise -> project, fused residual.
        dw = _relu6(_depthwise3x3(x0, b1_dww[...], mask1, g1) + b1_dwb[...])
        x1 = (jnp.dot(dw.astype(bf16), b1_pjw[...], preferred_element_type=f32)
              + b1_pjb[...] + x0)

        # --- Block 2 (8->16, s=2, t=6): one expand matmul on the full-res
        #     input -> full-res depthwise (shift+mask) -> stride-2 row
        #     selection via a tiny 0/1 matmul -> project.
        hid = _relu6(jnp.dot(x1.astype(bf16), b2_exw[...],
                             preferred_element_type=f32) + b2_exb[...])
        dwf = _depthwise3x3(hid, b2_dww[...], mask1, g1)
        dws = _relu6(jnp.dot(sel_ref[...], dwf.astype(bf16),
                             preferred_element_type=f32) + b2_dwb[...])
        x2 = (jnp.dot(dws.astype(bf16), b2_pjw[...], preferred_element_type=f32)
              + b2_pjb[...])

        # --- Block 3 (16->16, s=1, t=6): expand -> depthwise -> project, +res.
        hid = _relu6(jnp.dot(x2.astype(bf16), b3_exw[...],
                             preferred_element_type=f32) + b3_exb[...])
        dw = _relu6(_depthwise3x3(hid, b3_dww[...], mask2, g2) + b3_dwb[...])
        x3 = (jnp.dot(dw.astype(bf16), b3_pjw[...], preferred_element_type=f32)
              + b3_pjb[...] + x2)

        # --- Head 1x1 ConvBNReLU6 -> per-image global avg pool (block-diagonal
        #     pooling matmul) -> Dropout(identity, eval) -> Linear.
        hd = _relu6(jnp.dot(x3.astype(bf16), head_w[...],
                            preferred_element_type=f32) + head_b[...])
        pooled = jnp.dot(pool_ref[...], hd.astype(bf16),
                         preferred_element_type=f32)
        logits = (jnp.dot(pooled.astype(bf16), fc_w[...],
                          preferred_element_type=f32) + fc_b[...])
        o_ref[...] = logits

    return kernel


def _static_tables(n, g1, g2):
    """Tap-validity masks, stride-2 row-selection and pooling matrices."""
    def tap_mask(g):
        m = np.zeros((9, n, g, g), np.float32)
        for k, (dy, dx) in enumerate(_TAPS):
            r0, r1 = max(0, 1 - dy), min(g, g + 1 - dy)
            c0, c1 = max(0, 1 - dx), min(g, g + 1 - dx)
            m[k, :, r0:r1, c0:c1] = 1.0
        return jnp.asarray(m.reshape(9 * n * g * g, 1))

    m1, m2 = g1 * g1, g2 * g2
    sel = np.zeros((n * m2, n * m1), np.float32)     # stride-2 position select
    pool = np.zeros((n, n * m2), np.float32)         # per-image average pool
    for img in range(n):
        for r in range(g2):
            for c in range(g2):
                sel[img * m2 + r * g2 + c, img * m1 + 2 * r * g1 + 2 * c] = 1.0
        pool[img, img * m2:(img + 1) * m2] = 1.0 / m2
    return (tap_mask(g1), tap_mask(g2),
            jnp.asarray(sel, jnp.bfloat16), jnp.asarray(pool, jnp.bfloat16))


# ---------------------------------------------------------------------------
# Forward pass (FusedMobileNetV2.forward, eval mode).
# ---------------------------------------------------------------------------

@jax.jit
def fused_mobilenet_v2_forward(x_nchw, params):
    n, cin, h, w = x_nchw.shape
    x = jnp.transpose(x_nchw, (0, 2, 3, 1)).astype(jnp.float32)      # NHWC

    # Stem im2col (tiny; fuses into the NCHW->NHWC transpose XLA op). Batch is
    # folded into the row dimension everywhere downstream.
    g1 = (h - 1) // 2 + 1
    assert h == w and (w - 1) // 2 + 1 == g1
    xp = jnp.pad(x, ((0, 0), (1, 1), (1, 1), (0, 0)))
    taps = [xp[:, dy:dy + 2 * (g1 - 1) + 1:2, dx:dx + 2 * (g1 - 1) + 1:2, :]
            for dy, dx in _TAPS]
    cols = jnp.concatenate(taps, axis=-1).reshape(n * g1 * g1, 9 * cin)

    g2 = (g1 - 1) // 2 + 1
    mask1, mask2, sel, pool = _static_tables(n, g1, g2)

    b1, b2, b3 = params["blocks"]
    inputs = [cols, mask1, sel, mask2, pool,
              params["stem_w"], params["stem_b"],
              b1["dw_w"], b1["dw_b"], b1["proj_w"], b1["proj_b"],
              b2["expand_w"], b2["expand_b"], b2["dw_w"], b2["dw_b"],
              b2["proj_w"], b2["proj_b"],
              b3["expand_w"], b3["expand_b"], b3["dw_w"], b3["dw_b"],
              b3["proj_w"], b3["proj_b"],
              params["head_w"], params["head_b"],
              params["fc_w"], params["fc_b"]]

    return pl.pallas_call(
        _make_kernel(g1, g2),
        out_shape=jax.ShapeDtypeStruct((n, _NUM_CLASSES), jnp.float32),
        grid=(1,),
        in_specs=[_const_spec(a) for a in inputs],
        out_specs=pl.BlockSpec((n, _NUM_CLASSES), lambda i: (0, 0)),
        compiler_params=_COMPILER_PARAMS,
    )(*inputs)


# ---------------------------------------------------------------------------
# Deterministic parameter construction with BN folded into weights/biases.
# Matmul weights are bf16 (MXU); depthwise weights and all biases stay f32.
# ---------------------------------------------------------------------------

def _bn_params(key, cout):
    k1, k2, k3, k4 = jax.random.split(key, 4)
    gamma = jax.random.uniform(k1, (cout,), jnp.float32, 0.5, 1.5)
    beta = 0.1 * jax.random.normal(k2, (cout,), jnp.float32)
    mean = 0.1 * jax.random.normal(k3, (cout,), jnp.float32)
    var = jax.random.uniform(k4, (cout,), jnp.float32, 0.5, 1.5)
    return gamma, beta, mean, var


def _fold_bn(w_out_last, gamma, beta, mean, var, eps=1e-5):
    scale = gamma / jnp.sqrt(var + eps)
    return w_out_last * scale, beta - mean * scale


def _pointwise_params(key, cin, cout):
    kw, kb = jax.random.split(key)
    w = jax.random.normal(kw, (cin, cout), jnp.float32) / jnp.sqrt(cin)
    wf, bf = _fold_bn(w, *_bn_params(kb, cout))
    return wf.astype(jnp.bfloat16), bf.reshape(1, cout)


def _stem_params(key, cin, cout):
    kw, kb = jax.random.split(key)
    w = jax.random.normal(kw, (9 * cin, cout), jnp.float32) / jnp.sqrt(9 * cin)
    wf, bf = _fold_bn(w, *_bn_params(kb, cout))
    return wf.astype(jnp.bfloat16), bf.reshape(1, cout)


def _dw_params(key, c):
    kw, kb = jax.random.split(key)
    w = jax.random.normal(kw, (9, c), jnp.float32) / 3.0
    wf, bf = _fold_bn(w, *_bn_params(kb, c))
    return wf, bf.reshape(1, c)                    # f32 (VPU path)


def build_params(key):
    keys = iter(jax.random.split(key, 16))
    p = {"blocks": []}
    p["stem_w"], p["stem_b"] = _stem_params(next(keys), 3, _STEM_OUT)
    for (cin, cout, stride, t) in _BLOCK_CFG:
        chid = cin * t
        blk = {}
        if t != 1:
            blk["expand_w"], blk["expand_b"] = _pointwise_params(next(keys), cin, chid)
        blk["dw_w"], blk["dw_b"] = _dw_params(next(keys), chid)
        blk["proj_w"], blk["proj_b"] = _pointwise_params(next(keys), chid, cout)
        p["blocks"].append(blk)
    p["head_w"], p["head_b"] = _pointwise_params(next(keys), _BLOCK_CFG[-1][1], _HEAD_OUT)
    kfw, kfb = jax.random.split(next(keys))
    p["fc_w"] = (jax.random.normal(kfw, (_HEAD_OUT, _NUM_CLASSES), jnp.float32)
                 / jnp.sqrt(_HEAD_OUT)).astype(jnp.bfloat16)
    p["fc_b"] = 0.01 * jax.random.normal(kfb, (1, _NUM_CLASSES), jnp.float32)
    return p


# ---------------------------------------------------------------------------
# Pure-JAX f32 reference (lax.conv) used to validate the fused kernel.
# ---------------------------------------------------------------------------

def _ref_forward(x_nchw, params):
    x = jnp.transpose(x_nchw, (0, 2, 3, 1)).astype(jnp.float32)
    cin0 = x.shape[-1]
    w = params["stem_w"].astype(jnp.float32).reshape(3, 3, cin0, _STEM_OUT)
    y = lax.conv_general_dilated(x, w, (2, 2), ((1, 1), (1, 1)),
                                 dimension_numbers=("NHWC", "HWIO", "NHWC"))
    y = _relu6(y + params["stem_b"].reshape(1, 1, 1, -1))
    for (cin, cout, stride, t), blk in zip(_BLOCK_CFG, params["blocks"]):
        chid = cin * t
        res = y
        if t != 1:
            y = _relu6(jnp.einsum("nhwc,cd->nhwd", y,
                                  blk["expand_w"].astype(jnp.float32))
                       + blk["expand_b"].reshape(1, 1, 1, -1))
        dw_w = blk["dw_w"].reshape(3, 3, 1, chid)
        y = lax.conv_general_dilated(y, dw_w, (stride, stride), ((1, 1), (1, 1)),
                                     dimension_numbers=("NHWC", "HWIO", "NHWC"),
                                     feature_group_count=chid)
        y = _relu6(y + blk["dw_b"].reshape(1, 1, 1, -1))
        y = (jnp.einsum("nhwc,cd->nhwd", y, blk["proj_w"].astype(jnp.float32))
             + blk["proj_b"].reshape(1, 1, 1, -1))
        if stride == 1 and cin == cout:
            y = y + res
    y = _relu6(jnp.einsum("nhwc,cd->nhwd", y,
                          params["head_w"].astype(jnp.float32))
               + params["head_b"].reshape(1, 1, 1, -1))
    pooled = jnp.mean(y, axis=(1, 2))
    return pooled @ params["fc_w"].astype(jnp.float32) + params["fc_b"]


if __name__ == "__main__":
    key = jax.random.PRNGKey(0)
    kx, kp = jax.random.split(key)
    x = jax.random.normal(kx, (2, 3, 16, 16), jnp.float32)   # NCHW, like PyTorch
    params = build_params(kp)

    out = jax.block_until_ready(fused_mobilenet_v2_forward(x, params))
    assert out.shape == (2, _NUM_CLASSES), out.shape
    assert bool(jnp.all(jnp.isfinite(out)))

    ref = jax.block_until_ready(_ref_forward(x, params))
    max_err = float(jnp.max(jnp.abs(out - ref)))
    # Kernel uses bf16 on MXU operands (f32 accumulation); f32 reference.
    assert max_err < 0.15, f"max |kernel - ref| = {max_err}"

    print("KERNEL_OK")
</pallas_src>

<mosaic_0001>
module attributes {stable_mosaic.version = 11 : i64} {
  func.func @kernel(%arg0: i32, %arg1: memref<128x27xf32, #tpu.memory_space<vmem>>, %arg2: memref<1152x1xf32, #tpu.memory_space<vmem>>, %arg3: memref<32x128xbf16, #tpu.memory_space<vmem>>, %arg4: memref<288x1xf32, #tpu.memory_space<vmem>>, %arg5: memref<2x32xbf16, #tpu.memory_space<vmem>>, %arg6: memref<27x8xbf16, #tpu.memory_space<vmem>>, %arg7: memref<1x8xf32, #tpu.memory_space<vmem>>, %arg8: memref<9x8xf32, #tpu.memory_space<vmem>>, %arg9: memref<1x8xf32, #tpu.memory_space<vmem>>, %arg10: memref<8x8xbf16, #tpu.memory_space<vmem>>, %arg11: memref<1x8xf32, #tpu.memory_space<vmem>>, %arg12: memref<8x48xbf16, #tpu.memory_space<vmem>>, %arg13: memref<1x48xf32, #tpu.memory_space<vmem>>, %arg14: memref<9x48xf32, #tpu.memory_space<vmem>>, %arg15: memref<1x48xf32, #tpu.memory_space<vmem>>, %arg16: memref<48x16xbf16, #tpu.memory_space<vmem>>, %arg17: memref<1x16xf32, #tpu.memory_space<vmem>>, %arg18: memref<16x96xbf16, #tpu.memory_space<vmem>>, %arg19: memref<1x96xf32, #tpu.memory_space<vmem>>, %arg20: memref<9x96xf32, #tpu.memory_space<vmem>>, %arg21: memref<1x96xf32, #tpu.memory_space<vmem>>, %arg22: memref<96x16xbf16, #tpu.memory_space<vmem>>, %arg23: memref<1x16xf32, #tpu.memory_space<vmem>>, %arg24: memref<16x64xbf16, #tpu.memory_space<vmem>>, %arg25: memref<1x64xf32, #tpu.memory_space<vmem>>, %arg26: memref<64x10xbf16, #tpu.memory_space<vmem>>, %arg27: memref<1x10xf32, #tpu.memory_space<vmem>>, %arg28: memref<2x10xf32, #tpu.memory_space<vmem>>) attributes {dimension_semantics = [#tpu.dimension_semantics<arbitrary>], iteration_bounds = array<i64: 1>, scalar_prefetch = 0 : i64, scratch_operands = 0 : i64, tpu.core_type = #tpu.core_type<tc>, window_params = [{pipeline_mode = #tpu.pipeline_mode<synchronous>, transform_indices = @transform_0, window_bounds = array<i64: 128, 27>}, {pipeline_mode = #tpu.pipeline_mode<synchronous>, transform_indices = @transform_1, window_bounds = array<i64: 1152, 1>}, {pipeline_mode = #tpu.pipeline_mode<synchronous>, transform_indices = @transform_2, window_bounds = array<i64: 32, 128>}, {pipeline_mode = #tpu.pipeline_mode<synchronous>, transform_indices = @transform_3, window_bounds = array<i64: 288, 1>}, {pipeline_mode = #tpu.pipeline_mode<synchronous>, transform_indices = @transform_4, window_bounds = array<i64: 2, 32>}, {pipeline_mode = #tpu.pipeline_mode<synchronous>, transform_indices = @transform_5, window_bounds = array<i64: 27, 8>}, {pipeline_mode = #tpu.pipeline_mode<synchronous>, transform_indices = @transform_6, window_bounds = array<i64: 1, 8>}, {pipeline_mode = #tpu.pipeline_mode<synchronous>, transform_indices = @transform_7, window_bounds = array<i64: 9, 8>}, {pipeline_mode = #tpu.pipeline_mode<synchronous>, transform_indices = @transform_8, window_bounds = array<i64: 1, 8>}, {pipeline_mode = #tpu.pipeline_mode<synchronous>, transform_indices = @transform_9, window_bounds = array<i64: 8, 8>}, {pipeline_mode = #tpu.pipeline_mode<synchronous>, transform_indices = @transform_10, window_bounds = array<i64: 1, 8>}, {pipeline_mode = #tpu.pipeline_mode<synchronous>, transform_indices = @transform_11, window_bounds = array<i64: 8, 48>}, {pipeline_mode = #tpu.pipeline_mode<synchronous>, transform_indices = @transform_12, window_bounds = array<i64: 1, 48>}, {pipeline_mode = #tpu.pipeline_mode<synchronous>, transform_indices = @transform_13, window_bounds = array<i64: 9, 48>}, {pipeline_mode = #tpu.pipeline_mode<synchronous>, transform_indices = @transform_14, window_bounds = array<i64: 1, 48>}, {pipeline_mode = #tpu.pipeline_mode<synchronous>, transform_indices = @transform_15, window_bounds = array<i64: 48, 16>}, {pipeline_mode = #tpu.pipeline_mode<synchronous>, transform_indices = @transform_16, window_bounds = array<i64: 1, 16>}, {pipeline_mode = #tpu.pipeline_mode<synchronous>, transform_indices = @transform_17, window_bounds = array<i64: 16, 96>}, {pipeline_mode = #tpu.pipeline_mode<synchronous>, transform_indices = @transform_18, window_bounds = array<i64: 1, 96>}, {pipeline_mode = #tpu.pipeline_mode<synchronous>, transform_indices = @transform_19, window_bounds = array<i64: 9, 96>}, {pipeline_mode = #tpu.pipeline_mode<synchronous>, transform_indices = @transform_20, window_bounds = array<i64: 1, 96>}, {pipeline_mode = #tpu.pipeline_mode<synchronous>, transform_indices = @transform_21, window_bounds = array<i64: 96, 16>}, {pipeline_mode = #tpu.pipeline_mode<synchronous>, transform_indices = @transform_22, window_bounds = array<i64: 1, 16>}, {pipeline_mode = #tpu.pipeline_mode<synchronous>, transform_indices = @transform_23, window_bounds = array<i64: 16, 64>}, {pipeline_mode = #tpu.pipeline_mode<synchronous>, transform_indices = @transform_24, window_bounds = array<i64: 1, 64>}, {pipeline_mode = #tpu.pipeline_mode<synchronous>, transform_indices = @transform_25, window_bounds = array<i64: 64, 10>}, {pipeline_mode = #tpu.pipeline_mode<synchronous>, transform_indices = @transform_26, window_bounds = array<i64: 1, 10>}, {pipeline_mode = #tpu.pipeline_mode<synchronous>, transform_indices = @transform_27, window_bounds = array<i64: 2, 10>}]} {
    %c0 = arith.constant 0 : index
    %c0_0 = arith.constant 0 : index
    %0 = vector.load %arg2[%c0, %c0_0] : memref<1152x1xf32, #tpu.memory_space<vmem>>, vector<1152x1xf32>
    %c0_1 = arith.constant 0 : index
    %c0_2 = arith.constant 0 : index
    %1 = vector.load %arg4[%c0_1, %c0_2] : memref<288x1xf32, #tpu.memory_space<vmem>>, vector<288x1xf32>
    %c0_3 = arith.constant 0 : index
    %c0_4 = arith.constant 0 : index
    %2 = vector.load %arg1[%c0_3, %c0_4] : memref<128x27xf32, #tpu.memory_space<vmem>>, vector<128x27xf32>
    %3 = arith.truncf %2 : vector<128x27xf32> to vector<128x27xbf16>
    %c0_5 = arith.constant 0 : index
    %c0_6 = arith.constant 0 : index
    %4 = vector.load %arg6[%c0_5, %c0_6] : memref<27x8xbf16, #tpu.memory_space<vmem>>, vector<27x8xbf16>
    %cst = arith.constant dense<0.000000e+00> : vector<128x8xf32>
    %5 = tpu.matmul %3, %4, %cst {dimension_numbers = #tpu.dot_dimension_numbers<[1], [0], [0], [1], [0, 0, 1, 1], [], []>} : vector<128x27xbf16>, vector<27x8xbf16>, vector<128x8xf32> -> vector<128x8xf32>
    %c0_7 = arith.constant 0 : index
    %c0_8 = arith.constant 0 : index
    %6 = vector.load %arg7[%c0_7, %c0_8] : memref<1x8xf32, #tpu.memory_space<vmem>>, vector<1x8xf32>
    %7 = vector.broadcast %6 : vector<1x8xf32> to vector<128x8xf32>
    %8 = arith.addf %5, %7 : vector<128x8xf32>
    %cst_9 = arith.constant 0.000000e+00 : f32
    %9 = vector.broadcast %cst_9 : f32 to vector<128x8xf32>
    %10 = arith.maximumf %8, %9 : vector<128x8xf32>
    %cst_10 = arith.constant 6.000000e+00 : f32
    %11 = vector.broadcast %cst_10 : f32 to vector<128x8xf32>
    %12 = arith.minimumf %10, %11 : vector<128x8xf32>
    %c0_11 = arith.constant 0 : index
    %c0_12 = arith.constant 0 : index
    %13 = vector.load %arg8[%c0_11, %c0_12] : memref<9x8xf32, #tpu.memory_space<vmem>>, vector<9x8xf32>
    %14 = vector.extract_strided_slice %12 {offsets = [0, 0], sizes = [119, 8], strides = [1, 1]} : vector<128x8xf32> to vector<119x8xf32>
    %c0_i32 = arith.constant 0 : i32
    %15 = arith.sitofp %c0_i32 : i32 to f32
    %16 = vector.broadcast %15 : f32 to vector<9x8xf32>
    %17 = tpu.concatenate %16, %14 in 0 : vector<9x8xf32>, vector<119x8xf32> -> vector<128x8xf32>
    %18 = vector.extract_strided_slice %0 {offsets = [0, 0], sizes = [128, 1], strides = [1, 1]} : vector<1152x1xf32> to vector<128x1xf32>
    %19 = vector.broadcast %18 : vector<128x1xf32> to vector<128x8xf32>
    %20 = arith.mulf %17, %19 : vector<128x8xf32>
    %21 = vector.extract_strided_slice %13 {offsets = [0, 0], sizes = [1, 8], strides = [1, 1]} : vector<9x8xf32> to vector<1x8xf32>
    %22 = vector.broadcast %21 : vector<1x8xf32> to vector<128x8xf32>
    %23 = arith.mulf %20, %22 : vector<128x8xf32>
    %24 = vector.extract_strided_slice %12 {offsets = [0, 0], sizes = [120, 8], strides = [1, 1]} : vector<128x8xf32> to vector<120x8xf32>
    %c0_i32_13 = arith.constant 0 : i32
    %25 = arith.sitofp %c0_i32_13 : i32 to f32
    %26 = vector.broadcast %25 : f32 to vector<8x8xf32>
    %27 = tpu.concatenate %26, %24 in 0 : vector<8x8xf32>, vector<120x8xf32> -> vector<128x8xf32>
    %28 = vector.extract_strided_slice %0 {offsets = [128, 0], sizes = [128, 1], strides = [1, 1]} : vector<1152x1xf32> to vector<128x1xf32>
    %29 = vector.broadcast %28 : vector<128x1xf32> to vector<128x8xf32>
    %30 = arith.mulf %27, %29 : vector<128x8xf32>
    %31 = vector.extract_strided_slice %13 {offsets = [1, 0], sizes = [1, 8], strides = [1, 1]} : vector<9x8xf32> to vector<1x8xf32>
    %32 = vector.broadcast %31 : vector<1x8xf32> to vector<128x8xf32>
    %33 = arith.mulf %30, %32 : vector<128x8xf32>
    %34 = arith.addf %23, %33 : vector<128x8xf32>
    %35 = vector.extract_strided_slice %12 {offsets = [0, 0], sizes = [121, 8], strides = [1, 1]} : vector<128x8xf32> to vector<121x8xf32>
    %c0_i32_14 = arith.constant 0 : i32
    %36 = arith.sitofp %c0_i32_14 : i32 to f32
    %37 = vector.broadcast %36 : f32 to vector<7x8xf32>
    %38 = tpu.concatenate %37, %35 in 0 : vector<7x8xf32>, vector<121x8xf32> -> vector<128x8xf32>
    %39 = vector.extract_strided_slice %0 {offsets = [256, 0], sizes = [128, 1], strides = [1, 1]} : vector<1152x1xf32> to vector<128x1xf32>
    %40 = vector.broadcast %39 : vector<128x1xf32> to vector<128x8xf32>
    %41 = arith.mulf %38, %40 : vector<128x8xf32>
    %42 = vector.extract_strided_slice %13 {offsets = [2, 0], sizes = [1, 8], strides = [1, 1]} : vector<9x8xf32> to vector<1x8xf32>
    %43 = vector.broadcast %42 : vector<1x8xf32> to vector<128x8xf32>
    %44 = arith.mulf %41, %43 : vector<128x8xf32>
    %45 = arith.addf %34, %44 : vector<128x8xf32>
    %46 = vector.extract_strided_slice %12 {offsets = [0, 0], sizes = [127, 8], strides = [1, 1]} : vector<128x8xf32> to vector<127x8xf32>
    %c0_i32_15 = arith.constant 0 : i32
    %47 = arith.sitofp %c0_i32_15 : i32 to f32
    %48 = vector.broadcast %47 : f32 to vector<1x8xf32>
    %49 = tpu.concatenate %48, %46 in 0 : vector<1x8xf32>, vector<127x8xf32> -> vector<128x8xf32>
    %50 = vector.extract_strided_slice %0 {offsets = [384, 0], sizes = [128, 1], strides = [1, 1]} : vector<1152x1xf32> to vector<128x1xf32>
    %51 = vector.broadcast %50 : vector<128x1xf32> to vector<128x8xf32>
    %52 = arith.mulf %49, %51 : vector<128x8xf32>
    %53 = vector.extract_strided_slice %13 {offsets = [3, 0], sizes = [1, 8], strides = [1, 1]} : vector<9x8xf32> to vector<1x8xf32>
    %54 = vector.broadcast %53 : vector<1x8xf32> to vector<128x8xf32>
    %55 = arith.mulf %52, %54 : vector<128x8xf32>
    %56 = arith.addf %45, %55 : vector<128x8xf32>
    %57 = vector.extract_strided_slice %13 {offsets = [4, 0], sizes = [1, 8], strides = [1, 1]} : vector<9x8xf32> to vector<1x8xf32>
    %58 = vector.broadcast %57 : vector<1x8xf32> to vector<128x8xf32>
    %59 = arith.mulf %12, %58 : vector<128x8xf32>
    %60 = arith.addf %56, %59 : vector<128x8xf32>
    %61 = vector.extract_strided_slice %12 {offsets = [1, 0], sizes = [127, 8], strides = [1, 1]} : vector<128x8xf32> to vector<127x8xf32>
    %c0_i32_16 = arith.constant 0 : i32
    %62 = arith.sitofp %c0_i32_16 : i32 to f32
    %63 = vector.broadcast %62 : f32 to vector<1x8xf32>
    %64 = tpu.concatenate %61, %63 in 0 : vector<127x8xf32>, vector<1x8xf32> -> vector<128x8xf32>
    %65 = vector.extract_strided_slice %0 {offsets = [640, 0], sizes = [128, 1], strides = [1, 1]} : vector<1152x1xf32> to vector<128x1xf32>
    %66 = vector.broadcast %65 : vector<128x1xf32> to vector<128x8xf32>
    %67 = arith.mulf %64, %66 : vector<128x8xf32>
    %68 = vector.extract_strided_slice %13 {offsets = [5, 0], sizes = [1, 8], strides = [1, 1]} : vector<9x8xf32> to vector<1x8xf32>
    %69 = vector.broadcast %68 : vector<1x8xf32> to vector<128x8xf32>
    %70 = arith.mulf %67, %69 : vector<128x8xf32>
    %71 = arith.addf %60, %70 : vector<128x8xf32>
    %72 = vector.extract_strided_slice %12 {offsets = [7, 0], sizes = [121, 8], strides = [1, 1]} : vector<128x8xf32> to vector<121x8xf32>
    %c0_i32_17 = arith.constant 0 : i32
    %73 = arith.sitofp %c0_i32_17 : i32 to f32
    %74 = vector.broadcast %73 : f32 to vector<7x8xf32>
    %75 = tpu.concatenate %72, %74 in 0 : vector<121x8xf32>, vector<7x8xf32> -> vector<128x8xf32>
    %76 = vector.extract_strided_slice %0 {offsets = [768, 0], sizes = [128, 1], strides = [1, 1]} : vector<1152x1xf32> to vector<128x1xf32>
    %77 = vector.broadcast %76 : vector<128x1xf32> to vector<128x8xf32>
    %78 = arith.mulf %75, %77 : vector<128x8xf32>
    %79 = vector.extract_strided_slice %13 {offsets = [6, 0], sizes = [1, 8], strides = [1, 1]} : vector<9x8xf32> to vector<1x8xf32>
    %80 = vector.broadcast %79 : vector<1x8xf32> to vector<128x8xf32>
    %81 = arith.mulf %78, %80 : vector<128x8xf32>
    %82 = arith.addf %71, %81 : vector<128x8xf32>
    %83 = vector.extract_strided_slice %12 {offsets = [8, 0], sizes = [120, 8], strides = [1, 1]} : vector<128x8xf32> to vector<120x8xf32>
    %c0_i32_18 = arith.constant 0 : i32
    %84 = arith.sitofp %c0_i32_18 : i32 to f32
    %85 = vector.broadcast %84 : f32 to vector<8x8xf32>
    %86 = tpu.concatenate %83, %85 in 0 : vector<120x8xf32>, vector<8x8xf32> -> vector<128x8xf32>
    %87 = vector.extract_strided_slice %0 {offsets = [896, 0], sizes = [128, 1], strides = [1, 1]} : vector<1152x1xf32> to vector<128x1xf32>
    %88 = vector.broadcast %87 : vector<128x1xf32> to vector<128x8xf32>
    %89 = arith.mulf %86, %88 : vector<128x8xf32>
    %90 = vector.extract_strided_slice %13 {offsets = [7, 0], sizes = [1, 8], strides = [1, 1]} : vector<9x8xf32> to vector<1x8xf32>
    %91 = vector.broadcast %90 : vector<1x8xf32> to vector<128x8xf32>
    %92 = arith.mulf %89, %91 : vector<128x8xf32>
    %93 = arith.addf %82, %92 : vector<128x8xf32>
    %94 = vector.extract_strided_slice %12 {offsets = [9, 0], sizes = [119, 8], strides = [1, 1]} : vector<128x8xf32> to vector<119x8xf32>
    %c0_i32_19 = arith.constant 0 : i32
    %95 = arith.sitofp %c0_i32_19 : i32 to f32
    %96 = vector.broadcast %95 : f32 to vector<9x8xf32>
    %97 = tpu.concatenate %94, %96 in 0 : vector<119x8xf32>, vector<9x8xf32> -> vector<128x8xf32>
    %98 = vector.extract_strided_slice %0 {offsets = [1024, 0], sizes = [128, 1], strides = [1, 1]} : vector<1152x1xf32> to vector<128x1xf32>
    %99 = vector.broadcast %98 : vector<128x1xf32> to vector<128x8xf32>
    %100 = arith.mulf %97, %99 : vector<128x8xf32>
    %101 = vector.extract_strided_slice %13 {offsets = [8, 0], sizes = [1, 8], strides = [1, 1]} : vector<9x8xf32> to vector<1x8xf32>
    %102 = vector.broadcast %101 : vector<1x8xf32> to vector<128x8xf32>
    %103 = arith.mulf %100, %102 : vector<128x8xf32>
    %104 = arith.addf %93, %103 : vector<128x8xf32>
    %c0_20 = arith.constant 0 : index
    %c0_21 = arith.constant 0 : index
    %105 = vector.load %arg9[%c0_20, %c0_21] : memref<1x8xf32, #tpu.memory_space<vmem>>, vector<1x8xf32>
    %106 = vector.broadcast %105 : vector<1x8xf32> to vector<128x8xf32>
    %107 = arith.addf %104, %106 : vector<128x8xf32>
    %cst_22 = arith.constant 0.000000e+00 : f32
    %108 = vector.broadcast %cst_22 : f32 to vector<128x8xf32>
    %109 = arith.maximumf %107, %108 : vector<128x8xf32>
    %cst_23 = arith.constant 6.000000e+00 : f32
    %110 = vector.broadcast %cst_23 : f32 to vector<128x8xf32>
    %111 = arith.minimumf %109, %110 : vector<128x8xf32>
    %112 = arith.truncf %111 : vector<128x8xf32> to vector<128x8xbf16>
    %c0_24 = arith.constant 0 : index
    %c0_25 = arith.constant 0 : index
    %113 = vector.load %arg10[%c0_24, %c0_25] : memref<8x8xbf16, #tpu.memory_space<vmem>>, vector<8x8xbf16>
    %cst_26 = arith.constant dense<0.000000e+00> : vector<128x8xf32>
    %114 = tpu.matmul %112, %113, %cst_26 {dimension_numbers = #tpu.dot_dimension_numbers<[1], [0], [0], [1], [0, 0, 1, 1], [], []>} : vector<128x8xbf16>, vector<8x8xbf16>, vector<128x8xf32> -> vector<128x8xf32>
    %c0_27 = arith.constant 0 : index
    %c0_28 = arith.constant 0 : index
    %115 = vector.load %arg11[%c0_27, %c0_28] : memref<1x8xf32, #tpu.memory_space<vmem>>, vector<1x8xf32>
    %116 = vector.broadcast %115 : vector<1x8xf32> to vector<128x8xf32>
    %117 = arith.addf %114, %116 : vector<128x8xf32>
    %118 = arith.addf %117, %12 : vector<128x8xf32>
    %119 = arith.truncf %118 : vector<128x8xf32> to vector<128x8xbf16>
    %c0_29 = arith.constant 0 : index
    %c0_30 = arith.constant 0 : index
    %120 = vector.load %arg12[%c0_29, %c0_30] : memref<8x48xbf16, #tpu.memory_space<vmem>>, vector<8x48xbf16>
    %cst_31 = arith.constant dense<0.000000e+00> : vector<128x48xf32>
    %121 = tpu.matmul %119, %120, %cst_31 {dimension_numbers = #tpu.dot_dimension_numbers<[1], [0], [0], [1], [0, 0, 1, 1], [], []>} : vector<128x8xbf16>, vector<8x48xbf16>, vector<128x48xf32> -> vector<128x48xf32>
    %c0_32 = arith.constant 0 : index
    %c0_33 = arith.constant 0 : index
    %122 = vector.load %arg13[%c0_32, %c0_33] : memref<1x48xf32, #tpu.memory_space<vmem>>, vector<1x48xf32>
    %123 = vector.broadcast %122 : vector<1x48xf32> to vector<128x48xf32>
    %124 = arith.addf %121, %123 : vector<128x48xf32>
    %cst_34 = arith.constant 0.000000e+00 : f32
    %125 = vector.broadcast %cst_34 : f32 to vector<128x48xf32>
    %126 = arith.maximumf %124, %125 : vector<128x48xf32>
    %cst_35 = arith.constant 6.000000e+00 : f32
    %127 = vector.broadcast %cst_35 : f32 to vector<128x48xf32>
    %128 = arith.minimumf %126, %127 : vector<128x48xf32>
    %c0_36 = arith.constant 0 : index
    %c0_37 = arith.constant 0 : index
    %129 = vector.load %arg14[%c0_36, %c0_37] : memref<9x48xf32, #tpu.memory_space<vmem>>, vector<9x48xf32>
    %130 = vector.extract_strided_slice %128 {offsets = [0, 0], sizes = [119, 48], strides = [1, 1]} : vector<128x48xf32> to vector<119x48xf32>
    %c0_i32_38 = arith.constant 0 : i32
    %131 = arith.sitofp %c0_i32_38 : i32 to f32
    %132 = vector.broadcast %131 : f32 to vector<9x48xf32>
    %133 = tpu.concatenate %132, %130 in 0 : vector<9x48xf32>, vector<119x48xf32> -> vector<128x48xf32>
    %134 = vector.extract_strided_slice %0 {offsets = [0, 0], sizes = [128, 1], strides = [1, 1]} : vector<1152x1xf32> to vector<128x1xf32>
    %135 = vector.broadcast %134 : vector<128x1xf32> to vector<128x48xf32>
    %136 = arith.mulf %133, %135 : vector<128x48xf32>
    %137 = vector.extract_strided_slice %129 {offsets = [0, 0], sizes = [1, 48], strides = [1, 1]} : vector<9x48xf32> to vector<1x48xf32>
    %138 = vector.broadcast %137 : vector<1x48xf32> to vector<128x48xf32>
    %139 = arith.mulf %136, %138 : vector<128x48xf32>
    %140 = vector.extract_strided_slice %128 {offsets = [0, 0], sizes = [120, 48], strides = [1, 1]} : vector<128x48xf32> to vector<120x48xf32>
    %c0_i32_39 = arith.constant 0 : i32
    %141 = arith.sitofp %c0_i32_39 : i32 to f32
    %142 = vector.broadcast %141 : f32 to vector<8x48xf32>
    %143 = tpu.concatenate %142, %140 in 0 : vector<8x48xf32>, vector<120x48xf32> -> vector<128x48xf32>
    %144 = vector.extract_strided_slice %0 {offsets = [128, 0], sizes = [128, 1], strides = [1, 1]} : vector<1152x1xf32> to vector<128x1xf32>
    %145 = vector.broadcast %144 : vector<128x1xf32> to vector<128x48xf32>
    %146 = arith.mulf %143, %145 : vector<128x48xf32>
    %147 = vector.extract_strided_slice %129 {offsets = [1, 0], sizes = [1, 48], strides = [1, 1]} : vector<9x48xf32> to vector<1x48xf32>
    %148 = vector.broadcast %147 : vector<1x48xf32> to vector<128x48xf32>
    %149 = arith.mulf %146, %148 : vector<128x48xf32>
    %150 = arith.addf %139, %149 : vector<128x48xf32>
    %151 = vector.extract_strided_slice %128 {offsets = [0, 0], sizes = [121, 48], strides = [1, 1]} : vector<128x48xf32> to vector<121x48xf32>
    %c0_i32_40 = arith.constant 0 : i32
    %152 = arith.sitofp %c0_i32_40 : i32 to f32
    %153 = vector.broadcast %152 : f32 to vector<7x48xf32>
    %154 = tpu.concatenate %153, %151 in 0 : vector<7x48xf32>, vector<121x48xf32> -> vector<128x48xf32>
    %155 = vector.extract_strided_slice %0 {offsets = [256, 0], sizes = [128, 1], strides = [1, 1]} : vector<1152x1xf32> to vector<128x1xf32>
    %156 = vector.broadcast %155 : vector<128x1xf32> to vector<128x48xf32>
    %157 = arith.mulf %154, %156 : vector<128x48xf32>
    %158 = vector.extract_strided_slice %129 {offsets = [2, 0], sizes = [1, 48], strides = [1, 1]} : vector<9x48xf32> to vector<1x48xf32>
    %159 = vector.broadcast %158 : vector<1x48xf32> to vector<128x48xf32>
    %160 = arith.mulf %157, %159 : vector<128x48xf32>
    %161 = arith.addf %150, %160 : vector<128x48xf32>
    %162 = vector.extract_strided_slice %128 {offsets = [0, 0], sizes = [127, 48], strides = [1, 1]} : vector<128x48xf32> to vector<127x48xf32>
    %c0_i32_41 = arith.constant 0 : i32
    %163 = arith.sitofp %c0_i32_41 : i32 to f32
    %164 = vector.broadcast %163 : f32 to vector<1x48xf32>
    %165 = tpu.concatenate %164, %162 in 0 : vector<1x48xf32>, vector<127x48xf32> -> vector<128x48xf32>
    %166 = vector.extract_strided_slice %0 {offsets = [384, 0], sizes = [128, 1], strides = [1, 1]} : vector<1152x1xf32> to vector<128x1xf32>
    %167 = vector.broadcast %166 : vector<128x1xf32> to vector<128x48xf32>
    %168 = arith.mulf %165, %167 : vector<128x48xf32>
    %169 = vector.extract_strided_slice %129 {offsets = [3, 0], sizes = [1, 48], strides = [1, 1]} : vector<9x48xf32> to vector<1x48xf32>
    %170 = vector.broadcast %169 : vector<1x48xf32> to vector<128x48xf32>
    %171 = arith.mulf %168, %170 : vector<128x48xf32>
    %172 = arith.addf %161, %171 : vector<128x48xf32>
    %173 = vector.extract_strided_slice %129 {offsets = [4, 0], sizes = [1, 48], strides = [1, 1]} : vector<9x48xf32> to vector<1x48xf32>
    %174 = vector.broadcast %173 : vector<1x48xf32> to vector<128x48xf32>
    %175 = arith.mulf %128, %174 : vector<128x48xf32>
    %176 = arith.addf %172, %175 : vector<128x48xf32>
    %177 = vector.extract_strided_slice %128 {offsets = [1, 0], sizes = [127, 48], strides = [1, 1]} : vector<128x48xf32> to vector<127x48xf32>
    %c0_i32_42 = arith.constant 0 : i32
    %178 = arith.sitofp %c0_i32_42 : i32 to f32
    %179 = vector.broadcast %178 : f32 to vector<1x48xf32>
    %180 = tpu.concatenate %177, %179 in 0 : vector<127x48xf32>, vector<1x48xf32> -> vector<128x48xf32>
    %181 = vector.extract_strided_slice %0 {offsets = [640, 0], sizes = [128, 1], strides = [1, 1]} : vector<1152x1xf32> to vector<128x1xf32>
    %182 = vector.broadcast %181 : vector<128x1xf32> to vector<128x48xf32>
    %183 = arith.mulf %180, %182 : vector<128x48xf32>
    %184 = vector.extract_strided_slice %129 {offsets = [5, 0], sizes = [1, 48], strides = [1, 1]} : vector<9x48xf32> to vector<1x48xf32>
    %185 = vector.broadcast %184 : vector<1x48xf32> to vector<128x48xf32>
    %186 = arith.mulf %183, %185 : vector<128x48xf32>
    %187 = arith.addf %176, %186 : vector<128x48xf32>
    %188 = vector.extract_strided_slice %128 {offsets = [7, 0], sizes = [121, 48], strides = [1, 1]} : vector<128x48xf32> to vector<121x48xf32>
    %c0_i32_43 = arith.constant 0 : i32
    %189 = arith.sitofp %c0_i32_43 : i32 to f32
    %190 = vector.broadcast %189 : f32 to vector<7x48xf32>
    %191 = tpu.concatenate %188, %190 in 0 : vector<121x48xf32>, vector<7x48xf32> -> vector<128x48xf32>
    %192 = vector.extract_strided_slice %0 {offsets = [768, 0], sizes = [128, 1], strides = [1, 1]} : vector<1152x1xf32> to vector<128x1xf32>
    %193 = vector.broadcast %192 : vector<128x1xf32> to vector<128x48xf32>
    %194 = arith.mulf %191, %193 : vector<128x48xf32>
    %195 = vector.extract_strided_slice %129 {offsets = [6, 0], sizes = [1, 48], strides = [1, 1]} : vector<9x48xf32> to vector<1x48xf32>
    %196 = vector.broadcast %195 : vector<1x48xf32> to vector<128x48xf32>
    %197 = arith.mulf %194, %196 : vector<128x48xf32>
    %198 = arith.addf %187, %197 : vector<128x48xf32>
    %199 = vector.extract_strided_slice %128 {offsets = [8, 0], sizes = [120, 48], strides = [1, 1]} : vector<128x48xf32> to vector<120x48xf32>
    %c0_i32_44 = arith.constant 0 : i32
    %200 = arith.sitofp %c0_i32_44 : i32 to f32
    %201 = vector.broadcast %200 : f32 to vector<8x48xf32>
    %202 = tpu.concatenate %199, %201 in 0 : vector<120x48xf32>, vector<8x48xf32> -> vector<128x48xf32>
    %203 = vector.extract_strided_slice %0 {offsets = [896, 0], sizes = [128, 1], strides = [1, 1]} : vector<1152x1xf32> to vector<128x1xf32>
    %204 = vector.broadcast %203 : vector<128x1xf32> to vector<128x48xf32>
    %205 = arith.mulf %202, %204 : vector<128x48xf32>
    %206 = vector.extract_strided_slice %129 {offsets = [7, 0], sizes = [1, 48], strides = [1, 1]} : vector<9x48xf32> to vector<1x48xf32>
    %207 = vector.broadcast %206 : vector<1x48xf32> to vector<128x48xf32>
    %208 = arith.mulf %205, %207 : vector<128x48xf32>
    %209 = arith.addf %198, %208 : vector<128x48xf32>
    %210 = vector.extract_strided_slice %128 {offsets = [9, 0], sizes = [119, 48], strides = [1, 1]} : vector<128x48xf32> to vector<119x48xf32>
    %c0_i32_45 = arith.constant 0 : i32
    %211 = arith.sitofp %c0_i32_45 : i32 to f32
    %212 = vector.broadcast %211 : f32 to vector<9x48xf32>
    %213 = tpu.concatenate %210, %212 in 0 : vector<119x48xf32>, vector<9x48xf32> -> vector<128x48xf32>
    %214 = vector.extract_strided_slice %0 {offsets = [1024, 0], sizes = [128, 1], strides = [1, 1]} : vector<1152x1xf32> to vector<128x1xf32>
    %215 = vector.broadcast %214 : vector<128x1xf32> to vector<128x48xf32>
    %216 = arith.mulf %213, %215 : vector<128x48xf32>
    %217 = vector.extract_strided_slice %129 {offsets = [8, 0], sizes = [1, 48], strides = [1, 1]} : vector<9x48xf32> to vector<1x48xf32>
    %218 = vector.broadcast %217 : vector<1x48xf32> to vector<128x48xf32>
    %219 = arith.mulf %216, %218 : vector<128x48xf32>
    %220 = arith.addf %209, %219 : vector<128x48xf32>
    %c0_46 = arith.constant 0 : index
    %c0_47 = arith.constant 0 : index
    %221 = vector.load %arg3[%c0_46, %c0_47] : memref<32x128xbf16, #tpu.memory_space<vmem>>, vector<32x128xbf16>
    %222 = arith.truncf %220 : vector<128x48xf32> to vector<128x48xbf16>
    %cst_48 = arith.constant dense<0.000000e+00> : vector<32x48xf32>
    %223 = tpu.matmul %221, %222, %cst_48 {dimension_numbers = #tpu.dot_dimension_numbers<[1], [0], [0], [1], [0, 0, 1, 1], [], []>} : vector<32x128xbf16>, vector<128x48xbf16>, vector<32x48xf32> -> vector<32x48xf32>
    %c0_49 = arith.constant 0 : index
    %c0_50 = arith.constant 0 : index
    %224 = vector.load %arg15[%c0_49, %c0_50] : memref<1x48xf32, #tpu.memory_space<vmem>>, vector<1x48xf32>
    %225 = vector.broadcast %224 : vector<1x48xf32> to vector<32x48xf32>
    %226 = arith.addf %223, %225 : vector<32x48xf32>
    %cst_51 = arith.constant 0.000000e+00 : f32
    %227 = vector.broadcast %cst_51 : f32 to vector<32x48xf32>
    %228 = arith.maximumf %226, %227 : vector<32x48xf32>
    %cst_52 = arith.constant 6.000000e+00 : f32
    %229 = vector.broadcast %cst_52 : f32 to vector<32x48xf32>
    %230 = arith.minimumf %228, %229 : vector<32x48xf32>
    %231 = arith.truncf %230 : vector<32x48xf32> to vector<32x48xbf16>
    %c0_53 = arith.constant 0 : index
    %c0_54 = arith.constant 0 : index
    %232 = vector.load %arg16[%c0_53, %c0_54] : memref<48x16xbf16, #tpu.memory_space<vmem>>, vector<48x16xbf16>
    %cst_55 = arith.constant dense<0.000000e+00> : vector<32x16xf32>
    %233 = tpu.matmul %231, %232, %cst_55 {dimension_numbers = #tpu.dot_dimension_numbers<[1], [0], [0], [1], [0, 0, 1, 1], [], []>} : vector<32x48xbf16>, vector<48x16xbf16>, vector<32x16xf32> -> vector<32x16xf32>
    %c0_56 = arith.constant 0 : index
    %c0_57 = arith.constant 0 : index
    %234 = vector.load %arg17[%c0_56, %c0_57] : memref<1x16xf32, #tpu.memory_space<vmem>>, vector<1x16xf32>
    %235 = vector.broadcast %234 : vector<1x16xf32> to vector<32x16xf32>
    %236 = arith.addf %233, %235 : vector<32x16xf32>
    %237 = arith.truncf %236 : vector<32x16xf32> to vector<32x16xbf16>
    %c0_58 = arith.constant 0 : index
    %c0_59 = arith.constant 0 : index
    %238 = vector.load %arg18[%c0_58, %c0_59] : memref<16x96xbf16, #tpu.memory_space<vmem>>, vector<16x96xbf16>
    %cst_60 = arith.constant dense<0.000000e+00> : vector<32x96xf32>
    %239 = tpu.matmul %237, %238, %cst_60 {dimension_numbers = #tpu.dot_dimension_numbers<[1], [0], [0], [1], [0, 0, 1, 1], [], []>} : vector<32x16xbf16>, vector<16x96xbf16>, vector<32x96xf32> -> vector<32x96xf32>
    %c0_61 = arith.constant 0 : index
    %c0_62 = arith.constant 0 : index
    %240 = vector.load %arg19[%c0_61, %c0_62] : memref<1x96xf32, #tpu.memory_space<vmem>>, vector<1x96xf32>
    %241 = vector.broadcast %240 : vector<1x96xf32> to vector<32x96xf32>
    %242 = arith.addf %239, %241 : vector<32x96xf32>
    %cst_63 = arith.constant 0.000000e+00 : f32
    %243 = vector.broadcast %cst_63 : f32 to vector<32x96xf32>
    %244 = arith.maximumf %242, %243 : vector<32x96xf32>
    %cst_64 = arith.constant 6.000000e+00 : f32
    %245 = vector.broadcast %cst_64 : f32 to vector<32x96xf32>
    %246 = arith.minimumf %244, %245 : vector<32x96xf32>
    %c0_65 = arith.constant 0 : index
    %c0_66 = arith.constant 0 : index
    %247 = vector.load %arg20[%c0_65, %c0_66] : memref<9x96xf32, #tpu.memory_space<vmem>>, vector<9x96xf32>
    %248 = vector.extract_strided_slice %246 {offsets = [0, 0], sizes = [27, 96], strides = [1, 1]} : vector<32x96xf32> to vector<27x96xf32>
    %c0_i32_67 = arith.constant 0 : i32
    %249 = arith.sitofp %c0_i32_67 : i32 to f32
    %250 = vector.broadcast %249 : f32 to vector<5x96xf32>
    %251 = tpu.concatenate %250, %248 in 0 : vector<5x96xf32>, vector<27x96xf32> -> vector<32x96xf32>
    %252 = vector.extract_strided_slice %1 {offsets = [0, 0], sizes = [32, 1], strides = [1, 1]} : vector<288x1xf32> to vector<32x1xf32>
    %253 = vector.broadcast %252 : vector<32x1xf32> to vector<32x96xf32>
    %254 = arith.mulf %251, %253 : vector<32x96xf32>
    %255 = vector.extract_strided_slice %247 {offsets = [0, 0], sizes = [1, 96], strides = [1, 1]} : vector<9x96xf32> to vector<1x96xf32>
    %256 = vector.broadcast %255 : vector<1x96xf32> to vector<32x96xf32>
    %257 = arith.mulf %254, %256 : vector<32x96xf32>
    %258 = vector.extract_strided_slice %246 {offsets = [0, 0], sizes = [28, 96], strides = [1, 1]} : vector<32x96xf32> to vector<28x96xf32>
    %c0_i32_68 = arith.constant 0 : i32
    %259 = arith.sitofp %c0_i32_68 : i32 to f32
    %260 = vector.broadcast %259 : f32 to vector<4x96xf32>
    %261 = tpu.concatenate %260, %258 in 0 : vector<4x96xf32>, vector<28x96xf32> -> vector<32x96xf32>
    %262 = vector.extract_strided_slice %1 {offsets = [32, 0], sizes = [32, 1], strides = [1, 1]} : vector<288x1xf32> to vector<32x1xf32>
    %263 = vector.broadcast %262 : vector<32x1xf32> to vector<32x96xf32>
    %264 = arith.mulf %261, %263 : vector<32x96xf32>
    %265 = vector.extract_strided_slice %247 {offsets = [1, 0], sizes = [1, 96], strides = [1, 1]} : vector<9x96xf32> to vector<1x96xf32>
    %266 = vector.broadcast %265 : vector<1x96xf32> to vector<32x96xf32>
    %267 = arith.mulf %264, %266 : vector<32x96xf32>
    %268 = arith.addf %257, %267 : vector<32x96xf32>
    %269 = vector.extract_strided_slice %246 {offsets = [0, 0], sizes = [29, 96], strides = [1, 1]} : vector<32x96xf32> to vector<29x96xf32>
    %c0_i32_69 = arith.constant 0 : i32
    %270 = arith.sitofp %c0_i32_69 : i32 to f32
    %271 = vector.broadcast %270 : f32 to vector<3x96xf32>
    %272 = tpu.concatenate %271, %269 in 0 : vector<3x96xf32>, vector<29x96xf32> -> vector<32x96xf32>
    %273 = vector.extract_strided_slice %1 {offsets = [64, 0], sizes = [32, 1], strides = [1, 1]} : vector<288x1xf32> to vector<32x1xf32>
    %274 = vector.broadcast %273 : vector<32x1xf32> to vector<32x96xf32>
    %275 = arith.mulf %272, %274 : vector<32x96xf32>
    %276 = vector.extract_strided_slice %247 {offsets = [2, 0], sizes = [1, 96], strides = [1, 1]} : vector<9x96xf32> to vector<1x96xf32>
    %277 = vector.broadcast %276 : vector<1x96xf32> to vector<32x96xf32>
    %278 = arith.mulf %275, %277 : vector<32x96xf32>
    %279 = arith.addf %268, %278 : vector<32x96xf32>
    %280 = vector.extract_strided_slice %246 {offsets = [0, 0], sizes = [31, 96], strides = [1, 1]} : vector<32x96xf32> to vector<31x96xf32>
    %c0_i32_70 = arith.constant 0 : i32
    %281 = arith.sitofp %c0_i32_70 : i32 to f32
    %282 = vector.broadcast %281 : f32 to vector<1x96xf32>
    %283 = tpu.concatenate %282, %280 in 0 : vector<1x96xf32>, vector<31x96xf32> -> vector<32x96xf32>
    %284 = vector.extract_strided_slice %1 {offsets = [96, 0], sizes = [32, 1], strides = [1, 1]} : vector<288x1xf32> to vector<32x1xf32>
    %285 = vector.broadcast %284 : vector<32x1xf32> to vector<32x96xf32>
    %286 = arith.mulf %283, %285 : vector<32x96xf32>
    %287 = vector.extract_strided_slice %247 {offsets = [3, 0], sizes = [1, 96], strides = [1, 1]} : vector<9x96xf32> to vector<1x96xf32>
    %288 = vector.broadcast %287 : vector<1x96xf32> to vector<32x96xf32>
    %289 = arith.mulf %286, %288 : vector<32x96xf32>
    %290 = arith.addf %279, %289 : vector<32x96xf32>
    %291 = vector.extract_strided_slice %247 {offsets = [4, 0], sizes = [1, 96], strides = [1, 1]} : vector<9x96xf32> to vector<1x96xf32>
    %292 = vector.broadcast %291 : vector<1x96xf32> to vector<32x96xf32>
    %293 = arith.mulf %246, %292 : vector<32x96xf32>
    %294 = arith.addf %290, %293 : vector<32x96xf32>
    %295 = vector.extract_strided_slice %246 {offsets = [1, 0], sizes = [31, 96], strides = [1, 1]} : vector<32x96xf32> to vector<31x96xf32>
    %c0_i32_71 = arith.constant 0 : i32
    %296 = arith.sitofp %c0_i32_71 : i32 to f32
    %297 = vector.broadcast %296 : f32 to vector<1x96xf32>
    %298 = tpu.concatenate %295, %297 in 0 : vector<31x96xf32>, vector<1x96xf32> -> vector<32x96xf32>
    %299 = vector.extract_strided_slice %1 {offsets = [160, 0], sizes = [32, 1], strides = [1, 1]} : vector<288x1xf32> to vector<32x1xf32>
    %300 = vector.broadcast %299 : vector<32x1xf32> to vector<32x96xf32>
    %301 = arith.mulf %298, %300 : vector<32x96xf32>
    %302 = vector.extract_strided_slice %247 {offsets = [5, 0], sizes = [1, 96], strides = [1, 1]} : vector<9x96xf32> to vector<1x96xf32>
    %303 = vector.broadcast %302 : vector<1x96xf32> to vector<32x96xf32>
    %304 = arith.mulf %301, %303 : vector<32x96xf32>
    %305 = arith.addf %294, %304 : vector<32x96xf32>
    %306 = vector.extract_strided_slice %246 {offsets = [3, 0], sizes = [29, 96], strides = [1, 1]} : vector<32x96xf32> to vector<29x96xf32>
    %c0_i32_72 = arith.constant 0 : i32
    %307 = arith.sitofp %c0_i32_72 : i32 to f32
    %308 = vector.broadcast %307 : f32 to vector<3x96xf32>
    %309 = tpu.concatenate %306, %308 in 0 : vector<29x96xf32>, vector<3x96xf32> -> vector<32x96xf32>
    %310 = vector.extract_strided_slice %1 {offsets = [192, 0], sizes = [32, 1], strides = [1, 1]} : vector<288x1xf32> to vector<32x1xf32>
    %311 = vector.broadcast %310 : vector<32x1xf32> to vector<32x96xf32>
    %312 = arith.mulf %309, %311 : vector<32x96xf32>
    %313 = vector.extract_strided_slice %247 {offsets = [6, 0], sizes = [1, 96], strides = [1, 1]} : vector<9x96xf32> to vector<1x96xf32>
    %314 = vector.broadcast %313 : vector<1x96xf32> to vector<32x96xf32>
    %315 = arith.mulf %312, %314 : vector<32x96xf32>
    %316 = arith.addf %305, %315 : vector<32x96xf32>
    %317 = vector.extract_strided_slice %246 {offsets = [4, 0], sizes = [28, 96], strides = [1, 1]} : vector<32x96xf32> to vector<28x96xf32>
    %c0_i32_73 = arith.constant 0 : i32
    %318 = arith.sitofp %c0_i32_73 : i32 to f32
    %319 = vector.broadcast %318 : f32 to vector<4x96xf32>
    %320 = tpu.concatenate %317, %319 in 0 : vector<28x96xf32>, vector<4x96xf32> -> vector<32x96xf32>
    %321 = vector.extract_strided_slice %1 {offsets = [224, 0], sizes = [32, 1], strides = [1, 1]} : vector<288x1xf32> to vector<32x1xf32>
    %322 = vector.broadcast %321 : vector<32x1xf32> to vector<32x96xf32>
    %323 = arith.mulf %320, %322 : vector<32x96xf32>
    %324 = vector.extract_strided_slice %247 {offsets = [7, 0], sizes = [1, 96], strides = [1, 1]} : vector<9x96xf32> to vector<1x96xf32>
    %325 = vector.broadcast %324 : vector<1x96xf32> to vector<32x96xf32>
    %326 = arith.mulf %323, %325 : vector<32x96xf32>
    %327 = arith.addf %316, %326 : vector<32x96xf32>
    %328 = vector.extract_strided_slice %246 {offsets = [5, 0], sizes = [27, 96], strides = [1, 1]} : vector<32x96xf32> to vector<27x96xf32>
    %c0_i32_74 = arith.constant 0 : i32
    %329 = arith.sitofp %c0_i32_74 : i32 to f32
    %330 = vector.broadcast %329 : f32 to vector<5x96xf32>
    %331 = tpu.concatenate %328, %330 in 0 : vector<27x96xf32>, vector<5x96xf32> -> vector<32x96xf32>
    %332 = vector.extract_strided_slice %1 {offsets = [256, 0], sizes = [32, 1], strides = [1, 1]} : vector<288x1xf32> to vector<32x1xf32>
    %333 = vector.broadcast %332 : vector<32x1xf32> to vector<32x96xf32>
    %334 = arith.mulf %331, %333 : vector<32x96xf32>
    %335 = vector.extract_strided_slice %247 {offsets = [8, 0], sizes = [1, 96], strides = [1, 1]} : vector<9x96xf32> to vector<1x96xf32>
    %336 = vector.broadcast %335 : vector<1x96xf32> to vector<32x96xf32>
    %337 = arith.mulf %334, %336 : vector<32x96xf32>
    %338 = arith.addf %327, %337 : vector<32x96xf32>
    %c0_75 = arith.constant 0 : index
    %c0_76 = arith.constant 0 : index
    %339 = vector.load %arg21[%c0_75, %c0_76] : memref<1x96xf32, #tpu.memory_space<vmem>>, vector<1x96xf32>
    %340 = vector.broadcast %339 : vector<1x96xf32> to vector<32x96xf32>
    %341 = arith.addf %338, %340 : vector<32x96xf32>
    %cst_77 = arith.constant 0.000000e+00 : f32
    %342 = vector.broadcast %cst_77 : f32 to vector<32x96xf32>
    %343 = arith.maximumf %341, %342 : vector<32x96xf32>
    %cst_78 = arith.constant 6.000000e+00 : f32
    %344 = vector.broadcast %cst_78 : f32 to vector<32x96xf32>
    %345 = arith.minimumf %343, %344 : vector<32x96xf32>
    %346 = arith.truncf %345 : vector<32x96xf32> to vector<32x96xbf16>
    %c0_79 = arith.constant 0 : index
    %c0_80 = arith.constant 0 : index
    %347 = vector.load %arg22[%c0_79, %c0_80] : memref<96x16xbf16, #tpu.memory_space<vmem>>, vector<96x16xbf16>
    %cst_81 = arith.constant dense<0.000000e+00> : vector<32x16xf32>
    %348 = tpu.matmul %346, %347, %cst_81 {dimension_numbers = #tpu.dot_dimension_numbers<[1], [0], [0], [1], [0, 0, 1, 1], [], []>} : vector<32x96xbf16>, vector<96x16xbf16>, vector<32x16xf32> -> vector<32x16xf32>
    %c0_82 = arith.constant 0 : index
    %c0_83 = arith.constant 0 : index
    %349 = vector.load %arg23[%c0_82, %c0_83] : memref<1x16xf32, #tpu.memory_space<vmem>>, vector<1x16xf32>
    %350 = vector.broadcast %349 : vector<1x16xf32> to vector<32x16xf32>
    %351 = arith.addf %348, %350 : vector<32x16xf32>
    %352 = arith.addf %351, %236 : vector<32x16xf32>
    %353 = arith.truncf %352 : vector<32x16xf32> to vector<32x16xbf16>
    %c0_84 = arith.constant 0 : index
    %c0_85 = arith.constant 0 : index
    %354 = vector.load %arg24[%c0_84, %c0_85] : memref<16x64xbf16, #tpu.memory_space<vmem>>, vector<16x64xbf16>
    %cst_86 = arith.constant dense<0.000000e+00> : vector<32x64xf32>
    %355 = tpu.matmul %353, %354, %cst_86 {dimension_numbers = #tpu.dot_dimension_numbers<[1], [0], [0], [1], [0, 0, 1, 1], [], []>} : vector<32x16xbf16>, vector<16x64xbf16>, vector<32x64xf32> -> vector<32x64xf32>
    %c0_87 = arith.constant 0 : index
    %c0_88 = arith.constant 0 : index
    %356 = vector.load %arg25[%c0_87, %c0_88] : memref<1x64xf32, #tpu.memory_space<vmem>>, vector<1x64xf32>
    %357 = vector.broadcast %356 : vector<1x64xf32> to vector<32x64xf32>
    %358 = arith.addf %355, %357 : vector<32x64xf32>
    %cst_89 = arith.constant 0.000000e+00 : f32
    %359 = vector.broadcast %cst_89 : f32 to vector<32x64xf32>
    %360 = arith.maximumf %358, %359 : vector<32x64xf32>
    %cst_90 = arith.constant 6.000000e+00 : f32
    %361 = vector.broadcast %cst_90 : f32 to vector<32x64xf32>
    %362 = arith.minimumf %360, %361 : vector<32x64xf32>
    %c0_91 = arith.constant 0 : index
    %c0_92 = arith.constant 0 : index
    %363 = vector.load %arg5[%c0_91, %c0_92] : memref<2x32xbf16, #tpu.memory_space<vmem>>, vector<2x32xbf16>
    %364 = arith.truncf %362 : vector<32x64xf32> to vector<32x64xbf16>
    %cst_93 = arith.constant dense<0.000000e+00> : vector<2x64xf32>
    %365 = tpu.matmul %363, %364, %cst_93 {dimension_numbers = #tpu.dot_dimension_numbers<[1], [0], [0], [1], [0, 0, 1, 1], [], []>} : vector<2x32xbf16>, vector<32x64xbf16>, vector<2x64xf32> -> vector<2x64xf32>
    %366 = arith.truncf %365 : vector<2x64xf32> to vector<2x64xbf16>
    %c0_94 = arith.constant 0 : index
    %c0_95 = arith.constant 0 : index
    %367 = vector.load %arg26[%c0_94, %c0_95] : memref<64x10xbf16, #tpu.memory_space<vmem>>, vector<64x10xbf16>
    %cst_96 = arith.constant dense<0.000000e+00> : vector<2x10xf32>
    %368 = tpu.matmul %366, %367, %cst_96 {dimension_numbers = #tpu.dot_dimension_numbers<[1], [0], [0], [1], [0, 0, 1, 1], [], []>} : vector<2x64xbf16>, vector<64x10xbf16>, vector<2x10xf32> -> vector<2x10xf32>
    %c0_97 = arith.constant 0 : index
    %c0_98 = arith.constant 0 : index
    %369 = vector.load %arg27[%c0_97, %c0_98] : memref<1x10xf32, #tpu.memory_space<vmem>>, vector<1x10xf32>
    %370 = vector.broadcast %369 : vector<1x10xf32> to vector<2x10xf32>
    %371 = arith.addf %368, %370 : vector<2x10xf32>
    %c0_99 = arith.constant 0 : index
    %c0_100 = arith.constant 0 : index
    %372 = vector.load %arg28[%c0_99, %c0_100] : memref<2x10xf32, #tpu.memory_space<vmem>>, vector<2x10xf32>
    tpu.vector_store %arg28[%c0_99, %c0_100], %371 {strides = array<i32>} : memref<2x10xf32, #tpu.memory_space<vmem>>, vector<2x10xf32>,
    return
  }
  func.func @transform_0(%arg0: i32) -> (i32, i32) {
    %c0_i32 = arith.constant 0 : i32
    %c0_i32_0 = arith.constant 0 : i32
    %c0_i32_1 = arith.constant 0 : i32
    return %c0_i32, %c0_i32_0 : i32, i32
  }
  func.func @transform_1(%arg0: i32) -> (i32, i32) {
    %c0_i32 = arith.constant 0 : i32
    %c0_i32_0 = arith.constant 0 : i32
    %c0_i32_1 = arith.constant 0 : i32
    return %c0_i32, %c0_i32_0 : i32, i32
  }
  func.func @transform_2(%arg0: i32) -> (i32, i32) {
    %c0_i32 = arith.constant 0 : i32
    %c0_i32_0 = arith.constant 0 : i32
    %c0_i32_1 = arith.constant 0 : i32
    return %c0_i32, %c0_i32_0 : i32, i32
  }
  func.func @transform_3(%arg0: i32) -> (i32, i32) {
    %c0_i32 = arith.constant 0 : i32
    %c0_i32_0 = arith.constant 0 : i32
    %c0_i32_1 = arith.constant 0 : i32
    return %c0_i32, %c0_i32_0 : i32, i32
  }
  func.func @transform_4(%arg0: i32) -> (i32, i32) {
    %c0_i32 = arith.constant 0 : i32
    %c0_i32_0 = arith.constant 0 : i32
    %c0_i32_1 = arith.constant 0 : i32
    return %c0_i32, %c0_i32_0 : i32, i32
  }
  func.func @transform_5(%arg0: i32) -> (i32, i32) {
    %c0_i32 = arith.constant 0 : i32
    %c0_i32_0 = arith.constant 0 : i32
    %c0_i32_1 = arith.constant 0 : i32
    return %c0_i32, %c0_i32_0 : i32, i32
  }
  func.func @transform_6(%arg0: i32) -> (i32, i32) {
    %c0_i32 = arith.constant 0 : i32
    %c0_i32_0 = arith.constant 0 : i32
    %c0_i32_1 = arith.constant 0 : i32
    return %c0_i32, %c0_i32_0 : i32, i32
  }
  func.func @transform_7(%arg0: i32) -> (i32, i32) {
    %c0_i32 = arith.constant 0 : i32
    %c0_i32_0 = arith.constant 0 : i32
    %c0_i32_1 = arith.constant 0 : i32
    return %c0_i32, %c0_i32_0 : i32, i32
  }
  func.func @transform_8(%arg0: i32) -> (i32, i32) {
    %c0_i32 = arith.constant 0 : i32
    %c0_i32_0 = arith.constant 0 : i32
    %c0_i32_1 = arith.constant 0 : i32
    return %c0_i32, %c0_i32_0 : i32, i32
  }
  func.func @transform_9(%arg0: i32) -> (i32, i32) {
    %c0_i32 = arith.constant 0 : i32
    %c0_i32_0 = arith.constant 0 : i32
    %c0_i32_1 = arith.constant 0 : i32
    return %c0_i32, %c0_i32_0 : i32, i32
  }
  func.func @transform_10(%arg0: i32) -> (i32, i32) {
    %c0_i32 = arith.constant 0 : i32
    %c0_i32_0 = arith.constant 0 : i32
    %c0_i32_1 = arith.constant 0 : i32
    return %c0_i32, %c0_i32_0 : i32, i32
  }
  func.func @transform_11(%arg0: i32) -> (i32, i32) {
    %c0_i32 = arith.constant 0 : i32
    %c0_i32_0 = arith.constant 0 : i32
    %c0_i32_1 = arith.constant 0 : i32
    return %c0_i32, %c0_i32_0 : i32, i32
  }
  func.func @transform_12(%arg0: i32) -> (i32, i32) {
    %c0_i32 = arith.constant 0 : i32
    %c0_i32_0 = arith.constant 0 : i32
    %c0_i32_1 = arith.constant 0 : i32
    return %c0_i32, %c0_i32_0 : i32, i32
  }
  func.func @transform_13(%arg0: i32) -> (i32, i32) {
    %c0_i32 = arith.constant 0 : i32
    %c0_i32_0 = arith.constant 0 : i32
    %c0_i32_1 = arith.constant 0 : i32
    return %c0_i32, %c0_i32_0 : i32, i32
  }
  func.func @transform_14(%arg0: i32) -> (i32, i32) {
    %c0_i32 = arith.constant 0 : i32
    %c0_i32_0 = arith.constant 0 : i32
    %c0_i32_1 = arith.constant 0 : i32
    return %c0_i32, %c0_i32_0 : i32, i32
  }
  func.func @transform_15(%arg0: i32) -> (i32, i32) {
    %c0_i32 = arith.constant 0 : i32
    %c0_i32_0 = arith.constant 0 : i32
    %c0_i32_1 = arith.constant 0 : i32
    return %c0_i32, %c0_i32_0 : i32, i32
  }
  func.func @transform_16(%arg0: i32) -> (i32, i32) {
    %c0_i32 = arith.constant 0 : i32
    %c0_i32_0 = arith.constant 0 : i32
    %c0_i32_1 = arith.constant 0 : i32
    return %c0_i32, %c0_i32_0 : i32, i32
  }
  func.func @transform_17(%arg0: i32) -> (i32, i32) {
    %c0_i32 = arith.constant 0 : i32
    %c0_i32_0 = arith.constant 0 : i32
    %c0_i32_1 = arith.constant 0 : i32
    return %c0_i32, %c0_i32_0 : i32, i32
  }
  func.func @transform_18(%arg0: i32) -> (i32, i32) {
    %c0_i32 = arith.constant 0 : i32
    %c0_i32_0 = arith.constant 0 : i32
    %c0_i32_1 = arith.constant 0 : i32
    return %c0_i32, %c0_i32_0 : i32, i32
  }
  func.func @transform_19(%arg0: i32) -> (i32, i32) {
    %c0_i32 = arith.constant 0 : i32
    %c0_i32_0 = arith.constant 0 : i32
    %c0_i32_1 = arith.constant 0 : i32
    return %c0_i32, %c0_i32_0 : i32, i32
  }
  func.func @transform_20(%arg0: i32) -> (i32, i32) {
    %c0_i32 = arith.constant 0 : i32
    %c0_i32_0 = arith.constant 0 : i32
    %c0_i32_1 = arith.constant 0 : i32
    return %c0_i32, %c0_i32_0 : i32, i32
  }
  func.func @transform_21(%arg0: i32) -> (i32, i32) {
    %c0_i32 = arith.constant 0 : i32
    %c0_i32_0 = arith.constant 0 : i32
    %c0_i32_1 = arith.constant 0 : i32
    return %c0_i32, %c0_i32_0 : i32, i32
  }
  func.func @transform_22(%arg0: i32) -> (i32, i32) {
    %c0_i32 = arith.constant 0 : i32
    %c0_i32_0 = arith.constant 0 : i32
    %c0_i32_1 = arith.constant 0 : i32
    return %c0_i32, %c0_i32_0 : i32, i32
  }
  func.func @transform_23(%arg0: i32) -> (i32, i32) {
    %c0_i32 = arith.constant 0 : i32
    %c0_i32_0 = arith.constant 0 : i32
    %c0_i32_1 = arith.constant 0 : i32
    return %c0_i32, %c0_i32_0 : i32, i32
  }
  func.func @transform_24(%arg0: i32) -> (i32, i32) {
    %c0_i32 = arith.constant 0 : i32
    %c0_i32_0 = arith.constant 0 : i32
    %c0_i32_1 = arith.constant 0 : i32
    return %c0_i32, %c0_i32_0 : i32, i32
  }
  func.func @transform_25(%arg0: i32) -> (i32, i32) {
    %c0_i32 = arith.constant 0 : i32
    %c0_i32_0 = arith.constant 0 : i32
    %c0_i32_1 = arith.constant 0 : i32
    return %c0_i32, %c0_i32_0 : i32, i32
  }
  func.func @transform_26(%arg0: i32) -> (i32, i32) {
    %c0_i32 = arith.constant 0 : i32
    %c0_i32_0 = arith.constant 0 : i32
    %c0_i32_1 = arith.constant 0 : i32
    return %c0_i32, %c0_i32_0 : i32, i32
  }
  func.func @transform_27(%arg0: i32) -> (i32, i32) {
    %c0_i32 = arith.constant 0 : i32
    %c0_i32_0 = arith.constant 0 : i32
    %c0_i32_1 = arith.constant 0 : i32
    return %c0_i32, %c0_i32_0 : i32, i32
  }
}

</mosaic_0001>

<llo_original>
// kernel: fused_mobilenet_v2_forward.1
$region0: #{fused_mobilenet_v2_forward.1}
  #allocation0 [shape = 'u32[]', space=smem, size = 0x4, offset = 0x4, fixed_abs, tag = 'smem constant byte address 0x4 - core index']
  #allocation1 [shape = 'u32[144,128]{1,0:T(1,128)}', space=vmem, size = 0x12000, scoped, tag = 'internal scratch']
  %s0 = inlined_call_operand.vmem [shape: f32[128,27], index: 0, kind: input, shape index: {}]
  %s1 = inlined_call_operand.vmem [shape: f32[1152,1], index: 1, kind: input, shape index: {}]
  %s2 = inlined_call_operand.vmem [shape: bf16[32,128], index: 2, kind: input, shape index: {}]
  %s3 = inlined_call_operand.vmem [shape: f32[288,1], index: 3, kind: input, shape index: {}]
  %s4 = inlined_call_operand.vmem [shape: bf16[2,32], index: 4, kind: input, shape index: {}]
  %s5 = inlined_call_operand.vmem [shape: bf16[27,8], index: 5, kind: input, shape index: {}]
  %s6 = inlined_call_operand.vmem [shape: f32[1,8], index: 6, kind: input, shape index: {}]
  %s7 = inlined_call_operand.vmem [shape: f32[9,8], index: 7, kind: input, shape index: {}]
  %s8 = inlined_call_operand.vmem [shape: f32[1,8], index: 8, kind: input, shape index: {}]
  %s9 = inlined_call_operand.vmem [shape: bf16[8,8], index: 9, kind: input, shape index: {}]
  %s10 = inlined_call_operand.vmem [shape: f32[1,8], index: 10, kind: input, shape index: {}]
  %s11 = inlined_call_operand.vmem [shape: bf16[8,48], index: 11, kind: input, shape index: {}]
  %s12 = inlined_call_operand.vmem [shape: f32[1,48], index: 12, kind: input, shape index: {}]
  %s13 = inlined_call_operand.vmem [shape: f32[9,48], index: 13, kind: input, shape index: {}]
  %s14 = inlined_call_operand.vmem [shape: f32[1,48], index: 14, kind: input, shape index: {}]
  %s15 = inlined_call_operand.vmem [shape: bf16[48,16], index: 15, kind: input, shape index: {}]
  %s16 = inlined_call_operand.vmem [shape: f32[1,16], index: 16, kind: input, shape index: {}]
  %s17 = inlined_call_operand.vmem [shape: bf16[16,96], index: 17, kind: input, shape index: {}]
  %s18 = inlined_call_operand.vmem [shape: f32[1,96], index: 18, kind: input, shape index: {}]
  %s19 = inlined_call_operand.vmem [shape: f32[9,96], index: 19, kind: input, shape index: {}]
  %s20 = inlined_call_operand.vmem [shape: f32[1,96], index: 20, kind: input, shape index: {}]
  %s21 = inlined_call_operand.vmem [shape: bf16[96,16], index: 21, kind: input, shape index: {}]
  %s22 = inlined_call_operand.vmem [shape: f32[1,16], index: 22, kind: input, shape index: {}]
  %s23 = inlined_call_operand.vmem [shape: bf16[16,64], index: 23, kind: input, shape index: {}]
  %s24 = inlined_call_operand.vmem [shape: f32[1,64], index: 24, kind: input, shape index: {}]
  %s25 = inlined_call_operand.vmem [shape: bf16[64,10], index: 25, kind: input, shape index: {}]
  %s26 = inlined_call_operand.vmem [shape: f32[1,10], index: 26, kind: input, shape index: {}]
  %s27 = inlined_call_operand.hbm [shape: f32[2,10], index: 27, kind: output, shape index: {}]
  %s28 = sld [smem:[#allocation0]]
  $region118: #{fused_mobilenet_v2_forward.1} parent=0
    _
  %s30 = ssub.s32 1, %s28
  %s31 = scalar_select 0, %s30, %s28
  $region1: #{fused_mobilenet_v2_forward.1} parent=0
    #allocation2 [shape = 'u8[1024]{0}', space=vmem, size = 0x400, scoped, tag = 'output window, operand 0, single buffered']
    #allocation3 [shape = 's32[1]{0}', space=sflag, size = 0x4, scoped, tag = 'scoped memory for fused_mobilenet_v2_forward.1']
    %32 = vsyncpa [#allocation3], 0
    // Predicated region
    $region2: #{fused_mobilenet_v2_forward.1} parent=1 // pred_check
      _
    $region3: #{fused_mobilenet_v2_forward.1} parent=1 // pred_check_branch
      %34 = sbr.rel (0) target = $region5
    $region4: #{fused_mobilenet_v2_forward.1} parent=1 // pred_region
      _
    $region5: #{fused_mobilenet_v2_forward.1} parent=1 // pred_fallthru
      _
    // Predicated region
    $region6: #{fused_mobilenet_v2_forward.1} parent=1 // pred_check
      _
    $region7: #{fused_mobilenet_v2_forward.1} parent=1 // pred_check_branch
      %36 = sbr.rel (0) target = $region9
    $region8: #{fused_mobilenet_v2_forward.1} parent=1 // pred_region
      _
    $region9: #{fused_mobilenet_v2_forward.1} parent=1 // pred_fallthru
      _
    // Predicated region
    $region10: #{fused_mobilenet_v2_forward.1} parent=1 // pred_check
      _
    $region11: #{fused_mobilenet_v2_forward.1} parent=1 // pred_check_branch
      %38 = sbr.rel (0) target = $region13
    $region12: #{fused_mobilenet_v2_forward.1} parent=1 // pred_region
      _
    $region13: #{fused_mobilenet_v2_forward.1} parent=1 // pred_fallthru
      _
    // Predicated region
    $region14: #{fused_mobilenet_v2_forward.1} parent=1 // pred_check
      _
    $region15: #{fused_mobilenet_v2_forward.1} parent=1 // pred_check_branch
      %40 = sbr.rel (0) target = $region17
    $region16: #{fused_mobilenet_v2_forward.1} parent=1 // pred_region
      _
    $region17: #{fused_mobilenet_v2_forward.1} parent=1 // pred_fallthru
      _
    // Predicated region
    $region18: #{fused_mobilenet_v2_forward.1} parent=1 // pred_check
      _
    $region19: #{fused_mobilenet_v2_forward.1} parent=1 // pred_check_branch
      %42 = sbr.rel (0) target = $region21
    $region20: #{fused_mobilenet_v2_forward.1} parent=1 // pred_region
      _
    $region21: #{fused_mobilenet_v2_forward.1} parent=1 // pred_fallthru
      _
    // Predicated region
    $region22: #{fused_mobilenet_v2_forward.1} parent=1 // pred_check
      _
    $region23: #{fused_mobilenet_v2_forward.1} parent=1 // pred_check_branch
      %44 = sbr.rel (0) target = $region25
    $region24: #{fused_mobilenet_v2_forward.1} parent=1 // pred_region
      _
    $region25: #{fused_mobilenet_v2_forward.1} parent=1 // pred_fallthru
      _
    // Predicated region
    $region26: #{fused_mobilenet_v2_forward.1} parent=1 // pred_check
      _
    $region27: #{fused_mobilenet_v2_forward.1} parent=1 // pred_check_branch
      %46 = sbr.rel (0) target = $region29
    $region28: #{fused_mobilenet_v2_forward.1} parent=1 // pred_region
      _
    $region29: #{fused_mobilenet_v2_forward.1} parent=1 // pred_fallthru
      _
    // Predicated region
    $region30: #{fused_mobilenet_v2_forward.1} parent=1 // pred_check
      _
    $region31: #{fused_mobilenet_v2_forward.1} parent=1 // pred_check_branch
      %48 = sbr.rel (0) target = $region33
    $region32: #{fused_mobilenet_v2_forward.1} parent=1 // pred_region
      _
    $region33: #{fused_mobilenet_v2_forward.1} parent=1 // pred_fallthru
      _
    // Predicated region
    $region34: #{fused_mobilenet_v2_forward.1} parent=1 // pred_check
      _
    $region35: #{fused_mobilenet_v2_forward.1} parent=1 // pred_check_branch
      %50 = sbr.rel (0) target = $region37
    $region36: #{fused_mobilenet_v2_forward.1} parent=1 // pred_region
      _
    $region37: #{fused_mobilenet_v2_forward.1} parent=1 // pred_fallthru
      _
    // Predicated region
    $region38: #{fused_mobilenet_v2_forward.1} parent=1 // pred_check
      _
    $region39: #{fused_mobilenet_v2_forward.1} parent=1 // pred_check_branch
      %52 = sbr.rel (0) target = $region41
    $region40: #{fused_mobilenet_v2_forward.1} parent=1 // pred_region
      _
    $region41: #{fused_mobilenet_v2_forward.1} parent=1 // pred_fallthru
      _
    // Predicated region
    $region42: #{fused_mobilenet_v2_forward.1} parent=1 // pred_check
      _
    $region43: #{fused_mobilenet_v2_forward.1} parent=1 // pred_check_branch
      %54 = sbr.rel (0) target = $region45
    $region44: #{fused_mobilenet_v2_forward.1} parent=1 // pred_region
      _
    $region45: #{fused_mobilenet_v2_forward.1} parent=1 // pred_fallthru
      _
    // Predicated region
    $region46: #{fused_mobilenet_v2_forward.1} parent=1 // pred_check
      _
    $region47: #{fused_mobilenet_v2_forward.1} parent=1 // pred_check_branch
      %56 = sbr.rel (0) target = $region49
    $region48: #{fused_mobilenet_v2_forward.1} parent=1 // pred_region
      _
    $region49: #{fused_mobilenet_v2_forward.1} parent=1 // pred_fallthru
      _
    // Predicated region
    $region50: #{fused_mobilenet_v2_forward.1} parent=1 // pred_check
      _
    $region51: #{fused_mobilenet_v2_forward.1} parent=1 // pred_check_branch
      %58 = sbr.rel (0) target = $region53
    $region52: #{fused_mobilenet_v2_forward.1} parent=1 // pred_region
      _
    $region53: #{fused_mobilenet_v2_forward.1} parent=1 // pred_fallthru
      _
    // Predicated region
    $region54: #{fused_mobilenet_v2_forward.1} parent=1 // pred_check
      _
    $region55: #{fused_mobilenet_v2_forward.1} parent=1 // pred_check_branch
      %60 = sbr.rel (0) target = $region57
    $region56: #{fused_mobilenet_v2_forward.1} parent=1 // pred_region
      _
    $region57: #{fused_mobilenet_v2_forward.1} parent=1 // pred_fallthru
      _
    // Predicated region
    $region58: #{fused_mobilenet_v2_forward.1} parent=1 // pred_check
      _
    $region59: #{fused_mobilenet_v2_forward.1} parent=1 // pred_check_branch
      %62 = sbr.rel (0) target = $region61
    $region60: #{fused_mobilenet_v2_forward.1} parent=1 // pred_region
      _
    $region61: #{fused_mobilenet_v2_forward.1} parent=1 // pred_fallthru
      _
    // Predicated region
    $region62: #{fused_mobilenet_v2_forward.1} parent=1 // pred_check
      _
    $region63: #{fused_mobilenet_v2_forward.1} parent=1 // pred_check_branch
      %64 = sbr.rel (0) target = $region65
    $region64: #{fused_mobilenet_v2_forward.1} parent=1 // pred_region
      _
    $region65: #{fused_mobilenet_v2_forward.1} parent=1 // pred_fallthru
      _
    // Predicated region
    $region66: #{fused_mobilenet_v2_forward.1} parent=1 // pred_check
      _
    $region67: #{fused_mobilenet_v2_forward.1} parent=1 // pred_check_branch
      %66 = sbr.rel (0) target = $region69
    $region68: #{fused_mobilenet_v2_forward.1} parent=1 // pred_region
      _
    $region69: #{fused_mobilenet_v2_forward.1} parent=1 // pred_fallthru
      _
    // Predicated region
    $region70: #{fused_mobilenet_v2_forward.1} parent=1 // pred_check
      _
    $region71: #{fused_mobilenet_v2_forward.1} parent=1 // pred_check_branch
      %68 = sbr.rel (0) target = $region73
    $region72: #{fused_mobilenet_v2_forward.1} parent=1 // pred_region
      _
    $region73: #{fused_mobilenet_v2_forward.1} parent=1 // pred_fallthru
      _
    // Predicated region
    $region74: #{fused_mobilenet_v2_forward.1} parent=1 // pred_check
      _
    $region75: #{fused_mobilenet_v2_forward.1} parent=1 // pred_check_branch
      %70 = sbr.rel (0) target = $region77
    $region76: #{fused_mobilenet_v2_forward.1} parent=1 // pred_region
      _
    $region77: #{fused_mobilenet_v2_forward.1} parent=1 // pred_fallthru
      _
    // Predicated region
    $region78: #{fused_mobilenet_v2_forward.1} parent=1 // pred_check
      _
    $region79: #{fused_mobilenet_v2_forward.1} parent=1 // pred_check_branch
      %72 = sbr.rel (0) target = $region81
    $region80: #{fused_mobilenet_v2_forward.1} parent=1 // pred_region
      _
    $region81: #{fused_mobilenet_v2_forward.1} parent=1 // pred_fallthru
      _
    // Predicated region
    $region82: #{fused_mobilenet_v2_forward.1} parent=1 // pred_check
      _
    $region83: #{fused_mobilenet_v2_forward.1} parent=1 // pred_check_branch
      %74 = sbr.rel (0) target = $region85
    $region84: #{fused_mobilenet_v2_forward.1} parent=1 // pred_region
      _
    $region85: #{fused_mobilenet_v2_forward.1} parent=1 // pred_fallthru
      _
    // Predicated region
    $region86: #{fused_mobilenet_v2_forward.1} parent=1 // pred_check
      _
    $region87: #{fused_mobilenet_v2_forward.1} parent=1 // pred_check_branch
      %76 = sbr.rel (0) target = $region89
    $region88: #{fused_mobilenet_v2_forward.1} parent=1 // pred_region
      _
    $region89: #{fused_mobilenet_v2_forward.1} parent=1 // pred_fallthru
      _
    // Predicated region
    $region90: #{fused_mobilenet_v2_forward.1} parent=1 // pred_check
      _
    $region91: #{fused_mobilenet_v2_forward.1} parent=1 // pred_check_branch
      %78 = sbr.rel (0) target = $region93
    $region92: #{fused_mobilenet_v2_forward.1} parent=1 // pred_region
      _
    $region93: #{fused_mobilenet_v2_forward.1} parent=1 // pred_fallthru
      _
    // Predicated region
    $region94: #{fused_mobilenet_v2_forward.1} parent=1 // pred_check
      _
    $region95: #{fused_mobilenet_v2_forward.1} parent=1 // pred_check_branch
      %80 = sbr.rel (0) target = $region97
    $region96: #{fused_mobilenet_v2_forward.1} parent=1 // pred_region
      _
    $region97: #{fused_mobilenet_v2_forward.1} parent=1 // pred_fallthru
      _
    // Predicated region
    $region98: #{fused_mobilenet_v2_forward.1} parent=1 // pred_check
      _
    $region99: #{fused_mobilenet_v2_forward.1} parent=1 // pred_check_branch
      %82 = sbr.rel (0) target = $region101
    $region100: #{fused_mobilenet_v2_forward.1} parent=1 // pred_region
      _
    $region101: #{fused_mobilenet_v2_forward.1} parent=1 // pred_fallthru
      _
    // Predicated region
    $region102: #{fused_mobilenet_v2_forward.1} parent=1 // pred_check
      _
    $region103: #{fused_mobilenet_v2_forward.1} parent=1 // pred_check_branch
      %84 = sbr.rel (0) target = $region105
    $region104: #{fused_mobilenet_v2_forward.1} parent=1 // pred_region
      _
    $region105: #{fused_mobilenet_v2_forward.1} parent=1 // pred_fallthru
      _
    // Predicated region
    $region106: #{fused_mobilenet_v2_forward.1} parent=1 // pred_check
      _
    $region107: #{fused_mobilenet_v2_forward.1} parent=1 // pred_check_branch
      %86 = sbr.rel (0) target = $region109
    $region108: #{fused_mobilenet_v2_forward.1} parent=1 // pred_region
      _
    $region109: #{fused_mobilenet_v2_forward.1} parent=1 // pred_fallthru
      _
    %v88 = vld [vmem:[%s1] sm:$0xff]
    %v89 = vld [vmem:[%s1 + $0x8] sm:$0xff]
    %v90 = vld [vmem:[%s1 + $0x10] sm:$0xff]
    %v91 = vld [vmem:[%s1 + $0x18] sm:$0xff]
    %v92 = vld [vmem:[%s1 + $0x20] sm:$0xff]
    %v93 = vld [vmem:[%s1 + $0x28] sm:$0xff]
    %v94 = vld [vmem:[%s1 + $0x30] sm:$0xff]
    %v95 = vld [vmem:[%s1 + $0x38] sm:$0xff]
    %v96 = vld [vmem:[%s1 + $0x40] sm:$0xff]
    %v97 = vld [vmem:[%s1 + $0x48] sm:$0xff]
    %v98 = vld [vmem:[%s1 + $0x50] sm:$0xff]
    %v99 = vld [vmem:[%s1 + $0x58] sm:$0xff]
    %v100 = vld [vmem:[%s1 + $0x60] sm:$0xff]
    %v101 = vld [vmem:[%s1 + $0x68] sm:$0xff]
    %v102 = vld [vmem:[%s1 + $0x70] sm:$0xff]
    %v103 = vld [vmem:[%s1 + $0x78] sm:$0xff]
    %v104 = vld [vmem:[%s1 + $0x80] sm:$0xff]
    %v105 = vld [vmem:[%s1 + $0x88] sm:$0xff]
    %v106 = vld [vmem:[%s1 + $0x90] sm:$0xff]
    %v107 = vld [vmem:[%s1 + $0x98] sm:$0xff]
    %v108 = vld [vmem:[%s1 + $0xa0] sm:$0xff]
    %v109 = vld [vmem:[%s1 + $0xa8] sm:$0xff]
    %v110 = vld [vmem:[%s1 + $0xb0] sm:$0xff]
    %v111 = vld [vmem:[%s1 + $0xb8] sm:$0xff]
    %v112 = vld [vmem:[%s1 + $0xc0] sm:$0xff]
    %v113 = vld [vmem:[%s1 + $0xc8] sm:$0xff]
    %v114 = vld [vmem:[%s1 + $0xd0] sm:$0xff]
    %v115 = vld [vmem:[%s1 + $0xd8] sm:$0xff]
    %v116 = vld [vmem:[%s1 + $0xe0] sm:$0xff]
    %v117 = vld [vmem:[%s1 + $0xe8] sm:$0xff]
    %v118 = vld [vmem:[%s1 + $0xf0] sm:$0xff]
    %v119 = vld [vmem:[%s1 + $0xf8] sm:$0xff]
    %v120 = vld [vmem:[%s1 + $0x100] sm:$0xff]
    %v121 = vld [vmem:[%s1 + $0x108] sm:$0xff]
    %v122 = vld [vmem:[%s1 + $0x110] sm:$0xff]
    %v123 = vld [vmem:[%s1 + $0x118] sm:$0xff]
    %v124 = vld [vmem:[%s1 + $0x120] sm:$0xff]
    %v125 = vld [vmem:[%s1 + $0x128] sm:$0xff]
    %v126 = vld [vmem:[%s1 + $0x130] sm:$0xff]
    %v127 = vld [vmem:[%s1 + $0x138] sm:$0xff]
    %v128 = vld [vmem:[%s1 + $0x140] sm:$0xff]
    %v129 = vld [vmem:[%s1 + $0x148] sm:$0xff]
    %v130 = vld [vmem:[%s1 + $0x150] sm:$0xff]
    %v131 = vld [vmem:[%s1 + $0x158] sm:$0xff]
    %v132 = vld [vmem:[%s1 + $0x160] sm:$0xff]
    %v133 = vld [vmem:[%s1 + $0x168] sm:$0xff]
    %v134 = vld [vmem:[%s1 + $0x170] sm:$0xff]
    %v135 = vld [vmem:[%s1 + $0x178] sm:$0xff]
    %v136 = vld [vmem:[%s1 + $0x180] sm:$0xff]
    %v137 = vld [vmem:[%s1 + $0x188] sm:$0xff]
    %v138 = vld [vmem:[%s1 + $0x190] sm:$0xff]
    %v139 = vld [vmem:[%s1 + $0x198] sm:$0xff]
    %v140 = vld [vmem:[%s1 + $0x1a0] sm:$0xff]
    %v141 = vld [vmem:[%s1 + $0x1a8] sm:$0xff]
    %v142 = vld [vmem:[%s1 + $0x1b0] sm:$0xff]
    %v143 = vld [vmem:[%s1 + $0x1b8] sm:$0xff]
    %v144 = vld [vmem:[%s1 + $0x1c0] sm:$0xff]
    %v145 = vld [vmem:[%s1 + $0x1c8] sm:$0xff]
    %v146 = vld [vmem:[%s1 + $0x1d0] sm:$0xff]
    %v147 = vld [vmem:[%s1 + $0x1d8] sm:$0xff]
    %v148 = vld [vmem:[%s1 + $0x1e0] sm:$0xff]
    %v149 = vld [vmem:[%s1 + $0x1e8] sm:$0xff]
    %v150 = vld [vmem:[%s1 + $0x1f0] sm:$0xff]
    %v151 = vld [vmem:[%s1 + $0x1f8] sm:$0xff]
    %v152 = vld [vmem:[%s1 + $0x280] sm:$0xff]
    %v153 = vld [vmem:[%s1 + $0x288] sm:$0xff]
    %v154 = vld [vmem:[%s1 + $0x290] sm:$0xff]
    %v155 = vld [vmem:[%s1 + $0x298] sm:$0xff]
    %v156 = vld [vmem:[%s1 + $0x2a0] sm:$0xff]
    %v157 = vld [vmem:[%s1 + $0x2a8] sm:$0xff]
    %v158 = vld [vmem:[%s1 + $0x2b0] sm:$0xff]
    %v159 = vld [vmem:[%s1 + $0x2b8] sm:$0xff]
    %v160 = vld [vmem:[%s1 + $0x2c0] sm:$0xff]
    %v161 = vld [vmem:[%s1 + $0x2c8] sm:$0xff]
    %v162 = vld [vmem:[%s1 + $0x2d0] sm:$0xff]
    %v163 = vld [vmem:[%s1 + $0x2d8] sm:$0xff]
    %v164 = vld [vmem:[%s1 + $0x2e0] sm:$0xff]
    %v165 = vld [vmem:[%s1 + $0x2e8] sm:$0xff]
    %v166 = vld [vmem:[%s1 + $0x2f0] sm:$0xff]
    %v167 = vld [vmem:[%s1 + $0x2f8] sm:$0xff]
    %v168 = vld [vmem:[%s1 + $0x300] sm:$0xff]
    %v169 = vld [vmem:[%s1 + $0x308] sm:$0xff]
    %v170 = vld [vmem:[%s1 + $0x310] sm:$0xff]
    %v171 = vld [vmem:[%s1 + $0x318] sm:$0xff]
    %v172 = vld [vmem:[%s1 + $0x320] sm:$0xff]
    %v173 = vld [vmem:[%s1 + $0x328] sm:$0xff]
    %v174 = vld [vmem:[%s1 + $0x330] sm:$0xff]
    %v175 = vld [vmem:[%s1 + $0x338] sm:$0xff]
    %v176 = vld [vmem:[%s1 + $0x340] sm:$0xff]
    %v177 = vld [vmem:[%s1 + $0x348] sm:$0xff]
    %v178 = vld [vmem:[%s1 + $0x350] sm:$0xff]
    %v179 = vld [vmem:[%s1 + $0x358] sm:$0xff]
    %v180 = vld [vmem:[%s1 + $0x360] sm:$0xff]
    %v181 = vld [vmem:[%s1 + $0x368] sm:$0xff]
    %v182 = vld [vmem:[%s1 + $0x370] sm:$0xff]
    %v183 = vld [vmem:[%s1 + $0x378] sm:$0xff]
    %v184 = vld [vmem:[%s1 + $0x380] sm:$0xff]
    %v185 = vld [vmem:[%s1 + $0x388] sm:$0xff]
    %v186 = vld [vmem:[%s1 + $0x390] sm:$0xff]
    %v187 = vld [vmem:[%s1 + $0x398] sm:$0xff]
    %v188 = vld [vmem:[%s1 + $0x3a0] sm:$0xff]
    %v189 = vld [vmem:[%s1 + $0x3a8] sm:$0xff]
    %v190 = vld [vmem:[%s1 + $0x3b0] sm:$0xff]
    %v191 = vld [vmem:[%s1 + $0x3b8] sm:$0xff]
    %v192 = vld [vmem:[%s1 + $0x3c0] sm:$0xff]
    %v193 = vld [vmem:[%s1 + $0x3c8] sm:$0xff]
    %v194 = vld [vmem:[%s1 + $0x3d0] sm:$0xff]
    %v195 = vld [vmem:[%s1 + $0x3d8] sm:$0xff]
    %v196 = vld [vmem:[%s1 + $0x3e0] sm:$0xff]
    %v197 = vld [vmem:[%s1 + $0x3e8] sm:$0xff]
    %v198 = vld [vmem:[%s1 + $0x3f0] sm:$0xff]
    %v199 = vld [vmem:[%s1 + $0x3f8] sm:$0xff]
    %v200 = vld [vmem:[%s1 + $0x400] sm:$0xff]
    %v201 = vld [vmem:[%s1 + $0x408] sm:$0xff]
    %v202 = vld [vmem:[%s1 + $0x410] sm:$0xff]
    %v203 = vld [vmem:[%s1 + $0x418] sm:$0xff]
    %v204 = vld [vmem:[%s1 + $0x420] sm:$0xff]
    %v205 = vld [vmem:[%s1 + $0x428] sm:$0xff]
    %v206 = vld [vmem:[%s1 + $0x430] sm:$0xff]
    %v207 = vld [vmem:[%s1 + $0x438] sm:$0xff]
    %v208 = vld [vmem:[%s1 + $0x440] sm:$0xff]
    %v209 = vld [vmem:[%s1 + $0x448] sm:$0xff]
    %v210 = vld [vmem:[%s1 + $0x450] sm:$0xff]
    %v211 = vld [vmem:[%s1 + $0x458] sm:$0xff]
    %v212 = vld [vmem:[%s1 + $0x460] sm:$0xff]
    %v213 = vld [vmem:[%s1 + $0x468] sm:$0xff]
    %v214 = vld [vmem:[%s1 + $0x470] sm:$0xff]
    %v215 = vld [vmem:[%s1 + $0x478] sm:$0xff]
    %v216 = vld [vmem:[%s3] sm:$0xff]
    %v217 = vld [vmem:[%s3 + $0x8] sm:$0xff]
    %v218 = vld [vmem:[%s3 + $0x10] sm:$0xff]
    %v219 = vld [vmem:[%s3 + $0x18] sm:$0xff]
    %v220 = vld [vmem:[%s3 + $0x20] sm:$0xff]
    %v221 = vld [vmem:[%s3 + $0x28] sm:$0xff]
    %v222 = vld [vmem:[%s3 + $0x30] sm:$0xff]
    %v223 = vld [vmem:[%s3 + $0x38] sm:$0xff]
    %v224 = vld [vmem:[%s3 + $0x40] sm:$0xff]
    %v225 = vld [vmem:[%s3 + $0x48] sm:$0xff]
    %v226 = vld [vmem:[%s3 + $0x50] sm:$0xff]
    %v227 = vld [vmem:[%s3 + $0x58] sm:$0xff]
    %v228 = vld [vmem:[%s3 + $0x60] sm:$0xff]
    %v229 = vld [vmem:[%s3 + $0x68] sm:$0xff]
    %v230 = vld [vmem:[%s3 + $0x70] sm:$0xff]
    %v231 = vld [vmem:[%s3 + $0x78] sm:$0xff]
    %v232 = vld [vmem:[%s3 + $0xa0] sm:$0xff]
    %v233 = vld [vmem:[%s3 + $0xa8] sm:$0xff]
    %v234 = vld [vmem:[%s3 + $0xb0] sm:$0xff]
    %v235 = vld [vmem:[%s3 + $0xb8] sm:$0xff]
    %v236 = vld [vmem:[%s3 + $0xc0] sm:$0xff]
    %v237 = vld [vmem:[%s3 + $0xc8] sm:$0xff]
    %v238 = vld [vmem:[%s3 + $0xd0] sm:$0xff]
    %v239 = vld [vmem:[%s3 + $0xd8] sm:$0xff]
    %v240 = vld [vmem:[%s3 + $0xe0] sm:$0xff]
    %v241 = vld [vmem:[%s3 + $0xe8] sm:$0xff]
    %v242 = vld [vmem:[%s3 + $0xf0] sm:$0xff]
    %v243 = vld [vmem:[%s3 + $0xf8] sm:$0xff]
    %v244 = vld [vmem:[%s3 + $0x100] sm:$0xff]
    %v245 = vld [vmem:[%s3 + $0x108] sm:$0xff]
    %v246 = vld [vmem:[%s3 + $0x110] sm:$0xff]
    %v247 = vld [vmem:[%s3 + $0x118] sm:$0xff]
    %v248 = vld [vmem:[%s0] sm:$0xff]
    %v249 = vld [vmem:[%s0 + $0x8] sm:$0xff]
    %v250 = vld [vmem:[%s0 + $0x10] sm:$0xff]
    %v251 = vld [vmem:[%s0 + $0x18] sm:$0xff]
    %v252 = vld [vmem:[%s0 + $0x20] sm:$0xff]
    %v253 = vld [vmem:[%s0 + $0x28] sm:$0xff]
    %v254 = vld [vmem:[%s0 + $0x30] sm:$0xff]
    %v255 = vld [vmem:[%s0 + $0x38] sm:$0xff]
    %v256 = vld [vmem:[%s0 + $0x40] sm:$0xff]
    %v257 = vld [vmem:[%s0 + $0x48] sm:$0xff]
    %v258 = vld [vmem:[%s0 + $0x50] sm:$0xff]
    %v259 = vld [vmem:[%s0 + $0x58] sm:$0xff]
    %v260 = vld [vmem:[%s0 + $0x60] sm:$0xff]
    %v261 = vld [vmem:[%s0 + $0x68] sm:$0xff]
    %v262 = vld [vmem:[%s0 + $0x70] sm:$0xff]
    %v263 = vld [vmem:[%s0 + $0x78] sm:$0xff]
    %v264 = vpack.c.bf16 %v249, %v248
    %v265 = vpack.c.bf16 %v251, %v250
    %v266 = vpack.c.bf16 %v253, %v252
    %v267 = vpack.c.bf16 %v255, %v254
    %v268 = vpack.c.bf16 %v257, %v256
    %v269 = vpack.c.bf16 %v259, %v258
    %v270 = vpack.c.bf16 %v261, %v260
    %v271 = vpack.c.bf16 %v263, %v262
    %v272 = vld [vmem:[%s5] sm:$0xf]
    %v273 = vld [vmem:[%s5 + $0x4] sm:$0xf]
    %v274 = vld [vmem:[%s5 + $0x8] sm:$0xf]
    %v275 = vld [vmem:[%s5 + $0xc] sm:$0x3]
    %v276 = vld [vmem:[%s6] sm:$0x1]
    %v278 = vlaneseq
    %v279 = vshrl.u32 %v278, 7
    %v280 = vsub.s32 0, %v279
    %v281 = vrot.slane %v276, %v280
    %v287 = vunpack.c.l.b16 %v272
    %v288 = vunpack.c.l.b16 %v273
    %v289 = vunpack.c.l.b16 %v274
    %v290 = vunpack.c.l.b16 %v275
    %v291 = vpack.c.b16 %v288, %v287
    %v292 = vpack.c.b16 %v290, %v289
    %vm294 = vcmask 220160
    %v296 = vsel %vm294, %v264, 0
    %v299 = vsel %vm294, %v265, 0
    %v302 = vsel %vm294, %v266, 0
    %v305 = vsel %vm294, %v267, 0
    %v308 = vsel %vm294, %v268, 0
    %v311 = vsel %vm294, %v269, 0
    %v314 = vsel %vm294, %v270, 0
    %v317 = vsel %vm294, %v271, 0
    %vm319 = vcmask 1044480
    %vm320 = vcmask 1045504
    %v321 = vsel %vm319, 4294967295, 65535
    %v322 = vsel %vm320, %v321, 0
    %v324 = vand.u32 %v292, %v322
    %326 = vmatprep.subr.bf16.mxu0 0
    %327 = vmatpush1.bf16.msra.mxu0 %v291
    %328 = vmatprep.subr.bf16.mxu0 0
    %329 = vmatpush1.bf16.msra.mxu0 %v324
    %330 = vmatprep.subr.bf16.mxu0 0
    %331 = vmatpush1.bf16.msra.mxu0 0
    %332 = vmatprep.subr.bf16.mxu0 0
    %333 = vmatpush1.bf16.msra.mxu0 0
    %334 = vmatprep.subr.bf16.mxu0 0
    %335 = vmatpush1.bf16.msra.mxu0 0
    %336 = vmatprep.subr.bf16.mxu0 0
    %337 = vmatpush1.bf16.msra.mxu0 0
    %338 = vmatprep.subr.bf16.mxu0 0
    %339 = vmatpush1.bf16.msra.mxu0 0
    %340 = vmatprep.subr.bf16.mxu0 0
    %341 = vmatpush1.bf16.msra.mxu0 0
    %342 = vmatprep.subr.bf16.mxu0 0
    %343 = vmatpush1.bf16.msra.mxu0 0
    %344 = vmatprep.subr.bf16.mxu0 0
    %345 = vmatpush1.bf16.msra.mxu0 0
    %346 = vmatprep.subr.bf16.mxu0 0
    %347 = vmatpush1.bf16.msra.mxu0 0
    %348 = vmatprep.subr.bf16.mxu0 0
    %349 = vmatpush1.bf16.msra.mxu0 0
    %350 = vmatprep.subr.bf16.mxu0 0
    %351 = vmatpush1.bf16.msra.mxu0 0
    %352 = vmatprep.subr.bf16.mxu0 0
    %353 = vmatpush1.bf16.msra.mxu0 0
    %354 = vmatprep.subr.bf16.mxu0 0
    %355 = vmatpush1.bf16.msra.mxu0 0
    %356 = vmatprep.subr.bf16.mxu0 0
    %357 = vmatpush1.bf16.msra.mxu0 0
    %358 = vmatprep.mubr.bf16.mxu0 0
    %359 = vmatmul.mubr.bf16.gmra.mrb[0].mxu0 %v296
    %v360 = vpop.f32.mrb[0].mxu0
    %v361 = vadd.f32 %v281, %v360
    %v362 = vpop.f32.mrb[0].mxu0
    %v363 = vpop.f32.mrb[0].mxu0
    %v364 = vadd.f32 %v281, %v363
    %v365 = vpop.f32.mrb[0].mxu0
    %366 = vmatprep.mubr.bf16.mxu0 0
    %367 = vmatmul.mubr.bf16.gmra.mrb[0].mxu0 %v299
    %v368 = vpop.f32.mrb[0].mxu0
    %v369 = vadd.f32 %v281, %v368
    %v370 = vpop.f32.mrb[0].mxu0
    %v371 = vpop.f32.mrb[0].mxu0
    %v372 = vadd.f32 %v281, %v371
    %v373 = vpop.f32.mrb[0].mxu0
    %374 = vmatprep.mubr.bf16.mxu0 0
    %375 = vmatmul.mubr.bf16.gmra.mrb[0].mxu0 %v302
    %v376 = vpop.f32.mrb[0].mxu0
    %v377 = vadd.f32 %v281, %v376
    %v378 = vpop.f32.mrb[0].mxu0
    %v379 = vpop.f32.mrb[0].mxu0
    %v380 = vadd.f32 %v281, %v379
    %v381 = vpop.f32.mrb[0].mxu0
    %382 = vmatprep.mubr.bf16.mxu0 0
    %383 = vmatmul.mubr.bf16.gmra.mrb[0].mxu0 %v305
    %v384 = vpop.f32.mrb[0].mxu0
    %v385 = vadd.f32 %v281, %v384
    %v386 = vpop.f32.mrb[0].mxu0
    %v387 = vpop.f32.mrb[0].mxu0
    %v388 = vadd.f32 %v281, %v387
    %v389 = vpop.f32.mrb[0].mxu0
    %390 = vmatprep.mubr.bf16.mxu0 0
    %391 = vmatmul.mubr.bf16.gmra.mrb[0].mxu0 %v308
    %v392 = vpop.f32.mrb[0].mxu0
    %v393 = vadd.f32 %v281, %v392
    %v394 = vpop.f32.mrb[0].mxu0
    %v395 = vpop.f32.mrb[0].mxu0
    %v396 = vadd.f32 %v281, %v395
    %v397 = vpop.f32.mrb[0].mxu0
    %398 = vmatprep.mubr.bf16.mxu0 0
    %399 = vmatmul.mubr.bf16.gmra.mrb[0].mxu0 %v311
    %v400 = vpop.f32.mrb[0].mxu0
    %v401 = vadd.f32 %v281, %v400
    %v402 = vpop.f32.mrb[0].mxu0
    %v403 = vpop.f32.mrb[0].mxu0
    %v404 = vadd.f32 %v281, %v403
    %v405 = vpop.f32.mrb[0].mxu0
    %406 = vmatprep.mubr.bf16.mxu0 0
    %407 = vmatmul.mubr.bf16.gmra.mrb[0].mxu0 %v314
    %v408 = vpop.f32.mrb[0].mxu0
    %v409 = vadd.f32 %v281, %v408
    %v410 = vpop.f32.mrb[0].mxu0
    %v411 = vpop.f32.mrb[0].mxu0
    %v412 = vadd.f32 %v281, %v411
    %v413 = vpop.f32.mrb[0].mxu0
    %414 = vmatprep.mubr.bf16.mxu0 0
    %415 = vmatmul.mubr.bf16.gmra.mrb[0].mxu0 %v317
    %v416 = vpop.f32.mrb[0].mxu0
    %v417 = vadd.f32 %v281, %v416
    %v418 = vpop.f32.mrb[0].mxu0
    %v419 = vpop.f32.mrb[0].mxu0
    %v420 = vadd.f32 %v281, %v419
    %v421 = vpop.f32.mrb[0].mxu0
    %422 = vdwg.mxu0
    %v423 = vmax.f32 %v361, 0.0
    %v424 = vmax.f32 %v364, 0.0
    %v425 = vmax.f32 %v369, 0.0
    %v426 = vmax.f32 %v372, 0.0
    %v427 = vmax.f32 %v377, 0.0
    %v428 = vmax.f32 %v380, 0.0
    %v429 = vmax.f32 %v385, 0.0
    %v430 = vmax.f32 %v388, 0.0
    %v431 = vmax.f32 %v393, 0.0
    %v432 = vmax.f32 %v396, 0.0
    %v433 = vmax.f32 %v401, 0.0
    %v434 = vmax.f32 %v404, 0.0
    %v435 = vmax.f32 %v409, 0.0
    %v436 = vmax.f32 %v412, 0.0
    %v437 = vmax.f32 %v417, 0.0
    %v438 = vmax.f32 %v420, 0.0
    %v439 = vmin.f32 %v423, 6.0
    %v440 = vmin.f32 %v424, 6.0
    %v441 = vmin.f32 %v425, 6.0
    %v442 = vmin.f32 %v426, 6.0
    %v443 = vmin.f32 %v427, 6.0
    %v444 = vmin.f32 %v428, 6.0
    %v445 = vmin.f32 %v429, 6.0
    %v446 = vmin.f32 %v430, 6.0
    %v447 = vmin.f32 %v431, 6.0
    %v448 = vmin.f32 %v432, 6.0
    %v449 = vmin.f32 %v433, 6.0
    %v450 = vmin.f32 %v434, 6.0
    %v451 = vmin.f32 %v435, 6.0
    %v452 = vmin.f32 %v436, 6.0
    %v453 = vmin.f32 %v437, 6.0
    %v454 = vmin.f32 %v438, 6.0
    %v455 = vld [vmem:[%s7] sm:$0xff]
    %v456 = vld [vmem:[%s7 + $0x8] sm:$0x1]
    %vm472 = vcmask 1040384
    %v473 = vrot.slane %v439, 7
    %v474 = vrot.slane %v440, 7
    %v475 = vsel %vm472, %v473, %v474
    %v476 = vrot.slane %v441, 7
    %v477 = vsel %vm472, %v474, %v476
    %v478 = vrot.slane %v442, 7
    %v479 = vsel %vm472, %v476, %v478
    %v480 = vrot.slane %v443, 7
    %v481 = vsel %vm472, %v478, %v480
    %v482 = vrot.slane %v444, 7
    %v483 = vsel %vm472, %v480, %v482
    %v484 = vrot.slane %v445, 7
    %v485 = vsel %vm472, %v482, %v484
    %v486 = vrot.slane %v446, 7
    %v487 = vsel %vm472, %v484, %v486
    %v488 = vrot.slane %v447, 7
    %v489 = vsel %vm472, %v486, %v488
    %v490 = vrot.slane %v448, 7
    %v491 = vsel %vm472, %v488, %v490
    %v492 = vrot.slane %v449, 7
    %v493 = vsel %vm472, %v490, %v492
    %v494 = vrot.slane %v450, 7
    %v495 = vsel %vm472, %v492, %v494
    %v496 = vrot.slane %v451, 7
    %v497 = vsel %vm472, %v494, %v496
    %v498 = vrot.slane %v452, 7
    %v499 = vsel %vm472, %v496, %v498
    %v500 = vrot.slane %v453, 7
    %v501 = vsel %vm472, %v498, %v500
    %v517 = vsel %vm472, 0.0, %v473
    %519 = vset.pattern.permute.xlu0 0
    %520 = vperm.xlu0 %519, %v88
    %v521 = vpop.permute.xlu0 %520
    %524 = vset.pattern.permute.xlu0 0
    %525 = vperm.xlu0 %524, %v89
    %v526 = vpop.permute.xlu0 %525
    %529 = vset.pattern.permute.xlu0 0
    %530 = vperm.xlu0 %529, %v90
    %v531 = vpop.permute.xlu0 %530
    %534 = vset.pattern.permute.xlu0 0
    %535 = vperm.xlu0 %534, %v91
    %v536 = vpop.permute.xlu0 %535
    %539 = vset.pattern.permute.xlu0 0
    %540 = vperm.xlu0 %539, %v92
    %v541 = vpop.permute.xlu0 %540
    %544 = vset.pattern.permute.xlu0 0
    %545 = vperm.xlu0 %544, %v93
    %v546 = vpop.permute.xlu0 %545
    %549 = vset.pattern.permute.xlu0 0
    %550 = vperm.xlu0 %549, %v94
    %v551 = vpop.permute.xlu0 %550
    %554 = vset.pattern.permute.xlu0 0
    %555 = vperm.xlu0 %554, %v95
    %v556 = vpop.permute.xlu0 %555
    %559 = vset.pattern.permute.xlu0 0
    %560 = vperm.xlu0 %559, %v96
    %v561 = vpop.permute.xlu0 %560
    %564 = vset.pattern.permute.xlu0 0
    %565 = vperm.xlu0 %564, %v97
    %v566 = vpop.permute.xlu0 %565
    %569 = vset.pattern.permute.xlu0 0
    %570 = vperm.xlu0 %569, %v98
    %v571 = vpop.permute.xlu0 %570
    %574 = vset.pattern.permute.xlu0 0
    %575 = vperm.xlu0 %574, %v99
    %v576 = vpop.permute.xlu0 %575
    %579 = vset.pattern.permute.xlu0 0
    %580 = vperm.xlu0 %579, %v100
    %v581 = vpop.permute.xlu0 %580
    %584 = vset.pattern.permute.xlu0 0
    %585 = vperm.xlu0 %584, %v101
    %v586 = vpop.permute.xlu0 %585
    %589 = vset.pattern.permute.xlu0 0
    %590 = vperm.xlu0 %589, %v102
    %v591 = vpop.permute.xlu0 %590
    %594 = vset.pattern.permute.xlu0 0
    %595 = vperm.xlu0 %594, %v103
    %v596 = vpop.permute.xlu0 %595
    %v598 = vmul.f32 %v521, 0.0
    %v599 = vmul.f32 %v517, %v526
    %v600 = vmul.f32 %v475, %v531
    %v601 = vmul.f32 %v477, %v536
    %v602 = vmul.f32 %v479, %v541
    %v603 = vmul.f32 %v481, %v546
    %v604 = vmul.f32 %v483, %v551
    %v605 = vmul.f32 %v485, %v556
    %v606 = vmul.f32 %v487, %v561
    %v607 = vmul.f32 %v489, %v566
    %v608 = vmul.f32 %v491, %v571
    %v609 = vmul.f32 %v493, %v576
    %v610 = vmul.f32 %v495, %v581
    %v611 = vmul.f32 %v497, %v586
    %v612 = vmul.f32 %v499, %v591
    %v613 = vmul.f32 %v501, %v596
    %v614 = vlaneseq
    %v615 = vshrl.u32 %v614, 7
    %v616 = vsub.s32 0, %v615
    %v617 = vrot.slane %v455, %v616
    %v618 = vmul.f32 %v598, %v617
    %v619 = vmul.f32 %v599, %v617
    %v620 = vmul.f32 %v600, %v617
    %v621 = vmul.f32 %v601, %v617
    %v622 = vmul.f32 %v602, %v617
    %v623 = vmul.f32 %v603, %v617
    %v624 = vmul.f32 %v604, %v617
    %v625 = vmul.f32 %v605, %v617
    %v626 = vmul.f32 %v606, %v617
    %v627 = vmul.f32 %v607, %v617
    %v628 = vmul.f32 %v608, %v617
    %v629 = vmul.f32 %v609, %v617
    %v630 = vmul.f32 %v610, %v617
    %v631 = vmul.f32 %v611, %v617
    %v632 = vmul.f32 %v612, %v617
    %v633 = vmul.f32 %v613, %v617
    %635 = vset.pattern.permute.xlu0 0
    %636 = vperm.xlu0 %635, %v104
    %v637 = vpop.permute.xlu0 %636
    %640 = vset.pattern.permute.xlu0 0
    %641 = vperm.xlu0 %640, %v105
    %v642 = vpop.permute.xlu0 %641
    %645 = vset.pattern.permute.xlu0 0
    %646 = vperm.xlu0 %645, %v106
    %v647 = vpop.permute.xlu0 %646
    %650 = vset.pattern.permute.xlu0 0
    %651 = vperm.xlu0 %650, %v107
    %v652 = vpop.permute.xlu0 %651
    %655 = vset.pattern.permute.xlu0 0
    %656 = vperm.xlu0 %655, %v108
    %v657 = vpop.permute.xlu0 %656
    %660 = vset.pattern.permute.xlu0 0
    %661 = vperm.xlu0 %660, %v109
    %v662 = vpop.permute.xlu0 %661
    %665 = vset.pattern.permute.xlu0 0
    %666 = vperm.xlu0 %665, %v110
    %v667 = vpop.permute.xlu0 %666
    %670 = vset.pattern.permute.xlu0 0
    %671 = vperm.xlu0 %670, %v111
    %v672 = vpop.permute.xlu0 %671
    %675 = vset.pattern.permute.xlu0 0
    %676 = vperm.xlu0 %675, %v112
    %v677 = vpop.permute.xlu0 %676
    %680 = vset.pattern.permute.xlu0 0
    %681 = vperm.xlu0 %680, %v113
    %v682 = vpop.permute.xlu0 %681
    %685 = vset.pattern.permute.xlu0 0
    %686 = vperm.xlu0 %685, %v114
    %v687 = vpop.permute.xlu0 %686
    %690 = vset.pattern.permute.xlu0 0
    %691 = vperm.xlu0 %690, %v115
    %v692 = vpop.permute.xlu0 %691
    %695 = vset.pattern.permute.xlu0 0
    %696 = vperm.xlu0 %695, %v116
    %v697 = vpop.permute.xlu0 %696
    %700 = vset.pattern.permute.xlu0 0
    %701 = vperm.xlu0 %700, %v117
    %v702 = vpop.permute.xlu0 %701
    %705 = vset.pattern.permute.xlu0 0
    %706 = vperm.xlu0 %705, %v118
    %v707 = vpop.permute.xlu0 %706
    %710 = vset.pattern.permute.xlu0 0
    %711 = vperm.xlu0 %710, %v119
    %v712 = vpop.permute.xlu0 %711
    %v714 = vmul.f32 %v637, 0.0
    %v715 = vmul.f32 %v439, %v642
    %v716 = vmul.f32 %v440, %v647
    %v717 = vmul.f32 %v441, %v652
    %v718 = vmul.f32 %v442, %v657
    %v719 = vmul.f32 %v443, %v662
    %v720 = vmul.f32 %v444, %v667
    %v721 = vmul.f32 %v445, %v672
    %v722 = vmul.f32 %v446, %v677
    %v723 = vmul.f32 %v447, %v682
    %v724 = vmul.f32 %v448, %v687
    %v725 = vmul.f32 %v449, %v692
    %v726 = vmul.f32 %v450, %v697
    %v727 = vmul.f32 %v451, %v702
    %v728 = vmul.f32 %v452, %v707
    %v729 = vmul.f32 %v453, %v712
    %v730 = vlaneseq
    %v731 = vshrl.u32 %v730, 7
    %v732 = vsub.s32 1, %v731
    %v733 = vrot.slane %v455, %v732
    %v734 = vmul.f32 %v714, %v733
    %v735 = vmul.f32 %v715, %v733
    %v736 = vmul.f32 %v716, %v733
    %v737 = vmul.f32 %v717, %v733
    %v738 = vmul.f32 %v718, %v733
    %v739 = vmul.f32 %v719, %v733
    %v740 = vmul.f32 %v720, %v733
    %v741 = vmul.f32 %v721, %v733
    %v742 = vmul.f32 %v722, %v733
    %v743 = vmul.f32 %v723, %v733
    %v744 = vmul.f32 %v724, %v733
    %v745 = vmul.f32 %v725, %v733
    %v746 = vmul.f32 %v726, %v733
    %v747 = vmul.f32 %v727, %v733
    %v748 = vmul.f32 %v728, %v733
    %v749 = vmul.f32 %v729, %v733
    %v750 = vadd.f32 %v618, %v734
    %v751 = vadd.f32 %v619, %v735
    %v752 = vadd.f32 %v620, %v736
    %v753 = vadd.f32 %v621, %v737
    %v754 = vadd.f32 %v622, %v738
    %v755 = vadd.f32 %v623, %v739
    %v756 = vadd.f32 %v624, %v740
    %v757 = vadd.f32 %v625, %v741
    %v758 = vadd.f32 %v626, %v742
    %v759 = vadd.f32 %v627, %v743
    %v760 = vadd.f32 %v628, %v744
    %v761 = vadd.f32 %v629, %v745
    %v762 = vadd.f32 %v630, %v746
    %v763 = vadd.f32 %v631, %v747
    %v764 = vadd.f32 %v632, %v748
    %v765 = vadd.f32 %v633, %v749
    %vm767 = vcmask 1046528
    %v768 = vrot.slane %v439, 1
    %v769 = vrot.slane %v440, 1
    %v770 = vsel %vm767, %v768, %v769
    %v771 = vrot.slane %v441, 1
    %v772 = vsel %vm767, %v769, %v771
    %v773 = vrot.slane %v442, 1
    %v774 = vsel %vm767, %v771, %v773
    %v775 = vrot.slane %v443, 1
    %v776 = vsel %vm767, %v773, %v775
    %v777 = vrot.slane %v444, 1
    %v778 = vsel %vm767, %v775, %v777
    %v779 = vrot.slane %v445, 1
    %v780 = vsel %vm767, %v777, %v779
    %v781 = vrot.slane %v446, 1
    %v782 = vsel %vm767, %v779, %v781
    %v783 = vrot.slane %v447, 1
    %v784 = vsel %vm767, %v781, %v783
    %v785 = vrot.slane %v448, 1
    %v786 = vsel %vm767, %v783, %v785
    %v787 = vrot.slane %v449, 1
    %v788 = vsel %vm767, %v785, %v787
    %v789 = vrot.slane %v450, 1
    %v790 = vsel %vm767, %v787, %v789
    %v791 = vrot.slane %v451, 1
    %v792 = vsel %vm767, %v789, %v791
    %v793 = vrot.slane %v452, 1
    %v794 = vsel %vm767, %v791, %v793
    %v795 = vrot.slane %v453, 1
    %v796 = vsel %vm767, %v793, %v795
    %v797 = vrot.slane %v454, 1
    %v798 = vsel %vm767, %v795, %v797
    %v815 = vsel %vm767, 0.0, %v768
    %817 = vset.pattern.permute.xlu0 0
    %818 = vperm.xlu0 %817, %v120
    %v819 = vpop.permute.xlu0 %818
    %822 = vset.pattern.permute.xlu0 0
    %823 = vperm.xlu0 %822, %v121
    %v824 = vpop.permute.xlu0 %823
    %827 = vset.pattern.permute.xlu0 0
    %828 = vperm.xlu0 %827, %v122
    %v829 = vpop.permute.xlu0 %828
    %832 = vset.pattern.permute.xlu0 0
    %833 = vperm.xlu0 %832, %v123
    %v834 = vpop.permute.xlu0 %833
    %837 = vset.pattern.permute.xlu0 0
    %838 = vperm.xlu0 %837, %v124
    %v839 = vpop.permute.xlu0 %838
    %842 = vset.pattern.permute.xlu0 0
    %843 = vperm.xlu0 %842, %v125
    %v844 = vpop.permute.xlu0 %843
    %847 = vset.pattern.permute.xlu0 0
    %848 = vperm.xlu0 %847, %v126
    %v849 = vpop.permute.xlu0 %848
    %852 = vset.pattern.permute.xlu0 0
    %853 = vperm.xlu0 %852, %v127
    %v854 = vpop.permute.xlu0 %853
    %857 = vset.pattern.permute.xlu0 0
    %858 = vperm.xlu0 %857, %v128
    %v859 = vpop.permute.xlu0 %858
    %862 = vset.pattern.permute.xlu0 0
    %863 = vperm.xlu0 %862, %v129
    %v864 = vpop.permute.xlu0 %863
    %867 = vset.pattern.permute.xlu0 0
    %868 = vperm.xlu0 %867, %v130
    %v869 = vpop.permute.xlu0 %868
    %872 = vset.pattern.permute.xlu0 0
    %873 = vperm.xlu0 %872, %v131
    %v874 = vpop.permute.xlu0 %873
    %877 = vset.pattern.permute.xlu0 0
    %878 = vperm.xlu0 %877, %v132
    %v879 = vpop.permute.xlu0 %878
    %882 = vset.pattern.permute.xlu0 0
    %883 = vperm.xlu0 %882, %v133
    %v884 = vpop.permute.xlu0 %883
    %887 = vset.pattern.permute.xlu0 0
    %888 = vperm.xlu0 %887, %v134
    %v889 = vpop.permute.xlu0 %888
    %892 = vset.pattern.permute.xlu0 0
    %893 = vperm.xlu0 %892, %v135
    %v894 = vpop.permute.xlu0 %893
    %v896 = vmul.f32 %v815, %v819
    %v897 = vmul.f32 %v770, %v824
    %v898 = vmul.f32 %v772, %v829
    %v899 = vmul.f32 %v774, %v834
    %v900 = vmul.f32 %v776, %v839
    %v901 = vmul.f32 %v778, %v844
    %v902 = vmul.f32 %v780, %v849
    %v903 = vmul.f32 %v782, %v854
    %v904 = vmul.f32 %v784, %v859
    %v905 = vmul.f32 %v786, %v864
    %v906 = vmul.f32 %v788, %v869
    %v907 = vmul.f32 %v790, %v874
    %v908 = vmul.f32 %v792, %v879
    %v909 = vmul.f32 %v794, %v884
    %v910 = vmul.f32 %v796, %v889
    %v911 = vmul.f32 %v798, %v894
    %v912 = vlaneseq
    %v913 = vshrl.u32 %v912, 7
    %v914 = vsub.s32 2, %v913
    %v915 = vrot.slane %v455, %v914
    %v916 = vmul.f32 %v896, %v915
    %v917 = vmul.f32 %v897, %v915
    %v918 = vmul.f32 %v898, %v915
    %v919 = vmul.f32 %v899, %v915
    %v920 = vmul.f32 %v900, %v915
    %v921 = vmul.f32 %v901, %v915
    %v922 = vmul.f32 %v902, %v915
    %v923 = vmul.f32 %v903, %v915
    %v924 = vmul.f32 %v904, %v915
    %v925 = vmul.f32 %v905, %v915
    %v926 = vmul.f32 %v906, %v915
    %v927 = vmul.f32 %v907, %v915
    %v928 = vmul.f32 %v908, %v915
    %v929 = vmul.f32 %v909, %v915
    %v930 = vmul.f32 %v910, %v915
    %v931 = vmul.f32 %v911, %v915
    %v932 = vadd.f32 %v750, %v916
    %v933 = vadd.f32 %v751, %v917
    %v934 = vadd.f32 %v752, %v918
    %v935 = vadd.f32 %v753, %v919
    %v936 = vadd.f32 %v754, %v920
    %v937 = vadd.f32 %v755, %v921
    %v938 = vadd.f32 %v756, %v922
    %v939 = vadd.f32 %v757, %v923
    %v940 = vadd.f32 %v758, %v924
    %v941 = vadd.f32 %v759, %v925
    %v942 = vadd.f32 %v760, %v926
    %v943 = vadd.f32 %v761, %v927
    %v944 = vadd.f32 %v762, %v928
    %v945 = vadd.f32 %v763, %v929
    %v946 = vadd.f32 %v764, %v930
    %v947 = vadd.f32 %v765, %v931
    %v948 = vrot.slane %v454, 7
    %v949 = vsel %vm472, %v500, %v948
    %952 = vset.pattern.permute.xlu0 0
    %953 = vperm.xlu0 %952, %v136
    %v954 = vpop.permute.xlu0 %953
    %957 = vset.pattern.permute.xlu0 0
    %958 = vperm.xlu0 %957, %v137
    %v959 = vpop.permute.xlu0 %958
    %962 = vset.pattern.permute.xlu0 0
    %963 = vperm.xlu0 %962, %v138
    %v964 = vpop.permute.xlu0 %963
    %967 = vset.pattern.permute.xlu0 0
    %968 = vperm.xlu0 %967, %v139
    %v969 = vpop.permute.xlu0 %968
    %972 = vset.pattern.permute.xlu0 0
    %973 = vperm.xlu0 %972, %v140
    %v974 = vpop.permute.xlu0 %973
    %977 = vset.pattern.permute.xlu0 0
    %978 = vperm.xlu0 %977, %v141
    %v979 = vpop.permute.xlu0 %978
    %982 = vset.pattern.permute.xlu0 0
    %983 = vperm.xlu0 %982, %v142
    %v984 = vpop.permute.xlu0 %983
    %987 = vset.pattern.permute.xlu0 0
    %988 = vperm.xlu0 %987, %v143
    %v989 = vpop.permute.xlu0 %988
    %992 = vset.pattern.permute.xlu0 0
    %993 = vperm.xlu0 %992, %v144
    %v994 = vpop.permute.xlu0 %993
    %997 = vset.pattern.permute.xlu0 0
    %998 = vperm.xlu0 %997, %v145
    %v999 = vpop.permute.xlu0 %998
    %1002 = vset.pattern.permute.xlu0 0
    %1003 = vperm.xlu0 %1002, %v146
    %v1004 = vpop.permute.xlu0 %1003
    %1007 = vset.pattern.permute.xlu0 0
    %1008 = vperm.xlu0 %1007, %v147
    %v1009 = vpop.permute.xlu0 %1008
    %1012 = vset.pattern.permute.xlu0 0
    %1013 = vperm.xlu0 %1012, %v148
    %v1014 = vpop.permute.xlu0 %1013
    %1017 = vset.pattern.permute.xlu0 0
    %1018 = vperm.xlu0 %1017, %v149
    %v1019 = vpop.permute.xlu0 %1018
    %1022 = vset.pattern.permute.xlu0 0
    %1023 = vperm.xlu0 %1022, %v150
    %v1024 = vpop.permute.xlu0 %1023
    %1027 = vset.pattern.permute.xlu0 0
    %1028 = vperm.xlu0 %1027, %v151
    %v1029 = vpop.permute.xlu0 %1028
    %v1031 = vmul.f32 %v517, %v954
    %v1032 = vmul.f32 %v475, %v959
    %v1033 = vmul.f32 %v477, %v964
    %v1034 = vmul.f32 %v479, %v969
    %v1035 = vmul.f32 %v481, %v974
    %v1036 = vmul.f32 %v483, %v979
    %v1037 = vmul.f32 %v485, %v984
    %v1038 = vmul.f32 %v487, %v989
    %v1039 = vmul.f32 %v489, %v994
    %v1040 = vmul.f32 %v491, %v999
    %v1041 = vmul.f32 %v493, %v1004
    %v1042 = vmul.f32 %v495, %v1009
    %v1043 = vmul.f32 %v497, %v1014
    %v1044 = vmul.f32 %v499, %v1019
    %v1045 = vmul.f32 %v501, %v1024
    %v1046 = vmul.f32 %v949, %v1029
    %v1047 = vlaneseq
    %v1048 = vshrl.u32 %v1047, 7
    %v1049 = vsub.s32 3, %v1048
    %v1050 = vrot.slane %v455, %v1049
    %v1051 = vmul.f32 %v1031, %v1050
    %v1052 = vmul.f32 %v1032, %v1050
    %v1053 = vmul.f32 %v1033, %v1050
    %v1054 = vmul.f32 %v1034, %v1050
    %v1055 = vmul.f32 %v1035, %v1050
    %v1056 = vmul.f32 %v1036, %v1050
    %v1057 = vmul.f32 %v1037, %v1050
    %v1058 = vmul.f32 %v1038, %v1050
    %v1059 = vmul.f32 %v1039, %v1050
    %v1060 = vmul.f32 %v1040, %v1050
    %v1061 = vmul.f32 %v1041, %v1050
    %v1062 = vmul.f32 %v1042, %v1050
    %v1063 = vmul.f32 %v1043, %v1050
    %v1064 = vmul.f32 %v1044, %v1050
    %v1065 = vmul.f32 %v1045, %v1050
    %v1066 = vmul.f32 %v1046, %v1050
    %v1067 = vadd.f32 %v932, %v1051
    %v1068 = vadd.f32 %v933, %v1052
    %v1069 = vadd.f32 %v934, %v1053
    %v1070 = vadd.f32 %v935, %v1054
    %v1071 = vadd.f32 %v936, %v1055
    %v1072 = vadd.f32 %v937, %v1056
    %v1073 = vadd.f32 %v938, %v1057
    %v1074 = vadd.f32 %v939, %v1058
    %v1075 = vadd.f32 %v940, %v1059
    %v1076 = vadd.f32 %v941, %v1060
    %v1077 = vadd.f32 %v942, %v1061
    %v1078 = vadd.f32 %v943, %v1062
    %v1079 = vadd.f32 %v944, %v1063
    %v1080 = vadd.f32 %v945, %v1064
    %v1081 = vadd.f32 %v946, %v1065
    %v1082 = vadd.f32 %v947, %v1066
    %v1083 = vlaneseq
    %v1084 = vshrl.u32 %v1083, 7
    %v1085 = vsub.s32 4, %v1084
    %v1086 = vrot.slane %v455, %v1085
    %v1087 = vmul.f32 %v439, %v1086
    %v1088 = vmul.f32 %v440, %v1086
    %v1089 = vmul.f32 %v441, %v1086
    %v1090 = vmul.f32 %v442, %v1086
    %v1091 = vmul.f32 %v443, %v1086
    %v1092 = vmul.f32 %v444, %v1086
    %v1093 = vmul.f32 %v445, %v1086
    %v1094 = vmul.f32 %v446, %v1086
    %v1095 = vmul.f32 %v447, %v1086
    %v1096 = vmul.f32 %v448, %v1086
    %v1097 = vmul.f32 %v449, %v1086
    %v1098 = vmul.f32 %v450, %v1086
    %v1099 = vmul.f32 %v451, %v1086
    %v1100 = vmul.f32 %v452, %v1086
    %v1101 = vmul.f32 %v453, %v1086
    %v1102 = vmul.f32 %v454, %v1086
    %v1103 = vadd.f32 %v1067, %v1087
    %v1104 = vadd.f32 %v1068, %v1088
    %v1105 = vadd.f32 %v1069, %v1089
    %v1106 = vadd.f32 %v1070, %v1090
    %v1107 = vadd.f32 %v1071, %v1091
    %v1108 = vadd.f32 %v1072, %v1092
    %v1109 = vadd.f32 %v1073, %v1093
    %v1110 = vadd.f32 %v1074, %v1094
    %v1111 = vadd.f32 %v1075, %v1095
    %v1112 = vadd.f32 %v1076, %v1096
    %v1113 = vadd.f32 %v1077, %v1097
    %v1114 = vadd.f32 %v1078, %v1098
    %v1115 = vadd.f32 %v1079, %v1099
    %v1116 = vadd.f32 %v1080, %v1100
    %v1117 = vadd.f32 %v1081, %v1101
    %v1118 = vadd.f32 %v1082, %v1102
    %v1120 = vsel %vm767, %v797, 0.0
    %1122 = vset.pattern.permute.xlu0 0
    %1123 = vperm.xlu0 %1122, %v152
    %v1124 = vpop.permute.xlu0 %1123
    %1127 = vset.pattern.permute.xlu0 0
    %1128 = vperm.xlu0 %1127, %v153
    %v1129 = vpop.permute.xlu0 %1128
    %1132 = vset.pattern.permute.xlu0 0
    %1133 = vperm.xlu0 %1132, %v154
    %v1134 = vpop.permute.xlu0 %1133
    %1137 = vset.pattern.permute.xlu0 0
    %1138 = vperm.xlu0 %1137, %v155
    %v1139 = vpop.permute.xlu0 %1138
    %1142 = vset.pattern.permute.xlu0 0
    %1143 = vperm.xlu0 %1142, %v156
    %v1144 = vpop.permute.xlu0 %1143
    %1147 = vset.pattern.permute.xlu0 0
    %1148 = vperm.xlu0 %1147, %v157
    %v1149 = vpop.permute.xlu0 %1148
    %1152 = vset.pattern.permute.xlu0 0
    %1153 = vperm.xlu0 %1152, %v158
    %v1154 = vpop.permute.xlu0 %1153
    %1157 = vset.pattern.permute.xlu0 0
    %1158 = vperm.xlu0 %1157, %v159
    %v1159 = vpop.permute.xlu0 %1158
    %1162 = vset.pattern.permute.xlu0 0
    %1163 = vperm.xlu0 %1162, %v160
    %v1164 = vpop.permute.xlu0 %1163
    %1167 = vset.pattern.permute.xlu0 0
    %1168 = vperm.xlu0 %1167, %v161
    %v1169 = vpop.permute.xlu0 %1168
    %1172 = vset.pattern.permute.xlu0 0
    %1173 = vperm.xlu0 %1172, %v162
    %v1174 = vpop.permute.xlu0 %1173
    %1177 = vset.pattern.permute.xlu0 0
    %1178 = vperm.xlu0 %1177, %v163
    %v1179 = vpop.permute.xlu0 %1178
    %1182 = vset.pattern.permute.xlu0 0
    %1183 = vperm.xlu0 %1182, %v164
    %v1184 = vpop.permute.xlu0 %1183
    %1187 = vset.pattern.permute.xlu0 0
    %1188 = vperm.xlu0 %1187, %v165
    %v1189 = vpop.permute.xlu0 %1188
    %1192 = vset.pattern.permute.xlu0 0
    %1193 = vperm.xlu0 %1192, %v166
    %v1194 = vpop.permute.xlu0 %1193
    %1197 = vset.pattern.permute.xlu0 0
    %1198 = vperm.xlu0 %1197, %v167
    %v1199 = vpop.permute.xlu0 %1198
    %v1201 = vmul.f32 %v770, %v1124
    %v1202 = vmul.f32 %v772, %v1129
    %v1203 = vmul.f32 %v774, %v1134
    %v1204 = vmul.f32 %v776, %v1139
    %v1205 = vmul.f32 %v778, %v1144
    %v1206 = vmul.f32 %v780, %v1149
    %v1207 = vmul.f32 %v782, %v1154
    %v1208 = vmul.f32 %v784, %v1159
    %v1209 = vmul.f32 %v786, %v1164
    %v1210 = vmul.f32 %v788, %v1169
    %v1211 = vmul.f32 %v790, %v1174
    %v1212 = vmul.f32 %v792, %v1179
    %v1213 = vmul.f32 %v794, %v1184
    %v1214 = vmul.f32 %v796, %v1189
    %v1215 = vmul.f32 %v798, %v1194
    %v1216 = vmul.f32 %v1120, %v1199
    %v1217 = vlaneseq
    %v1218 = vshrl.u32 %v1217, 7
    %v1219 = vsub.s32 5, %v1218
    %v1220 = vrot.slane %v455, %v1219
    %v1221 = vmul.f32 %v1201, %v1220
    %v1222 = vmul.f32 %v1202, %v1220
    %v1223 = vmul.f32 %v1203, %v1220
    %v1224 = vmul.f32 %v1204, %v1220
    %v1225 = vmul.f32 %v1205, %v1220
    %v1226 = vmul.f32 %v1206, %v1220
    %v1227 = vmul.f32 %v1207, %v1220
    %v1228 = vmul.f32 %v1208, %v1220
    %v1229 = vmul.f32 %v1209, %v1220
    %v1230 = vmul.f32 %v1210, %v1220
    %v1231 = vmul.f32 %v1211, %v1220
    %v1232 = vmul.f32 %v1212, %v1220
    %v1233 = vmul.f32 %v1213, %v1220
    %v1234 = vmul.f32 %v1214, %v1220
    %v1235 = vmul.f32 %v1215, %v1220
    %v1236 = vmul.f32 %v1216, %v1220
    %v1237 = vadd.f32 %v1103, %v1221
    %v1238 = vadd.f32 %v1104, %v1222
    %v1239 = vadd.f32 %v1105, %v1223
    %v1240 = vadd.f32 %v1106, %v1224
    %v1241 = vadd.f32 %v1107, %v1225
    %v1242 = vadd.f32 %v1108, %v1226
    %v1243 = vadd.f32 %v1109, %v1227
    %v1244 = vadd.f32 %v1110, %v1228
    %v1245 = vadd.f32 %v1111, %v1229
    %v1246 = vadd.f32 %v1112, %v1230
    %v1247 = vadd.f32 %v1113, %v1231
    %v1248 = vadd.f32 %v1114, %v1232
    %v1249 = vadd.f32 %v1115, %v1233
    %v1250 = vadd.f32 %v1116, %v1234
    %v1251 = vadd.f32 %v1117, %v1235
    %v1252 = vadd.f32 %v1118, %v1236
    %v1254 = vsel %vm472, %v948, 0.0
    %1256 = vset.pattern.permute.xlu0 0
    %1257 = vperm.xlu0 %1256, %v168
    %v1258 = vpop.permute.xlu0 %1257
    %1261 = vset.pattern.permute.xlu0 0
    %1262 = vperm.xlu0 %1261, %v169
    %v1263 = vpop.permute.xlu0 %1262
    %1266 = vset.pattern.permute.xlu0 0
    %1267 = vperm.xlu0 %1266, %v170
    %v1268 = vpop.permute.xlu0 %1267
    %1271 = vset.pattern.permute.xlu0 0
    %1272 = vperm.xlu0 %1271, %v171
    %v1273 = vpop.permute.xlu0 %1272
    %1276 = vset.pattern.permute.xlu0 0
    %1277 = vperm.xlu0 %1276, %v172
    %v1278 = vpop.permute.xlu0 %1277
    %1281 = vset.pattern.permute.xlu0 0
    %1282 = vperm.xlu0 %1281, %v173
    %v1283 = vpop.permute.xlu0 %1282
    %1286 = vset.pattern.permute.xlu0 0
    %1287 = vperm.xlu0 %1286, %v174
    %v1288 = vpop.permute.xlu0 %1287
    %1291 = vset.pattern.permute.xlu0 0
    %1292 = vperm.xlu0 %1291, %v175
    %v1293 = vpop.permute.xlu0 %1292
    %1296 = vset.pattern.permute.xlu0 0
    %1297 = vperm.xlu0 %1296, %v176
    %v1298 = vpop.permute.xlu0 %1297
    %1301 = vset.pattern.permute.xlu0 0
    %1302 = vperm.xlu0 %1301, %v177
    %v1303 = vpop.permute.xlu0 %1302
    %1306 = vset.pattern.permute.xlu0 0
    %1307 = vperm.xlu0 %1306, %v178
    %v1308 = vpop.permute.xlu0 %1307
    %1311 = vset.pattern.permute.xlu0 0
    %1312 = vperm.xlu0 %1311, %v179
    %v1313 = vpop.permute.xlu0 %1312
    %1316 = vset.pattern.permute.xlu0 0
    %1317 = vperm.xlu0 %1316, %v180
    %v1318 = vpop.permute.xlu0 %1317
    %1321 = vset.pattern.permute.xlu0 0
    %1322 = vperm.xlu0 %1321, %v181
    %v1323 = vpop.permute.xlu0 %1322
    %1326 = vset.pattern.permute.xlu0 0
    %1327 = vperm.xlu0 %1326, %v182
    %v1328 = vpop.permute.xlu0 %1327
    %1331 = vset.pattern.permute.xlu0 0
    %1332 = vperm.xlu0 %1331, %v183
    %v1333 = vpop.permute.xlu0 %1332
    %v1335 = vmul.f32 %v475, %v1258
    %v1336 = vmul.f32 %v477, %v1263
    %v1337 = vmul.f32 %v479, %v1268
    %v1338 = vmul.f32 %v481, %v1273
    %v1339 = vmul.f32 %v483, %v1278
    %v1340 = vmul.f32 %v485, %v1283
    %v1341 = vmul.f32 %v487, %v1288
    %v1342 = vmul.f32 %v489, %v1293
    %v1343 = vmul.f32 %v491, %v1298
    %v1344 = vmul.f32 %v493, %v1303
    %v1345 = vmul.f32 %v495, %v1308
    %v1346 = vmul.f32 %v497, %v1313
    %v1347 = vmul.f32 %v499, %v1318
    %v1348 = vmul.f32 %v501, %v1323
    %v1349 = vmul.f32 %v949, %v1328
    %v1350 = vmul.f32 %v1254, %v1333
    %v1351 = vlaneseq
    %v1352 = vshrl.u32 %v1351, 7
    %v1353 = vsub.s32 6, %v1352
    %v1354 = vrot.slane %v455, %v1353
    %v1355 = vmul.f32 %v1335, %v1354
    %v1356 = vmul.f32 %v1336, %v1354
    %v1357 = vmul.f32 %v1337, %v1354
    %v1358 = vmul.f32 %v1338, %v1354
    %v1359 = vmul.f32 %v1339, %v1354
    %v1360 = vmul.f32 %v1340, %v1354
    %v1361 = vmul.f32 %v1341, %v1354
    %v1362 = vmul.f32 %v1342, %v1354
    %v1363 = vmul.f32 %v1343, %v1354
    %v1364 = vmul.f32 %v1344, %v1354
    %v1365 = vmul.f32 %v1345, %v1354
    %v1366 = vmul.f32 %v1346, %v1354
    %v1367 = vmul.f32 %v1347, %v1354
    %v1368 = vmul.f32 %v1348, %v1354
    %v1369 = vmul.f32 %v1349, %v1354
    %v1370 = vmul.f32 %v1350, %v1354
    %v1371 = vadd.f32 %v1237, %v1355
    %v1372 = vadd.f32 %v1238, %v1356
    %v1373 = vadd.f32 %v1239, %v1357
    %v1374 = vadd.f32 %v1240, %v1358
    %v1375 = vadd.f32 %v1241, %v1359
    %v1376 = vadd.f32 %v1242, %v1360
    %v1377 = vadd.f32 %v1243, %v1361
    %v1378 = vadd.f32 %v1244, %v1362
    %v1379 = vadd.f32 %v1245, %v1363
    %v1380 = vadd.f32 %v1246, %v1364
    %v1381 = vadd.f32 %v1247, %v1365
    %v1382 = vadd.f32 %v1248, %v1366
    %v1383 = vadd.f32 %v1249, %v1367
    %v1384 = vadd.f32 %v1250, %v1368
    %v1385 = vadd.f32 %v1251, %v1369
    %v1386 = vadd.f32 %v1252, %v1370
    %1388 = vset.pattern.permute.xlu0 0
    %1389 = vperm.xlu0 %1388, %v184
    %v1390 = vpop.permute.xlu0 %1389
    %1393 = vset.pattern.permute.xlu0 0
    %1394 = vperm.xlu0 %1393, %v185
    %v1395 = vpop.permute.xlu0 %1394
    %1398 = vset.pattern.permute.xlu0 0
    %1399 = vperm.xlu0 %1398, %v186
    %v1400 = vpop.permute.xlu0 %1399
    %1403 = vset.pattern.permute.xlu0 0
    %1404 = vperm.xlu0 %1403, %v187
    %v1405 = vpop.permute.xlu0 %1404
    %1408 = vset.pattern.permute.xlu0 0
    %1409 = vperm.xlu0 %1408, %v188
    %v1410 = vpop.permute.xlu0 %1409
    %1413 = vset.pattern.permute.xlu0 0
    %1414 = vperm.xlu0 %1413, %v189
    %v1415 = vpop.permute.xlu0 %1414
    %1418 = vset.pattern.permute.xlu0 0
    %1419 = vperm.xlu0 %1418, %v190
    %v1420 = vpop.permute.xlu0 %1419
    %1423 = vset.pattern.permute.xlu0 0
    %1424 = vperm.xlu0 %1423, %v191
    %v1425 = vpop.permute.xlu0 %1424
    %1428 = vset.pattern.permute.xlu0 0
    %1429 = vperm.xlu0 %1428, %v192
    %v1430 = vpop.permute.xlu0 %1429
    %1433 = vset.pattern.permute.xlu0 0
    %1434 = vperm.xlu0 %1433, %v193
    %v1435 = vpop.permute.xlu0 %1434
    %1438 = vset.pattern.permute.xlu0 0
    %1439 = vperm.xlu0 %1438, %v194
    %v1440 = vpop.permute.xlu0 %1439
    %1443 = vset.pattern.permute.xlu0 0
    %1444 = vperm.xlu0 %1443, %v195
    %v1445 = vpop.permute.xlu0 %1444
    %1448 = vset.pattern.permute.xlu0 0
    %1449 = vperm.xlu0 %1448, %v196
    %v1450 = vpop.permute.xlu0 %1449
    %1453 = vset.pattern.permute.xlu0 0
    %1454 = vperm.xlu0 %1453, %v197
    %v1455 = vpop.permute.xlu0 %1454
    %1458 = vset.pattern.permute.xlu0 0
    %1459 = vperm.xlu0 %1458, %v198
    %v1460 = vpop.permute.xlu0 %1459
    %1463 = vset.pattern.permute.xlu0 0
    %1464 = vperm.xlu0 %1463, %v199
    %v1465 = vpop.permute.xlu0 %1464
    %v1467 = vmul.f32 %v440, %v1390
    %v1468 = vmul.f32 %v441, %v1395
    %v1469 = vmul.f32 %v442, %v1400
    %v1470 = vmul.f32 %v443, %v1405
    %v1471 = vmul.f32 %v444, %v1410
    %v1472 = vmul.f32 %v445, %v1415
    %v1473 = vmul.f32 %v446, %v1420
    %v1474 = vmul.f32 %v447, %v1425
    %v1475 = vmul.f32 %v448, %v1430
    %v1476 = vmul.f32 %v449, %v1435
    %v1477 = vmul.f32 %v450, %v1440
    %v1478 = vmul.f32 %v451, %v1445
    %v1479 = vmul.f32 %v452, %v1450
    %v1480 = vmul.f32 %v453, %v1455
    %v1481 = vmul.f32 %v454, %v1460
    %v1482 = vmul.f32 %v1465, 0.0
    %v1483 = vlaneseq
    %v1484 = vshrl.u32 %v1483, 7
    %v1485 = vsub.s32 7, %v1484
    %v1486 = vrot.slane %v455, %v1485
    %v1487 = vmul.f32 %v1467, %v1486
    %v1488 = vmul.f32 %v1468, %v1486
    %v1489 = vmul.f32 %v1469, %v1486
    %v1490 = vmul.f32 %v1470, %v1486
    %v1491 = vmul.f32 %v1471, %v1486
    %v1492 = vmul.f32 %v1472, %v1486
    %v1493 = vmul.f32 %v1473, %v1486
    %v1494 = vmul.f32 %v1474, %v1486
    %v1495 = vmul.f32 %v1475, %v1486
    %v1496 = vmul.f32 %v1476, %v1486
    %v1497 = vmul.f32 %v1477, %v1486
    %v1498 = vmul.f32 %v1478, %v1486
    %v1499 = vmul.f32 %v1479, %v1486
    %v1500 = vmul.f32 %v1480, %v1486
    %v1501 = vmul.f32 %v1481, %v1486
    %v1502 = vmul.f32 %v1482, %v1486
    %v1503 = vadd.f32 %v1371, %v1487
    %v1504 = vadd.f32 %v1372, %v1488
    %v1505 = vadd.f32 %v1373, %v1489
    %v1506 = vadd.f32 %v1374, %v1490
    %v1507 = vadd.f32 %v1375, %v1491
    %v1508 = vadd.f32 %v1376, %v1492
    %v1509 = vadd.f32 %v1377, %v1493
    %v1510 = vadd.f32 %v1378, %v1494
    %v1511 = vadd.f32 %v1379, %v1495
    %v1512 = vadd.f32 %v1380, %v1496
    %v1513 = vadd.f32 %v1381, %v1497
    %v1514 = vadd.f32 %v1382, %v1498
    %v1515 = vadd.f32 %v1383, %v1499
    %v1516 = vadd.f32 %v1384, %v1500
    %v1517 = vadd.f32 %v1385, %v1501
    %v1518 = vadd.f32 %v1386, %v1502
    %1520 = vset.pattern.permute.xlu0 0
    %1521 = vperm.xlu0 %1520, %v200
    %v1522 = vpop.permute.xlu0 %1521
    %1525 = vset.pattern.permute.xlu0 0
    %1526 = vperm.xlu0 %1525, %v201
    %v1527 = vpop.permute.xlu0 %1526
    %1530 = vset.pattern.permute.xlu0 0
    %1531 = vperm.xlu0 %1530, %v202
    %v1532 = vpop.permute.xlu0 %1531
    %1535 = vset.pattern.permute.xlu0 0
    %1536 = vperm.xlu0 %1535, %v203
    %v1537 = vpop.permute.xlu0 %1536
    %1540 = vset.pattern.permute.xlu0 0
    %1541 = vperm.xlu0 %1540, %v204
    %v1542 = vpop.permute.xlu0 %1541
    %1545 = vset.pattern.permute.xlu0 0
    %1546 = vperm.xlu0 %1545, %v205
    %v1547 = vpop.permute.xlu0 %1546
    %1550 = vset.pattern.permute.xlu0 0
    %1551 = vperm.xlu0 %1550, %v206
    %v1552 = vpop.permute.xlu0 %1551
    %1555 = vset.pattern.permute.xlu0 0
    %1556 = vperm.xlu0 %1555, %v207
    %v1557 = vpop.permute.xlu0 %1556
    %1560 = vset.pattern.permute.xlu0 0
    %1561 = vperm.xlu0 %1560, %v208
    %v1562 = vpop.permute.xlu0 %1561
    %1565 = vset.pattern.permute.xlu0 0
    %1566 = vperm.xlu0 %1565, %v209
    %v1567 = vpop.permute.xlu0 %1566
    %1570 = vset.pattern.permute.xlu0 0
    %1571 = vperm.xlu0 %1570, %v210
    %v1572 = vpop.permute.xlu0 %1571
    %1575 = vset.pattern.permute.xlu0 0
    %1576 = vperm.xlu0 %1575, %v211
    %v1577 = vpop.permute.xlu0 %1576
    %1580 = vset.pattern.permute.xlu0 0
    %1581 = vperm.xlu0 %1580, %v212
    %v1582 = vpop.permute.xlu0 %1581
    %1585 = vset.pattern.permute.xlu0 0
    %1586 = vperm.xlu0 %1585, %v213
    %v1587 = vpop.permute.xlu0 %1586
    %1590 = vset.pattern.permute.xlu0 0
    %1591 = vperm.xlu0 %1590, %v214
    %v1592 = vpop.permute.xlu0 %1591
    %1595 = vset.pattern.permute.xlu0 0
    %1596 = vperm.xlu0 %1595, %v215
    %v1597 = vpop.permute.xlu0 %1596
    %v1599 = vmul.f32 %v772, %v1522
    %v1600 = vmul.f32 %v774, %v1527
    %v1601 = vmul.f32 %v776, %v1532
    %v1602 = vmul.f32 %v778, %v1537
    %v1603 = vmul.f32 %v780, %v1542
    %v1604 = vmul.f32 %v782, %v1547
    %v1605 = vmul.f32 %v784, %v1552
    %v1606 = vmul.f32 %v786, %v1557
    %v1607 = vmul.f32 %v788, %v1562
    %v1608 = vmul.f32 %v790, %v1567
    %v1609 = vmul.f32 %v792, %v1572
    %v1610 = vmul.f32 %v794, %v1577
    %v1611 = vmul.f32 %v796, %v1582
    %v1612 = vmul.f32 %v798, %v1587
    %v1613 = vmul.f32 %v1120, %v1592
    %v1614 = vmul.f32 %v1597, 0.0
    %v1615 = vlaneseq
    %v1616 = vshrl.u32 %v1615, 7
    %v1617 = vsub.s32 0, %v1616
    %v1618 = vrot.slane %v456, %v1617
    %v1619 = vmul.f32 %v1599, %v1618
    %v1620 = vmul.f32 %v1600, %v1618
    %v1621 = vmul.f32 %v1601, %v1618
    %v1622 = vmul.f32 %v1602, %v1618
    %v1623 = vmul.f32 %v1603, %v1618
    %v1624 = vmul.f32 %v1604, %v1618
    %v1625 = vmul.f32 %v1605, %v1618
    %v1626 = vmul.f32 %v1606, %v1618
    %v1627 = vmul.f32 %v1607, %v1618
    %v1628 = vmul.f32 %v1608, %v1618
    %v1629 = vmul.f32 %v1609, %v1618
    %v1630 = vmul.f32 %v1610, %v1618
    %v1631 = vmul.f32 %v1611, %v1618
    %v1632 = vmul.f32 %v1612, %v1618
    %v1633 = vmul.f32 %v1613, %v1618
    %v1634 = vmul.f32 %v1614, %v1618
    %v1635 = vadd.f32 %v1503, %v1619
    %v1636 = vadd.f32 %v1504, %v1620
    %v1637 = vadd.f32 %v1505, %v1621
    %v1638 = vadd.f32 %v1506, %v1622
    %v1639 = vadd.f32 %v1507, %v1623
    %v1640 = vadd.f32 %v1508, %v1624
    %v1641 = vadd.f32 %v1509, %v1625
    %v1642 = vadd.f32 %v1510, %v1626
    %v1643 = vadd.f32 %v1511, %v1627
    %v1644 = vadd.f32 %v1512, %v1628
    %v1645 = vadd.f32 %v1513, %v1629
    %v1646 = vadd.f32 %v1514, %v1630
    %v1647 = vadd.f32 %v1515, %v1631
    %v1648 = vadd.f32 %v1516, %v1632
    %v1649 = vadd.f32 %v1517, %v1633
    %v1650 = vadd.f32 %v1518, %v1634
    %v1651 = vld [vmem:[%s8] sm:$0x1]
    %v1653 = vlaneseq
    %v1654 = vshrl.u32 %v1653, 7
    %v1655 = vsub.s32 0, %v1654
    %v1656 = vrot.slane %v1651, %v1655
    %v1658 = vadd.f32 %v1635, %v1656
    %v1659 = vadd.f32 %v1636, %v1656
    %v1660 = vadd.f32 %v1637, %v1656
    %v1661 = vadd.f32 %v1638, %v1656
    %v1662 = vadd.f32 %v1639, %v1656
    %v1663 = vadd.f32 %v1640, %v1656
    %v1664 = vadd.f32 %v1641, %v1656
    %v1665 = vadd.f32 %v1642, %v1656
    %v1666 = vadd.f32 %v1643, %v1656
    %v1667 = vadd.f32 %v1644, %v1656
    %v1668 = vadd.f32 %v1645, %v1656
    %v1669 = vadd.f32 %v1646, %v1656
    %v1670 = vadd.f32 %v1647, %v1656
    %v1671 = vadd.f32 %v1648, %v1656
    %v1672 = vadd.f32 %v1649, %v1656
    %v1673 = vadd.f32 %v1650, %v1656
    %v1674 = vmax.f32 %v1658, 0.0
    %v1675 = vmax.f32 %v1659, 0.0
    %v1676 = vmax.f32 %v1660, 0.0
    %v1677 = vmax.f32 %v1661, 0.0
    %v1678 = vmax.f32 %v1662, 0.0
    %v1679 = vmax.f32 %v1663, 0.0
    %v1680 = vmax.f32 %v1664, 0.0
    %v1681 = vmax.f32 %v1665, 0.0
    %v1682 = vmax.f32 %v1666, 0.0
    %v1683 = vmax.f32 %v1667, 0.0
    %v1684 = vmax.f32 %v1668, 0.0
    %v1685 = vmax.f32 %v1669, 0.0
    %v1686 = vmax.f32 %v1670, 0.0
    %v1687 = vmax.f32 %v1671, 0.0
    %v1688 = vmax.f32 %v1672, 0.0
    %v1689 = vmax.f32 %v1673, 0.0
    %v1690 = vmin.f32 %v1674, 6.0
    %v1691 = vmin.f32 %v1675, 6.0
    %v1692 = vmin.f32 %v1676, 6.0
    %v1693 = vmin.f32 %v1677, 6.0
    %v1694 = vmin.f32 %v1678, 6.0
    %v1695 = vmin.f32 %v1679, 6.0
    %v1696 = vmin.f32 %v1680, 6.0
    %v1697 = vmin.f32 %v1681, 6.0
    %v1698 = vmin.f32 %v1682, 6.0
    %v1699 = vmin.f32 %v1683, 6.0
    %v1700 = vmin.f32 %v1684, 6.0
    %v1701 = vmin.f32 %v1685, 6.0
    %v1702 = vmin.f32 %v1686, 6.0
    %v1703 = vmin.f32 %v1687, 6.0
    %v1704 = vmin.f32 %v1688, 6.0
    %v1705 = vmin.f32 %v1689, 6.0
    %v1706 = vpack.c.bf16 %v1691, %v1690
    %v1707 = vpack.c.bf16 %v1693, %v1692
    %v1708 = vpack.c.bf16 %v1695, %v1694
    %v1709 = vpack.c.bf16 %v1697, %v1696
    %v1710 = vpack.c.bf16 %v1699, %v1698
    %v1711 = vpack.c.bf16 %v1701, %v1700
    %v1712 = vpack.c.bf16 %v1703, %v1702
    %v1713 = vpack.c.bf16 %v1705, %v1704
    %v1714 = vld [vmem:[%s9] sm:$0xf]
    %v1715 = vld [vmem:[%s10] sm:$0x1]
    %v1717 = vlaneseq
    %v1718 = vshrl.u32 %v1717, 7
    %v1719 = vsub.s32 0, %v1718
    %v1720 = vrot.slane %v1715, %v1719
    %vm1722 = vcmask 64512
    %v1724 = vsel %vm1722, %v1706, 0
    %v1727 = vsel %vm1722, %v1707, 0
    %v1730 = vsel %vm1722, %v1708, 0
    %v1733 = vsel %vm1722, %v1709, 0
    %v1736 = vsel %vm1722, %v1710, 0
    %v1739 = vsel %vm1722, %v1711, 0
    %v1742 = vsel %vm1722, %v1712, 0
    %v1745 = vsel %vm1722, %v1713, 0
    %vm1747 = vcmask 1043456
    %v1749 = vsel %vm1747, %v1714, 0
    %1751 = vmatprep.subr.bf16.mxu0 0
    %1752 = vmatpush1.bf16.msra.mxu0 %v1749
    %1753 = vmatprep.subr.bf16.mxu0 0
    %1754 = vmatpush1.bf16.msra.mxu0 0
    %1755 = vmatprep.subr.bf16.mxu0 0
    %1756 = vmatpush1.bf16.msra.mxu0 0
    %1757 = vmatprep.subr.bf16.mxu0 0
    %1758 = vmatpush1.bf16.msra.mxu0 0
    %1759 = vmatprep.subr.bf16.mxu0 0
    %1760 = vmatpush1.bf16.msra.mxu0 0
    %1761 = vmatprep.subr.bf16.mxu0 0
    %1762 = vmatpush1.bf16.msra.mxu0 0
    %1763 = vmatprep.subr.bf16.mxu0 0
    %1764 = vmatpush1.bf16.msra.mxu0 0
    %1765 = vmatprep.subr.bf16.mxu0 0
    %1766 = vmatpush1.bf16.msra.mxu0 0
    %1767 = vmatprep.subr.bf16.mxu0 0
    %1768 = vmatpush1.bf16.msra.mxu0 0
    %1769 = vmatprep.subr.bf16.mxu0 0
    %1770 = vmatpush1.bf16.msra.mxu0 0
    %1771 = vmatprep.subr.bf16.mxu0 0
    %1772 = vmatpush1.bf16.msra.mxu0 0
    %1773 = vmatprep.subr.bf16.mxu0 0
    %1774 = vmatpush1.bf16.msra.mxu0 0
    %1775 = vmatprep.subr.bf16.mxu0 0
    %1776 = vmatpush1.bf16.msra.mxu0 0
    %1777 = vmatprep.subr.bf16.mxu0 0
    %1778 = vmatpush1.bf16.msra.mxu0 0
    %1779 = vmatprep.subr.bf16.mxu0 0
    %1780 = vmatpush1.bf16.msra.mxu0 0
    %1781 = vmatprep.subr.bf16.mxu0 0
    %1782 = vmatpush1.bf16.msra.mxu0 0
    %1783 = vmatprep.mubr.bf16.mxu0 0
    %1784 = vmatmul.mubr.bf16.gmra.mrb[0].mxu0 %v1724
    %v1785 = vpop.f32.mrb[0].mxu0
    %v1786 = vadd.f32 %v1720, %v1785
    %v1787 = vpop.f32.mrb[0].mxu0
    %v1788 = vpop.f32.mrb[0].mxu0
    %v1789 = vadd.f32 %v1720, %v1788
    %v1790 = vpop.f32.mrb[0].mxu0
    %1791 = vmatprep.mubr.bf16.mxu0 0
    %1792 = vmatmul.mubr.bf16.gmra.mrb[0].mxu0 %v1727
    %v1793 = vpop.f32.mrb[0].mxu0
    %v1794 = vadd.f32 %v1720, %v1793
    %v1795 = vpop.f32.mrb[0].mxu0
    %v1796 = vpop.f32.mrb[0].mxu0
    %v1797 = vadd.f32 %v1720, %v1796
    %v1798 = vpop.f32.mrb[0].mxu0
    %1799 = vmatprep.mubr.bf16.mxu0 0
    %1800 = vmatmul.mubr.bf16.gmra.mrb[0].mxu0 %v1730
    %v1801 = vpop.f32.mrb[0].mxu0
    %v1802 = vadd.f32 %v1720, %v1801
    %v1803 = vpop.f32.mrb[0].mxu0
    %v1804 = vpop.f32.mrb[0].mxu0
    %v1805 = vadd.f32 %v1720, %v1804
    %v1806 = vpop.f32.mrb[0].mxu0
    %1807 = vmatprep.mubr.bf16.mxu0 0
    %1808 = vmatmul.mubr.bf16.gmra.mrb[0].mxu0 %v1733
    %v1809 = vpop.f32.mrb[0].mxu0
    %v1810 = vadd.f32 %v1720, %v1809
    %v1811 = vpop.f32.mrb[0].mxu0
    %v1812 = vpop.f32.mrb[0].mxu0
    %v1813 = vadd.f32 %v1720, %v1812
    %v1814 = vpop.f32.mrb[0].mxu0
    %1815 = vmatprep.mubr.bf16.mxu0 0
    %1816 = vmatmul.mubr.bf16.gmra.mrb[0].mxu0 %v1736
    %v1817 = vpop.f32.mrb[0].mxu0
    %v1818 = vadd.f32 %v1720, %v1817
    %v1819 = vpop.f32.mrb[0].mxu0
    %v1820 = vpop.f32.mrb[0].mxu0
    %v1821 = vadd.f32 %v1720, %v1820
    %v1822 = vpop.f32.mrb[0].mxu0
    %1823 = vmatprep.mubr.bf16.mxu0 0
    %1824 = vmatmul.mubr.bf16.gmra.mrb[0].mxu0 %v1739
    %v1825 = vpop.f32.mrb[0].mxu0
    %v1826 = vadd.f32 %v1720, %v1825
    %v1827 = vpop.f32.mrb[0].mxu0
    %v1828 = vpop.f32.mrb[0].mxu0
    %v1829 = vadd.f32 %v1720, %v1828
    %v1830 = vpop.f32.mrb[0].mxu0
    %1831 = vmatprep.mubr.bf16.mxu0 0
    %1832 = vmatmul.mubr.bf16.gmra.mrb[0].mxu0 %v1742
    %v1833 = vpop.f32.mrb[0].mxu0
    %v1834 = vadd.f32 %v1720, %v1833
    %v1835 = vpop.f32.mrb[0].mxu0
    %v1836 = vpop.f32.mrb[0].mxu0
    %v1837 = vadd.f32 %v1720, %v1836
    %v1838 = vpop.f32.mrb[0].mxu0
    %1839 = vmatprep.mubr.bf16.mxu0 0
    %1840 = vmatmul.mubr.bf16.gmra.mrb[0].mxu0 %v1745
    %v1841 = vpop.f32.mrb[0].mxu0
    %v1842 = vadd.f32 %v1720, %v1841
    %v1843 = vpop.f32.mrb[0].mxu0
    %v1844 = vpop.f32.mrb[0].mxu0
    %v1845 = vadd.f32 %v1720, %v1844
    %v1846 = vpop.f32.mrb[0].mxu0
    %1847 = vdwg.mxu0
    %v1848 = vadd.f32 %v1786, %v439
    %v1849 = vadd.f32 %v1789, %v440
    %v1850 = vadd.f32 %v1794, %v441
    %v1851 = vadd.f32 %v1797, %v442
    %v1852 = vadd.f32 %v1802, %v443
    %v1853 = vadd.f32 %v1805, %v444
    %v1854 = vadd.f32 %v1810, %v445
    %v1855 = vadd.f32 %v1813, %v446
    %v1856 = vadd.f32 %v1818, %v447
    %v1857 = vadd.f32 %v1821, %v448
    %v1858 = vadd.f32 %v1826, %v449
    %v1859 = vadd.f32 %v1829, %v450
    %v1860 = vadd.f32 %v1834, %v451
    %v1861 = vadd.f32 %v1837, %v452
    %v1862 = vadd.f32 %v1842, %v453
    %v1863 = vadd.f32 %v1845, %v454
    %v1864 = vpack.c.bf16 %v1849, %v1848
    %v1865 = vpack.c.bf16 %v1851, %v1850
    %v1866 = vpack.c.bf16 %v1853, %v1852
    %v1867 = vpack.c.bf16 %v1855, %v1854
    %v1868 = vpack.c.bf16 %v1857, %v1856
    %v1869 = vpack.c.bf16 %v1859, %v1858
    %v1870 = vpack.c.bf16 %v1861, %v1860
    %v1871 = vpack.c.bf16 %v1863, %v1862
    %v1872 = vld [vmem:[%s11] sm:$0xf]
    %v1873 = vld [vmem:[%s12] sm:$0x1]
    %v1875 = vlaneseq
    %v1876 = vshrl.u32 %v1875, 7
    %v1877 = vsub.s32 0, %v1876
    %v1878 = vrot.slane %v1873, %v1877
    %v1881 = vsel %vm1722, %v1864, 0
    %v1884 = vsel %vm1722, %v1865, 0
    %v1887 = vsel %vm1722, %v1866, 0
    %v1890 = vsel %vm1722, %v1867, 0
    %v1893 = vsel %vm1722, %v1868, 0
    %v1896 = vsel %vm1722, %v1869, 0
    %v1899 = vsel %vm1722, %v1870, 0
    %v1902 = vsel %vm1722, %v1871, 0
    %v1905 = vsel %vm1747, %v1872, 0
    %1907 = vmatprep.subr.bf16.mxu0 0
    %1908 = vmatpush1.bf16.msra.mxu0 %v1905
    %1909 = vmatprep.subr.bf16.mxu0 0
    %1910 = vmatpush1.bf16.msra.mxu0 0
    %1911 = vmatprep.subr.bf16.mxu0 0
    %1912 = vmatpush1.bf16.msra.mxu0 0
    %1913 = vmatprep.subr.bf16.mxu0 0
    %1914 = vmatpush1.bf16.msra.mxu0 0
    %1915 = vmatprep.subr.bf16.mxu0 0
    %1916 = vmatpush1.bf16.msra.mxu0 0
    %1917 = vmatprep.subr.bf16.mxu0 0
    %1918 = vmatpush1.bf16.msra.mxu0 0
    %1919 = vmatprep.subr.bf16.mxu0 0
    %1920 = vmatpush1.bf16.msra.mxu0 0
    %1921 = vmatprep.subr.bf16.mxu0 0
    %1922 = vmatpush1.bf16.msra.mxu0 0
    %1923 = vmatprep.subr.bf16.mxu0 0
    %1924 = vmatpush1.bf16.msra.mxu0 0
    %1925 = vmatprep.subr.bf16.mxu0 0
    %1926 = vmatpush1.bf16.msra.mxu0 0
    %1927 = vmatprep.subr.bf16.mxu0 0
    %1928 = vmatpush1.bf16.msra.mxu0 0
    %1929 = vmatprep.subr.bf16.mxu0 0
    %1930 = vmatpush1.bf16.msra.mxu0 0
    %1931 = vmatprep.subr.bf16.mxu0 0
    %1932 = vmatpush1.bf16.msra.mxu0 0
    %1933 = vmatprep.subr.bf16.mxu0 0
    %1934 = vmatpush1.bf16.msra.mxu0 0
    %1935 = vmatprep.subr.bf16.mxu0 0
    %1936 = vmatpush1.bf16.msra.mxu0 0
    %1937 = vmatprep.subr.bf16.mxu0 0
    %1938 = vmatpush1.bf16.msra.mxu0 0
    %1939 = vmatprep.mubr.bf16.mxu0 0
    %1940 = vmatmul.mubr.bf16.gmra.mrb[0].mxu0 %v1881
    %v1941 = vpop.f32.mrb[0].mxu0
    %v1942 = vadd.f32 %v1878, %v1941
    %v1943 = vpop.f32.mrb[0].mxu0
    %v1944 = vpop.f32.mrb[0].mxu0
    %v1945 = vadd.f32 %v1878, %v1944
    %v1946 = vpop.f32.mrb[0].mxu0
    %1947 = vmatprep.mubr.bf16.mxu0 0
    %1948 = vmatmul.mubr.bf16.gmra.mrb[0].mxu0 %v1884
    %v1949 = vpop.f32.mrb[0].mxu0
    %v1950 = vadd.f32 %v1878, %v1949
    %v1951 = vpop.f32.mrb[0].mxu0
    %v1952 = vpop.f32.mrb[0].mxu0
    %v1953 = vadd.f32 %v1878, %v1952
    %v1954 = vpop.f32.mrb[0].mxu0
    %1955 = vmatprep.mubr.bf16.mxu0 0
    %1956 = vmatmul.mubr.bf16.gmra.mrb[0].mxu0 %v1887
    %v1957 = vpop.f32.mrb[0].mxu0
    %v1958 = vadd.f32 %v1878, %v1957
    %v1959 = vpop.f32.mrb[0].mxu0
    %v1960 = vpop.f32.mrb[0].mxu0
    %v1961 = vadd.f32 %v1878, %v1960
    %v1962 = vpop.f32.mrb[0].mxu0
    %1963 = vmatprep.mubr.bf16.mxu0 0
    %1964 = vmatmul.mubr.bf16.gmra.mrb[0].mxu0 %v1890
    %v1965 = vpop.f32.mrb[0].mxu0
    %v1966 = vadd.f32 %v1878, %v1965
    %v1967 = vpop.f32.mrb[0].mxu0
    %v1968 = vpop.f32.mrb[0].mxu0
    %v1969 = vadd.f32 %v1878, %v1968
    %v1970 = vpop.f32.mrb[0].mxu0
    %1971 = vmatprep.mubr.bf16.mxu0 0
    %1972 = vmatmul.mubr.bf16.gmra.mrb[0].mxu0 %v1893
    %v1973 = vpop.f32.mrb[0].mxu0
    %v1974 = vadd.f32 %v1878, %v1973
    %v1975 = vpop.f32.mrb[0].mxu0
    %v1976 = vpop.f32.mrb[0].mxu0
    %v1977 = vadd.f32 %v1878, %v1976
    %v1978 = vpop.f32.mrb[0].mxu0
    %1979 = vmatprep.mubr.bf16.mxu0 0
    %1980 = vmatmul.mubr.bf16.gmra.mrb[0].mxu0 %v1896
    %v1981 = vpop.f32.mrb[0].mxu0
    %v1982 = vadd.f32 %v1878, %v1981
    %v1983 = vpop.f32.mrb[0].mxu0
    %v1984 = vpop.f32.mrb[0].mxu0
    %v1985 = vadd.f32 %v1878, %v1984
    %v1986 = vpop.f32.mrb[0].mxu0
    %1987 = vmatprep.mubr.bf16.mxu0 0
    %1988 = vmatmul.mubr.bf16.gmra.mrb[0].mxu0 %v1899
    %v1989 = vpop.f32.mrb[0].mxu0
    %v1990 = vadd.f32 %v1878, %v1989
    %v1991 = vpop.f32.mrb[0].mxu0
    %v1992 = vpop.f32.mrb[0].mxu0
    %v1993 = vadd.f32 %v1878, %v1992
    %v1994 = vpop.f32.mrb[0].mxu0
    %1995 = vmatprep.mubr.bf16.mxu0 0
    %1996 = vmatmul.mubr.bf16.gmra.mrb[0].mxu0 %v1902
    %v1997 = vpop.f32.mrb[0].mxu0
    %v1998 = vadd.f32 %v1878, %v1997
    %v1999 = vpop.f32.mrb[0].mxu0
    %v2000 = vpop.f32.mrb[0].mxu0
    %v2001 = vadd.f32 %v1878, %v2000
    %v2002 = vpop.f32.mrb[0].mxu0
    %2003 = vdwg.mxu0
    %v2004 = vmax.f32 %v1942, 0.0
    %v2005 = vmax.f32 %v1945, 0.0
    %v2006 = vmax.f32 %v1950, 0.0
    %v2007 = vmax.f32 %v1953, 0.0
    %v2008 = vmax.f32 %v1958, 0.0
    %v2009 = vmax.f32 %v1961, 0.0
    %v2010 = vmax.f32 %v1966, 0.0
    %v2011 = vmax.f32 %v1969, 0.0
    %v2012 = vmax.f32 %v1974, 0.0
    %v2013 = vmax.f32 %v1977, 0.0
    %v2014 = vmax.f32 %v1982, 0.0
    %v2015 = vmax.f32 %v1985, 0.0
    %v2016 = vmax.f32 %v1990, 0.0
    %v2017 = vmax.f32 %v1993, 0.0
    %v2018 = vmax.f32 %v1998, 0.0
    %v2019 = vmax.f32 %v2001, 0.0
    %v2020 = vmin.f32 %v2004, 6.0
    %v2021 = vmin.f32 %v2005, 6.0
    %v2022 = vmin.f32 %v2006, 6.0
    %v2023 = vmin.f32 %v2007, 6.0
    %v2024 = vmin.f32 %v2008, 6.0
    %v2025 = vmin.f32 %v2009, 6.0
    %v2026 = vmin.f32 %v2010, 6.0
    %v2027 = vmin.f32 %v2011, 6.0
    %v2028 = vmin.f32 %v2012, 6.0
    %v2029 = vmin.f32 %v2013, 6.0
    %v2030 = vmin.f32 %v2014, 6.0
    %v2031 = vmin.f32 %v2015, 6.0
    %v2032 = vmin.f32 %v2016, 6.0
    %v2033 = vmin.f32 %v2017, 6.0
    %v2034 = vmin.f32 %v2018, 6.0
    %v2035 = vmin.f32 %v2019, 6.0
    %v2036 = vld [vmem:[%s13] sm:$0xff]
    %v2037 = vld [vmem:[%s13 + $0x8] sm:$0x1]
    %v2053 = vrot.slane %v2020, 7
    %v2054 = vrot.slane %v2021, 7
    %v2055 = vsel %vm472, %v2053, %v2054
    %v2056 = vrot.slane %v2022, 7
    %v2057 = vsel %vm472, %v2054, %v2056
    %v2058 = vrot.slane %v2023, 7
    %v2059 = vsel %vm472, %v2056, %v2058
    %v2060 = vrot.slane %v2024, 7
    %v2061 = vsel %vm472, %v2058, %v2060
    %v2062 = vrot.slane %v2025, 7
    %v2063 = vsel %vm472, %v2060, %v2062
    %v2064 = vrot.slane %v2026, 7
    %v2065 = vsel %vm472, %v2062, %v2064
    %v2066 = vrot.slane %v2027, 7
    %v2067 = vsel %vm472, %v2064, %v2066
    %v2068 = vrot.slane %v2028, 7
    %v2069 = vsel %vm472, %v2066, %v2068
    %v2070 = vrot.slane %v2029, 7
    %v2071 = vsel %vm472, %v2068, %v2070
    %v2072 = vrot.slane %v2030, 7
    %v2073 = vsel %vm472, %v2070, %v2072
    %v2074 = vrot.slane %v2031, 7
    %v2075 = vsel %vm472, %v2072, %v2074
    %v2076 = vrot.slane %v2032, 7
    %v2077 = vsel %vm472, %v2074, %v2076
    %v2078 = vrot.slane %v2033, 7
    %v2079 = vsel %vm472, %v2076, %v2078
    %v2080 = vrot.slane %v2034, 7
    %v2081 = vsel %vm472, %v2078, %v2080
    %v2097 = vsel %vm472, 0.0, %v2053
    %v2098 = vmul.f32 %v2097, %v526
    %v2099 = vmul.f32 %v2055, %v531
    %v2100 = vmul.f32 %v2057, %v536
    %v2101 = vmul.f32 %v2059, %v541
    %v2102 = vmul.f32 %v2061, %v546
    %v2103 = vmul.f32 %v2063, %v551
    %v2104 = vmul.f32 %v2065, %v556
    %v2105 = vmul.f32 %v2067, %v561
    %v2106 = vmul.f32 %v2069, %v566
    %v2107 = vmul.f32 %v2071, %v571
    %v2108 = vmul.f32 %v2073, %v576
    %v2109 = vmul.f32 %v2075, %v581
    %v2110 = vmul.f32 %v2077, %v586
    %v2111 = vmul.f32 %v2079, %v591
    %v2112 = vmul.f32 %v2081, %v596
    %v2113 = vlaneseq
    %v2114 = vshrl.u32 %v2113, 7
    %v2115 = vsub.s32 0, %v2114
    %v2116 = vrot.slane %v2036, %v2115
    %v2117 = vmul.f32 %v598, %v2116
    %v2118 = vmul.f32 %v2098, %v2116
    %v2119 = vmul.f32 %v2099, %v2116
    %v2120 = vmul.f32 %v2100, %v2116
    %v2121 = vmul.f32 %v2101, %v2116
    %v2122 = vmul.f32 %v2102, %v2116
    %v2123 = vmul.f32 %v2103, %v2116
    %v2124 = vmul.f32 %v2104, %v2116
    %v2125 = vmul.f32 %v2105, %v2116
    %v2126 = vmul.f32 %v2106, %v2116
    %v2127 = vmul.f32 %v2107, %v2116
    %v2128 = vmul.f32 %v2108, %v2116
    %v2129 = vmul.f32 %v2109, %v2116
    %v2130 = vmul.f32 %v2110, %v2116
    %v2131 = vmul.f32 %v2111, %v2116
    %v2132 = vmul.f32 %v2112, %v2116
    %v2133 = vmul.f32 %v2020, %v642
    %v2134 = vmul.f32 %v2021, %v647
    %v2135 = vmul.f32 %v2022, %v652
    %v2136 = vmul.f32 %v2023, %v657
    %v2137 = vmul.f32 %v2024, %v662
    %v2138 = vmul.f32 %v2025, %v667
    %v2139 = vmul.f32 %v2026, %v672
    %v2140 = vmul.f32 %v2027, %v677
    %v2141 = vmul.f32 %v2028, %v682
    %v2142 = vmul.f32 %v2029, %v687
    %v2143 = vmul.f32 %v2030, %v692
    %v2144 = vmul.f32 %v2031, %v697
    %v2145 = vmul.f32 %v2032, %v702
    %v2146 = vmul.f32 %v2033, %v707
    %v2147 = vmul.f32 %v2034, %v712
    %v2148 = vlaneseq
    %v2149 = vshrl.u32 %v2148, 7
    %v2150 = vsub.s32 1, %v2149
    %v2151 = vrot.slane %v2036, %v2150
    %v2152 = vmul.f32 %v714, %v2151
    %v2153 = vmul.f32 %v2133, %v2151
    %v2154 = vmul.f32 %v2134, %v2151
    %v2155 = vmul.f32 %v2135, %v2151
    %v2156 = vmul.f32 %v2136, %v2151
    %v2157 = vmul.f32 %v2137, %v2151
    %v2158 = vmul.f32 %v2138, %v2151
    %v2159 = vmul.f32 %v2139, %v2151
    %v2160 = vmul.f32 %v2140, %v2151
    %v2161 = vmul.f32 %v2141, %v2151
    %v2162 = vmul.f32 %v2142, %v2151
    %v2163 = vmul.f32 %v2143, %v2151
    %v2164 = vmul.f32 %v2144, %v2151
    %v2165 = vmul.f32 %v2145, %v2151
    %v2166 = vmul.f32 %v2146, %v2151
    %v2167 = vmul.f32 %v2147, %v2151
    %v2168 = vadd.f32 %v2117, %v2152
    %v2169 = vadd.f32 %v2118, %v2153
    %v2170 = vadd.f32 %v2119, %v2154
    %v2171 = vadd.f32 %v2120, %v2155
    %v2172 = vadd.f32 %v2121, %v2156
    %v2173 = vadd.f32 %v2122, %v2157
    %v2174 = vadd.f32 %v2123, %v2158
    %v2175 = vadd.f32 %v2124, %v2159
    %v2176 = vadd.f32 %v2125, %v2160
    %v2177 = vadd.f32 %v2126, %v2161
    %v2178 = vadd.f32 %v2127, %v2162
    %v2179 = vadd.f32 %v2128, %v2163
    %v2180 = vadd.f32 %v2129, %v2164
    %v2181 = vadd.f32 %v2130, %v2165
    %v2182 = vadd.f32 %v2131, %v2166
    %v2183 = vadd.f32 %v2132, %v2167
    %v2185 = vrot.slane %v2020, 1
    %v2186 = vrot.slane %v2021, 1
    %v2187 = vsel %vm767, %v2185, %v2186
    %v2188 = vrot.slane %v2022, 1
    %v2189 = vsel %vm767, %v2186, %v2188
    %v2190 = vrot.slane %v2023, 1
    %v2191 = vsel %vm767, %v2188, %v2190
    %v2192 = vrot.slane %v2024, 1
    %v2193 = vsel %vm767, %v2190, %v2192
    %v2194 = vrot.slane %v2025, 1
    %v2195 = vsel %vm767, %v2192, %v2194
    %v2196 = vrot.slane %v2026, 1
    %v2197 = vsel %vm767, %v2194, %v2196
    %v2198 = vrot.slane %v2027, 1
    %v2199 = vsel %vm767, %v2196, %v2198
    %v2200 = vrot.slane %v2028, 1
    %v2201 = vsel %vm767, %v2198, %v2200
    %v2202 = vrot.slane %v2029, 1
    %v2203 = vsel %vm767, %v2200, %v2202
    %v2204 = vrot.slane %v2030, 1
    %v2205 = vsel %vm767, %v2202, %v2204
    %v2206 = vrot.slane %v2031, 1
    %v2207 = vsel %vm767, %v2204, %v2206
    %v2208 = vrot.slane %v2032, 1
    %v2209 = vsel %vm767, %v2206, %v2208
    %v2210 = vrot.slane %v2033, 1
    %v2211 = vsel %vm767, %v2208, %v2210
    %v2212 = vrot.slane %v2034, 1
    %v2213 = vsel %vm767, %v2210, %v2212
    %v2214 = vrot.slane %v2035, 1
    %v2215 = vsel %vm767, %v2212, %v2214
    %v2232 = vsel %vm767, 0.0, %v2185
    %v2233 = vmul.f32 %v2232, %v819
    %v2234 = vmul.f32 %v2187, %v824
    %v2235 = vmul.f32 %v2189, %v829
    %v2236 = vmul.f32 %v2191, %v834
    %v2237 = vmul.f32 %v2193, %v839
    %v2238 = vmul.f32 %v2195, %v844
    %v2239 = vmul.f32 %v2197, %v849
    %v2240 = vmul.f32 %v2199, %v854
    %v2241 = vmul.f32 %v2201, %v859
    %v2242 = vmul.f32 %v2203, %v864
    %v2243 = vmul.f32 %v2205, %v869
    %v2244 = vmul.f32 %v2207, %v874
    %v2245 = vmul.f32 %v2209, %v879
    %v2246 = vmul.f32 %v2211, %v884
    %v2247 = vmul.f32 %v2213, %v889
    %v2248 = vmul.f32 %v2215, %v894
    %v2249 = vlaneseq
    %v2250 = vshrl.u32 %v2249, 7
    %v2251 = vsub.s32 2, %v2250
    %v2252 = vrot.slane %v2036, %v2251
    %v2253 = vmul.f32 %v2233, %v2252
    %v2254 = vmul.f32 %v2234, %v2252
    %v2255 = vmul.f32 %v2235, %v2252
    %v2256 = vmul.f32 %v2236, %v2252
    %v2257 = vmul.f32 %v2237, %v2252
    %v2258 = vmul.f32 %v2238, %v2252
    %v2259 = vmul.f32 %v2239, %v2252
    %v2260 = vmul.f32 %v2240, %v2252
    %v2261 = vmul.f32 %v2241, %v2252
    %v2262 = vmul.f32 %v2242, %v2252
    %v2263 = vmul.f32 %v2243, %v2252
    %v2264 = vmul.f32 %v2244, %v2252
    %v2265 = vmul.f32 %v2245, %v2252
    %v2266 = vmul.f32 %v2246, %v2252
    %v2267 = vmul.f32 %v2247, %v2252
    %v2268 = vmul.f32 %v2248, %v2252
    %v2269 = vadd.f32 %v2168, %v2253
    %v2270 = vadd.f32 %v2169, %v2254
    %v2271 = vadd.f32 %v2170, %v2255
    %v2272 = vadd.f32 %v2171, %v2256
    %v2273 = vadd.f32 %v2172, %v2257
    %v2274 = vadd.f32 %v2173, %v2258
    %v2275 = vadd.f32 %v2174, %v2259
    %v2276 = vadd.f32 %v2175, %v2260
    %v2277 = vadd.f32 %v2176, %v2261
    %v2278 = vadd.f32 %v2177, %v2262
    %v2279 = vadd.f32 %v2178, %v2263
    %v2280 = vadd.f32 %v2179, %v2264
    %v2281 = vadd.f32 %v2180, %v2265
    %v2282 = vadd.f32 %v2181, %v2266
    %v2283 = vadd.f32 %v2182, %v2267
    %v2284 = vadd.f32 %v2183, %v2268
    %v2285 = vrot.slane %v2035, 7
    %v2286 = vsel %vm472, %v2080, %v2285
    %v2288 = vmul.f32 %v2097, %v954
    %v2289 = vmul.f32 %v2055, %v959
    %v2290 = vmul.f32 %v2057, %v964
    %v2291 = vmul.f32 %v2059, %v969
    %v2292 = vmul.f32 %v2061, %v974
    %v2293 = vmul.f32 %v2063, %v979
    %v2294 = vmul.f32 %v2065, %v984
    %v2295 = vmul.f32 %v2067, %v989
    %v2296 = vmul.f32 %v2069, %v994
    %v2297 = vmul.f32 %v2071, %v999
    %v2298 = vmul.f32 %v2073, %v1004
    %v2299 = vmul.f32 %v2075, %v1009
    %v2300 = vmul.f32 %v2077, %v1014
    %v2301 = vmul.f32 %v2079, %v1019
    %v2302 = vmul.f32 %v2081, %v1024
    %v2303 = vmul.f32 %v2286, %v1029
    %v2304 = vlaneseq
    %v2305 = vshrl.u32 %v2304, 7
    %v2306 = vsub.s32 3, %v2305
    %v2307 = vrot.slane %v2036, %v2306
    %v2308 = vmul.f32 %v2288, %v2307
    %v2309 = vmul.f32 %v2289, %v2307
    %v2310 = vmul.f32 %v2290, %v2307
    %v2311 = vmul.f32 %v2291, %v2307
    %v2312 = vmul.f32 %v2292, %v2307
    %v2313 = vmul.f32 %v2293, %v2307
    %v2314 = vmul.f32 %v2294, %v2307
    %v2315 = vmul.f32 %v2295, %v2307
    %v2316 = vmul.f32 %v2296, %v2307
    %v2317 = vmul.f32 %v2297, %v2307
    %v2318 = vmul.f32 %v2298, %v2307
    %v2319 = vmul.f32 %v2299, %v2307
    %v2320 = vmul.f32 %v2300, %v2307
    %v2321 = vmul.f32 %v2301, %v2307
    %v2322 = vmul.f32 %v2302, %v2307
    %v2323 = vmul.f32 %v2303, %v2307
    %v2324 = vadd.f32 %v2269, %v2308
    %v2325 = vadd.f32 %v2270, %v2309
    %v2326 = vadd.f32 %v2271, %v2310
    %v2327 = vadd.f32 %v2272, %v2311
    %v2328 = vadd.f32 %v2273, %v2312
    %v2329 = vadd.f32 %v2274, %v2313
    %v2330 = vadd.f32 %v2275, %v2314
    %v2331 = vadd.f32 %v2276, %v2315
    %v2332 = vadd.f32 %v2277, %v2316
    %v2333 = vadd.f32 %v2278, %v2317
    %v2334 = vadd.f32 %v2279, %v2318
    %v2335 = vadd.f32 %v2280, %v2319
    %v2336 = vadd.f32 %v2281, %v2320
    %v2337 = vadd.f32 %v2282, %v2321
    %v2338 = vadd.f32 %v2283, %v2322
    %v2339 = vadd.f32 %v2284, %v2323
    %v2340 = vlaneseq
    %v2341 = vshrl.u32 %v2340, 7
    %v2342 = vsub.s32 4, %v2341
    %v2343 = vrot.slane %v2036, %v2342
    %v2344 = vmul.f32 %v2020, %v2343
    %v2345 = vmul.f32 %v2021, %v2343
    %v2346 = vmul.f32 %v2022, %v2343
    %v2347 = vmul.f32 %v2023, %v2343
    %v2348 = vmul.f32 %v2024, %v2343
    %v2349 = vmul.f32 %v2025, %v2343
    %v2350 = vmul.f32 %v2026, %v2343
    %v2351 = vmul.f32 %v2027, %v2343
    %v2352 = vmul.f32 %v2028, %v2343
    %v2353 = vmul.f32 %v2029, %v2343
    %v2354 = vmul.f32 %v2030, %v2343
    %v2355 = vmul.f32 %v2031, %v2343
    %v2356 = vmul.f32 %v2032, %v2343
    %v2357 = vmul.f32 %v2033, %v2343
    %v2358 = vmul.f32 %v2034, %v2343
    %v2359 = vmul.f32 %v2035, %v2343
    %v2360 = vadd.f32 %v2324, %v2344
    %v2361 = vadd.f32 %v2325, %v2345
    %v2362 = vadd.f32 %v2326, %v2346
    %v2363 = vadd.f32 %v2327, %v2347
    %v2364 = vadd.f32 %v2328, %v2348
    %v2365 = vadd.f32 %v2329, %v2349
    %v2366 = vadd.f32 %v2330, %v2350
    %v2367 = vadd.f32 %v2331, %v2351
    %v2368 = vadd.f32 %v2332, %v2352
    %v2369 = vadd.f32 %v2333, %v2353
    %v2370 = vadd.f32 %v2334, %v2354
    %v2371 = vadd.f32 %v2335, %v2355
    %v2372 = vadd.f32 %v2336, %v2356
    %v2373 = vadd.f32 %v2337, %v2357
    %v2374 = vadd.f32 %v2338, %v2358
    %v2375 = vadd.f32 %v2339, %v2359
    %v2377 = vsel %vm767, %v2214, 0.0
    %v2378 = vmul.f32 %v2187, %v1124
    %v2379 = vmul.f32 %v2189, %v1129
    %v2380 = vmul.f32 %v2191, %v1134
    %v2381 = vmul.f32 %v2193, %v1139
    %v2382 = vmul.f32 %v2195, %v1144
    %v2383 = vmul.f32 %v2197, %v1149
    %v2384 = vmul.f32 %v2199, %v1154
    %v2385 = vmul.f32 %v2201, %v1159
    %v2386 = vmul.f32 %v2203, %v1164
    %v2387 = vmul.f32 %v2205, %v1169
    %v2388 = vmul.f32 %v2207, %v1174
    %v2389 = vmul.f32 %v2209, %v1179
    %v2390 = vmul.f32 %v2211, %v1184
    %v2391 = vmul.f32 %v2213, %v1189
    %v2392 = vmul.f32 %v2215, %v1194
    %v2393 = vmul.f32 %v2377, %v1199
    %v2394 = vlaneseq
    %v2395 = vshrl.u32 %v2394, 7
    %v2396 = vsub.s32 5, %v2395
    %v2397 = vrot.slane %v2036, %v2396
    %v2398 = vmul.f32 %v2378, %v2397
    %v2399 = vmul.f32 %v2379, %v2397
    %v2400 = vmul.f32 %v2380, %v2397
    %v2401 = vmul.f32 %v2381, %v2397
    %v2402 = vmul.f32 %v2382, %v2397
    %v2403 = vmul.f32 %v2383, %v2397
    %v2404 = vmul.f32 %v2384, %v2397
    %v2405 = vmul.f32 %v2385, %v2397
    %v2406 = vmul.f32 %v2386, %v2397
    %v2407 = vmul.f32 %v2387, %v2397
    %v2408 = vmul.f32 %v2388, %v2397
    %v2409 = vmul.f32 %v2389, %v2397
    %v2410 = vmul.f32 %v2390, %v2397
    %v2411 = vmul.f32 %v2391, %v2397
    %v2412 = vmul.f32 %v2392, %v2397
    %v2413 = vmul.f32 %v2393, %v2397
    %v2414 = vadd.f32 %v2360, %v2398
    %v2415 = vadd.f32 %v2361, %v2399
    %v2416 = vadd.f32 %v2362, %v2400
    %v2417 = vadd.f32 %v2363, %v2401
    %v2418 = vadd.f32 %v2364, %v2402
    %v2419 = vadd.f32 %v2365, %v2403
    %v2420 = vadd.f32 %v2366, %v2404
    %v2421 = vadd.f32 %v2367, %v2405
    %v2422 = vadd.f32 %v2368, %v2406
    %v2423 = vadd.f32 %v2369, %v2407
    %v2424 = vadd.f32 %v2370, %v2408
    %v2425 = vadd.f32 %v2371, %v2409
    %v2426 = vadd.f32 %v2372, %v2410
    %v2427 = vadd.f32 %v2373, %v2411
    %v2428 = vadd.f32 %v2374, %v2412
    %v2429 = vadd.f32 %v2375, %v2413
    %v2431 = vsel %vm472, %v2285, 0.0
    %v2432 = vmul.f32 %v2055, %v1258
    %v2433 = vmul.f32 %v2057, %v1263
    %v2434 = vmul.f32 %v2059, %v1268
    %v2435 = vmul.f32 %v2061, %v1273
    %v2436 = vmul.f32 %v2063, %v1278
    %v2437 = vmul.f32 %v2065, %v1283
    %v2438 = vmul.f32 %v2067, %v1288
    %v2439 = vmul.f32 %v2069, %v1293
    %v2440 = vmul.f32 %v2071, %v1298
    %v2441 = vmul.f32 %v2073, %v1303
    %v2442 = vmul.f32 %v2075, %v1308
    %v2443 = vmul.f32 %v2077, %v1313
    %v2444 = vmul.f32 %v2079, %v1318
    %v2445 = vmul.f32 %v2081, %v1323
    %v2446 = vmul.f32 %v2286, %v1328
    %v2447 = vmul.f32 %v2431, %v1333
    %v2448 = vlaneseq
    %v2449 = vshrl.u32 %v2448, 7
    %v2450 = vsub.s32 6, %v2449
    %v2451 = vrot.slane %v2036, %v2450
    %v2452 = vmul.f32 %v2432, %v2451
    %v2453 = vmul.f32 %v2433, %v2451
    %v2454 = vmul.f32 %v2434, %v2451
    %v2455 = vmul.f32 %v2435, %v2451
    %v2456 = vmul.f32 %v2436, %v2451
    %v2457 = vmul.f32 %v2437, %v2451
    %v2458 = vmul.f32 %v2438, %v2451
    %v2459 = vmul.f32 %v2439, %v2451
    %v2460 = vmul.f32 %v2440, %v2451
    %v2461 = vmul.f32 %v2441, %v2451
    %v2462 = vmul.f32 %v2442, %v2451
    %v2463 = vmul.f32 %v2443, %v2451
    %v2464 = vmul.f32 %v2444, %v2451
    %v2465 = vmul.f32 %v2445, %v2451
    %v2466 = vmul.f32 %v2446, %v2451
    %v2467 = vmul.f32 %v2447, %v2451
    %v2468 = vadd.f32 %v2414, %v2452
    %v2469 = vadd.f32 %v2415, %v2453
    %v2470 = vadd.f32 %v2416, %v2454
    %v2471 = vadd.f32 %v2417, %v2455
    %v2472 = vadd.f32 %v2418, %v2456
    %v2473 = vadd.f32 %v2419, %v2457
    %v2474 = vadd.f32 %v2420, %v2458
    %v2475 = vadd.f32 %v2421, %v2459
    %v2476 = vadd.f32 %v2422, %v2460
    %v2477 = vadd.f32 %v2423, %v2461
    %v2478 = vadd.f32 %v2424, %v2462
    %v2479 = vadd.f32 %v2425, %v2463
    %v2480 = vadd.f32 %v2426, %v2464
    %v2481 = vadd.f32 %v2427, %v2465
    %v2482 = vadd.f32 %v2428, %v2466
    %v2483 = vadd.f32 %v2429, %v2467
    %v2484 = vmul.f32 %v2021, %v1390
    %v2485 = vmul.f32 %v2022, %v1395
    %v2486 = vmul.f32 %v2023, %v1400
    %v2487 = vmul.f32 %v2024, %v1405
    %v2488 = vmul.f32 %v2025, %v1410
    %v2489 = vmul.f32 %v2026, %v1415
    %v2490 = vmul.f32 %v2027, %v1420
    %v2491 = vmul.f32 %v2028, %v1425
    %v2492 = vmul.f32 %v2029, %v1430
    %v2493 = vmul.f32 %v2030, %v1435
    %v2494 = vmul.f32 %v2031, %v1440
    %v2495 = vmul.f32 %v2032, %v1445
    %v2496 = vmul.f32 %v2033, %v1450
    %v2497 = vmul.f32 %v2034, %v1455
    %v2498 = vmul.f32 %v2035, %v1460
    %v2499 = vlaneseq
    %v2500 = vshrl.u32 %v2499, 7
    %v2501 = vsub.s32 7, %v2500
    %v2502 = vrot.slane %v2036, %v2501
    %v2503 = vmul.f32 %v2484, %v2502
    %v2504 = vmul.f32 %v2485, %v2502
    %v2505 = vmul.f32 %v2486, %v2502
    %v2506 = vmul.f32 %v2487, %v2502
    %v2507 = vmul.f32 %v2488, %v2502
    %v2508 = vmul.f32 %v2489, %v2502
    %v2509 = vmul.f32 %v2490, %v2502
    %v2510 = vmul.f32 %v2491, %v2502
    %v2511 = vmul.f32 %v2492, %v2502
    %v2512 = vmul.f32 %v2493, %v2502
    %v2513 = vmul.f32 %v2494, %v2502
    %v2514 = vmul.f32 %v2495, %v2502
    %v2515 = vmul.f32 %v2496, %v2502
    %v2516 = vmul.f32 %v2497, %v2502
    %v2517 = vmul.f32 %v2498, %v2502
    %v2518 = vmul.f32 %v1482, %v2502
    %v2519 = vadd.f32 %v2468, %v2503
    %v2520 = vadd.f32 %v2469, %v2504
    %v2521 = vadd.f32 %v2470, %v2505
    %v2522 = vadd.f32 %v2471, %v2506
    %v2523 = vadd.f32 %v2472, %v2507
    %v2524 = vadd.f32 %v2473, %v2508
    %v2525 = vadd.f32 %v2474, %v2509
    %v2526 = vadd.f32 %v2475, %v2510
    %v2527 = vadd.f32 %v2476, %v2511
    %v2528 = vadd.f32 %v2477, %v2512
    %v2529 = vadd.f32 %v2478, %v2513
    %v2530 = vadd.f32 %v2479, %v2514
    %v2531 = vadd.f32 %v2480, %v2515
    %v2532 = vadd.f32 %v2481, %v2516
    %v2533 = vadd.f32 %v2482, %v2517
    %v2534 = vadd.f32 %v2483, %v2518
    %v2535 = vmul.f32 %v2189, %v1522
    %v2536 = vmul.f32 %v2191, %v1527
    %v2537 = vmul.f32 %v2193, %v1532
    %v2538 = vmul.f32 %v2195, %v1537
    %v2539 = vmul.f32 %v2197, %v1542
    %v2540 = vmul.f32 %v2199, %v1547
    %v2541 = vmul.f32 %v2201, %v1552
    %v2542 = vmul.f32 %v2203, %v1557
    %v2543 = vmul.f32 %v2205, %v1562
    %v2544 = vmul.f32 %v2207, %v1567
    %v2545 = vmul.f32 %v2209, %v1572
    %v2546 = vmul.f32 %v2211, %v1577
    %v2547 = vmul.f32 %v2213, %v1582
    %v2548 = vmul.f32 %v2215, %v1587
    %v2549 = vmul.f32 %v2377, %v1592
    %v2550 = vlaneseq
    %v2551 = vshrl.u32 %v2550, 7
    %v2552 = vsub.s32 0, %v2551
    %v2553 = vrot.slane %v2037, %v2552
    %v2554 = vmul.f32 %v2535, %v2553
    %v2555 = vmul.f32 %v2536, %v2553
    %v2556 = vmul.f32 %v2537, %v2553
    %v2557 = vmul.f32 %v2538, %v2553
    %v2558 = vmul.f32 %v2539, %v2553
    %v2559 = vmul.f32 %v2540, %v2553
    %v2560 = vmul.f32 %v2541, %v2553
    %v2561 = vmul.f32 %v2542, %v2553
    %v2562 = vmul.f32 %v2543, %v2553
    %v2563 = vmul.f32 %v2544, %v2553
    %v2564 = vmul.f32 %v2545, %v2553
    %v2565 = vmul.f32 %v2546, %v2553
    %v2566 = vmul.f32 %v2547, %v2553
    %v2567 = vmul.f32 %v2548, %v2553
    %v2568 = vmul.f32 %v2549, %v2553
    %v2569 = vmul.f32 %v1614, %v2553
    %v2570 = vadd.f32 %v2519, %v2554
    %v2571 = vadd.f32 %v2520, %v2555
    %v2572 = vadd.f32 %v2521, %v2556
    %v2573 = vadd.f32 %v2522, %v2557
    %v2574 = vadd.f32 %v2523, %v2558
    %v2575 = vadd.f32 %v2524, %v2559
    %v2576 = vadd.f32 %v2525, %v2560
    %v2577 = vadd.f32 %v2526, %v2561
    %v2578 = vadd.f32 %v2527, %v2562
    %v2579 = vadd.f32 %v2528, %v2563
    %v2580 = vadd.f32 %v2529, %v2564
    %v2581 = vadd.f32 %v2530, %v2565
    %v2582 = vadd.f32 %v2531, %v2566
    %v2583 = vadd.f32 %v2532, %v2567
    %v2584 = vadd.f32 %v2533, %v2568
    %v2585 = vadd.f32 %v2534, %v2569
    %v2586 = vld [vmem:[%s2] sm:$0xf]
    %v2587 = vld [vmem:[%s2 + $0x4] sm:$0xf]
    %v2588 = vld [vmem:[%s2 + $0x8] sm:$0xf]
    %v2589 = vld [vmem:[%s2 + $0xc] sm:$0xf]
    %v2590 = vpack.c.bf16 %v2571, %v2570
    %v2591 = vpack.c.bf16 %v2573, %v2572
    %v2592 = vpack.c.bf16 %v2575, %v2574
    %v2593 = vpack.c.bf16 %v2577, %v2576
    %v2594 = vpack.c.bf16 %v2579, %v2578
    %v2595 = vpack.c.bf16 %v2581, %v2580
    %v2596 = vpack.c.bf16 %v2583, %v2582
    %v2597 = vpack.c.bf16 %v2585, %v2584
    %v2598 = vld [vmem:[%s14] sm:$0x1]
    %v2600 = vlaneseq
    %v2601 = vshrl.u32 %v2600, 7
    %v2602 = vsub.s32 0, %v2601
    %v2603 = vrot.slane %v2598, %v2602
    %v2609 = vunpack.c.l.b16 %v2586
    %v2610 = vunpack.c.l.b16 %v2587
    %v2611 = vunpack.c.l.b16 %v2588
    %v2612 = vunpack.c.l.b16 %v2589
    %v2613 = vpack.c.b16 %v2610, %v2609
    %v2614 = vpack.c.b16 %v2612, %v2611
    %2617 = vmatprep.subr.bf16.mxu0 0
    %2618 = vmatpush1.bf16.msra.mxu0 %v2590
    %2619 = vmatprep.subr.bf16.mxu0 0
    %2620 = vmatpush1.bf16.msra.mxu0 %v2591
    %2621 = vmatprep.subr.bf16.mxu0 0
    %2622 = vmatpush1.bf16.msra.mxu0 %v2592
    %2623 = vmatprep.subr.bf16.mxu0 0
    %2624 = vmatpush1.bf16.msra.mxu0 %v2593
    %2625 = vmatprep.subr.bf16.mxu0 0
    %2626 = vmatpush1.bf16.msra.mxu0 %v2594
    %2627 = vmatprep.subr.bf16.mxu0 0
    %2628 = vmatpush1.bf16.msra.mxu0 %v2595
    %2629 = vmatprep.subr.bf16.mxu0 0
    %2630 = vmatpush1.bf16.msra.mxu0 %v2596
    %2631 = vmatprep.subr.bf16.mxu0 0
    %2632 = vmatpush1.bf16.msra.mxu0 %v2597
    %2633 = vmatprep.subr.bf16.mxu0 0
    %2634 = vmatpush1.bf16.msra.mxu0 0
    %2635 = vmatprep.subr.bf16.mxu0 0
    %2636 = vmatpush1.bf16.msra.mxu0 0
    %2637 = vmatprep.subr.bf16.mxu0 0
    %2638 = vmatpush1.bf16.msra.mxu0 0
    %2639 = vmatprep.subr.bf16.mxu0 0
    %2640 = vmatpush1.bf16.msra.mxu0 0
    %2641 = vmatprep.subr.bf16.mxu0 0
    %2642 = vmatpush1.bf16.msra.mxu0 0
    %2643 = vmatprep.subr.bf16.mxu0 0
    %2644 = vmatpush1.bf16.msra.mxu0 0
    %2645 = vmatprep.subr.bf16.mxu0 0
    %2646 = vmatpush1.bf16.msra.mxu0 0
    %2647 = vmatprep.subr.bf16.mxu0 0
    %2648 = vmatpush1.bf16.msra.mxu0 0
    %2649 = vmatprep.mubr.bf16.mxu0 0
    %2650 = vmatmul.mubr.bf16.gmra.mrb[0].mxu0 %v2613
    %v2651 = vpop.f32.mrb[0].mxu0
    %v2652 = vadd.f32 %v2603, %v2651
    %v2653 = vpop.f32.mrb[0].mxu0
    %v2654 = vpop.f32.mrb[0].mxu0
    %v2655 = vadd.f32 %v2603, %v2654
    %v2656 = vpop.f32.mrb[0].mxu0
    %2657 = vmatprep.mubr.bf16.mxu0 0
    %2658 = vmatmul.mubr.bf16.gmra.mrb[0].mxu0 %v2614
    %v2659 = vpop.f32.mrb[0].mxu0
    %v2660 = vadd.f32 %v2603, %v2659
    %v2661 = vpop.f32.mrb[0].mxu0
    %v2662 = vpop.f32.mrb[0].mxu0
    %v2663 = vadd.f32 %v2603, %v2662
    %v2664 = vpop.f32.mrb[0].mxu0
    %2665 = vdwg.mxu0
    %v2666 = vmax.f32 %v2652, 0.0
    %v2667 = vmax.f32 %v2655, 0.0
    %v2668 = vmax.f32 %v2660, 0.0
    %v2669 = vmax.f32 %v2663, 0.0
    %v2670 = vmin.f32 %v2666, 6.0
    %v2671 = vmin.f32 %v2667, 6.0
    %v2672 = vmin.f32 %v2668, 6.0
    %v2673 = vmin.f32 %v2669, 6.0
    %v2674 = vpack.c.bf16 %v2671, %v2670
    %v2675 = vpack.c.bf16 %v2673, %v2672
    %v2676 = vld [vmem:[%s15] sm:$0xf]
    %v2677 = vld [vmem:[%s15 + $0x4] sm:$0xf]
    %v2678 = vld [vmem:[%s15 + $0x8] sm:$0xf]
    %v2679 = vld [vmem:[%s15 + $0xc] sm:$0xf]
    %v2680 = vld [vmem:[%s15 + $0x10] sm:$0xf]
    %v2681 = vld [vmem:[%s15 + $0x14] sm:$0xf]
    %v2682 = vld [vmem:[%s16] sm:$0x1]
    %v2684 = vlaneseq
    %v2685 = vshrl.u32 %v2684, 7
    %v2686 = vsub.s32 0, %v2685
    %v2687 = vrot.slane %v2682, %v2686
    %v2695 = vunpack.c.l.b16 %v2676
    %v2696 = vunpack.c.l.b16 %v2677
    %v2697 = vunpack.c.l.b16 %v2678
    %v2698 = vunpack.c.l.b16 %v2679
    %v2699 = vunpack.c.l.b16 %v2680
    %v2700 = vunpack.c.l.b16 %v2681
    %v2701 = vpack.c.b16 %v2696, %v2695
    %v2702 = vpack.c.b16 %v2698, %v2697
    %v2703 = vpack.c.b16 %v2700, %v2699
    %vm2707 = vcmask 392192
    %v2709 = vsel %vm2707, %v2674, 0
    %v2712 = vsel %vm2707, %v2675, 0
    %2714 = vmatprep.subr.bf16.mxu0 0
    %2715 = vmatpush1.bf16.msra.mxu0 %v2701
    %2716 = vmatprep.subr.bf16.mxu0 0
    %2717 = vmatpush1.bf16.msra.mxu0 %v2702
    %2718 = vmatprep.subr.bf16.mxu0 0
    %2719 = vmatpush1.bf16.msra.mxu0 %v2703
    %2720 = vmatprep.subr.bf16.mxu0 0
    %2721 = vmatpush1.bf16.msra.mxu0 0
    %2722 = vmatprep.subr.bf16.mxu0 0
    %2723 = vmatpush1.bf16.msra.mxu0 0
    %2724 = vmatprep.subr.bf16.mxu0 0
    %2725 = vmatpush1.bf16.msra.mxu0 0
    %2726 = vmatprep.subr.bf16.mxu0 0
    %2727 = vmatpush1.bf16.msra.mxu0 0
    %2728 = vmatprep.subr.bf16.mxu0 0
    %2729 = vmatpush1.bf16.msra.mxu0 0
    %2730 = vmatprep.subr.bf16.mxu0 0
    %2731 = vmatpush1.bf16.msra.mxu0 0
    %2732 = vmatprep.subr.bf16.mxu0 0
    %2733 = vmatpush1.bf16.msra.mxu0 0
    %2734 = vmatprep.subr.bf16.mxu0 0
    %2735 = vmatpush1.bf16.msra.mxu0 0
    %2736 = vmatprep.subr.bf16.mxu0 0
    %2737 = vmatpush1.bf16.msra.mxu0 0
    %2738 = vmatprep.subr.bf16.mxu0 0
    %2739 = vmatpush1.bf16.msra.mxu0 0
    %2740 = vmatprep.subr.bf16.mxu0 0
    %2741 = vmatpush1.bf16.msra.mxu0 0
    %2742 = vmatprep.subr.bf16.mxu0 0
    %2743 = vmatpush1.bf16.msra.mxu0 0
    %2744 = vmatprep.subr.bf16.mxu0 0
    %2745 = vmatpush1.bf16.msra.mxu0 0
    %2746 = vmatprep.mubr.bf16.mxu0 0
    %2747 = vmatmul.mubr.bf16.gmra.mrb[0].mxu0 %v2709
    %v2748 = vpop.f32.mrb[0].mxu0
    %v2749 = vadd.f32 %v2687, %v2748
    %v2750 = vpop.f32.mrb[0].mxu0
    %v2751 = vpop.f32.mrb[0].mxu0
    %v2752 = vadd.f32 %v2687, %v2751
    %v2753 = vpop.f32.mrb[0].mxu0
    %2754 = vmatprep.mubr.bf16.mxu0 0
    %2755 = vmatmul.mubr.bf16.gmra.mrb[0].mxu0 %v2712
    %v2756 = vpop.f32.mrb[0].mxu0
    %v2757 = vadd.f32 %v2687, %v2756
    %v2758 = vpop.f32.mrb[0].mxu0
    %v2759 = vpop.f32.mrb[0].mxu0
    %v2760 = vadd.f32 %v2687, %v2759
    %v2761 = vpop.f32.mrb[0].mxu0
    %2762 = vdwg.mxu0
    %v2763 = vpack.c.bf16 %v2752, %v2749
    %v2764 = vpack.c.bf16 %v2760, %v2757
    %v2765 = vld [vmem:[%s17] sm:$0xf]
    %v2766 = vld [vmem:[%s17 + $0x4] sm:$0xf]
    %v2767 = vld [vmem:[%s18] sm:$0x1]
    %v2769 = vlaneseq
    %v2770 = vshrl.u32 %v2769, 7
    %v2771 = vsub.s32 0, %v2770
    %v2772 = vrot.slane %v2767, %v2771
    %v2776 = vunpack.c.l.b16 %v2765
    %v2777 = vunpack.c.l.b16 %v2766
    %v2778 = vpack.c.b16 %v2777, %v2776
    %vm2780 = vcmask 130048
    %v2782 = vsel %vm2780, %v2763, 0
    %v2785 = vsel %vm2780, %v2764, 0
    %2787 = vmatprep.subr.bf16.mxu0 0
    %2788 = vmatpush1.bf16.msra.mxu0 %v2778
    %2789 = vmatprep.subr.bf16.mxu0 0
    %2790 = vmatpush1.bf16.msra.mxu0 0
    %2791 = vmatprep.subr.bf16.mxu0 0
    %2792 = vmatpush1.bf16.msra.mxu0 0
    %2793 = vmatprep.subr.bf16.mxu0 0
    %2794 = vmatpush1.bf16.msra.mxu0 0
    %2795 = vmatprep.subr.bf16.mxu0 0
    %2796 = vmatpush1.bf16.msra.mxu0 0
    %2797 = vmatprep.subr.bf16.mxu0 0
    %2798 = vmatpush1.bf16.msra.mxu0 0
    %2799 = vmatprep.subr.bf16.mxu0 0
    %2800 = vmatpush1.bf16.msra.mxu0 0
    %2801 = vmatprep.subr.bf16.mxu0 0
    %2802 = vmatpush1.bf16.msra.mxu0 0
    %2803 = vmatprep.subr.bf16.mxu0 0
    %2804 = vmatpush1.bf16.msra.mxu0 0
    %2805 = vmatprep.subr.bf16.mxu0 0
    %2806 = vmatpush1.bf16.msra.mxu0 0
    %2807 = vmatprep.subr.bf16.mxu0 0
    %2808 = vmatpush1.bf16.msra.mxu0 0
    %2809 = vmatprep.subr.bf16.mxu0 0
    %2810 = vmatpush1.bf16.msra.mxu0 0
    %2811 = vmatprep.subr.bf16.mxu0 0
    %2812 = vmatpush1.bf16.msra.mxu0 0
    %2813 = vmatprep.subr.bf16.mxu0 0
    %2814 = vmatpush1.bf16.msra.mxu0 0
    %2815 = vmatprep.subr.bf16.mxu0 0
    %2816 = vmatpush1.bf16.msra.mxu0 0
    %2817 = vmatprep.subr.bf16.mxu0 0
    %2818 = vmatpush1.bf16.msra.mxu0 0
    %2819 = vmatprep.mubr.bf16.mxu0 0
    %2820 = vmatmul.mubr.bf16.gmra.mrb[0].mxu0 %v2782
    %v2821 = vpop.f32.mrb[0].mxu0
    %v2822 = vadd.f32 %v2772, %v2821
    %v2823 = vpop.f32.mrb[0].mxu0
    %v2824 = vpop.f32.mrb[0].mxu0
    %v2825 = vadd.f32 %v2772, %v2824
    %v2826 = vpop.f32.mrb[0].mxu0
    %2827 = vmatprep.mubr.bf16.mxu0 0
    %2828 = vmatmul.mubr.bf16.gmra.mrb[0].mxu0 %v2785
    %v2829 = vpop.f32.mrb[0].mxu0
    %v2830 = vadd.f32 %v2772, %v2829
    %v2831 = vpop.f32.mrb[0].mxu0
    %v2832 = vpop.f32.mrb[0].mxu0
    %v2833 = vadd.f32 %v2772, %v2832
    %v2834 = vpop.f32.mrb[0].mxu0
    %2835 = vdwg.mxu0
    %v2836 = vmax.f32 %v2822, 0.0
    %v2837 = vmax.f32 %v2825, 0.0
    %v2838 = vmax.f32 %v2830, 0.0
    %v2839 = vmax.f32 %v2833, 0.0
    %v2840 = vmin.f32 %v2836, 6.0
    %v2841 = vmin.f32 %v2837, 6.0
    %v2842 = vmin.f32 %v2838, 6.0
    %v2843 = vmin.f32 %v2839, 6.0
    %v2844 = vld [vmem:[%s19] sm:$0xff]
    %v2845 = vld [vmem:[%s19 + $0x8] sm:$0x1]
    %v2850 = vrot.slane %v2840, 3
    %v2851 = vrot.slane %v2841, 3
    %v2852 = vsel %vm319, %v2850, %v2851
    %v2853 = vrot.slane %v2842, 3
    %v2854 = vsel %vm319, %v2851, %v2853
    %v2855 = vrot.slane %v2843, 3
    %v2856 = vsel %vm319, %v2853, %v2855
    %v2861 = vsel %vm319, 0.0, %v2850
    %2863 = vset.pattern.permute.xlu0 0
    %2864 = vperm.xlu0 %2863, %v216
    %v2865 = vpop.permute.xlu0 %2864
    %2868 = vset.pattern.permute.xlu0 0
    %2869 = vperm.xlu0 %2868, %v217
    %v2870 = vpop.permute.xlu0 %2869
    %2873 = vset.pattern.permute.xlu0 0
    %2874 = vperm.xlu0 %2873, %v218
    %v2875 = vpop.permute.xlu0 %2874
    %2878 = vset.pattern.permute.xlu0 0
    %2879 = vperm.xlu0 %2878, %v219
    %v2880 = vpop.permute.xlu0 %2879
    %v2882 = vmul.f32 %v2861, %v2865
    %v2883 = vmul.f32 %v2852, %v2870
    %v2884 = vmul.f32 %v2854, %v2875
    %v2885 = vmul.f32 %v2856, %v2880
    %v2886 = vlaneseq
    %v2887 = vshrl.u32 %v2886, 7
    %v2888 = vsub.s32 0, %v2887
    %v2889 = vrot.slane %v2844, %v2888
    %v2890 = vmul.f32 %v2882, %v2889
    %v2891 = vmul.f32 %v2883, %v2889
    %v2892 = vmul.f32 %v2884, %v2889
    %v2893 = vmul.f32 %v2885, %v2889
    %v2894 = vrot.slane %v2840, 4
    %v2895 = vrot.slane %v2841, 4
    %v2896 = vsel %vm1747, %v2894, %v2895
    %v2897 = vrot.slane %v2842, 4
    %v2898 = vsel %vm1747, %v2895, %v2897
    %v2899 = vrot.slane %v2843, 4
    %v2900 = vsel %vm1747, %v2897, %v2899
    %v2905 = vsel %vm1747, 0.0, %v2894
    %2907 = vset.pattern.permute.xlu0 0
    %2908 = vperm.xlu0 %2907, %v220
    %v2909 = vpop.permute.xlu0 %2908
    %2912 = vset.pattern.permute.xlu0 0
    %2913 = vperm.xlu0 %2912, %v221
    %v2914 = vpop.permute.xlu0 %2913
    %2917 = vset.pattern.permute.xlu0 0
    %2918 = vperm.xlu0 %2917, %v222
    %v2919 = vpop.permute.xlu0 %2918
    %2922 = vset.pattern.permute.xlu0 0
    %2923 = vperm.xlu0 %2922, %v223
    %v2924 = vpop.permute.xlu0 %2923
    %v2926 = vmul.f32 %v2905, %v2909
    %v2927 = vmul.f32 %v2896, %v2914
    %v2928 = vmul.f32 %v2898, %v2919
    %v2929 = vmul.f32 %v2900, %v2924
    %v2930 = vlaneseq
    %v2931 = vshrl.u32 %v2930, 7
    %v2932 = vsub.s32 1, %v2931
    %v2933 = vrot.slane %v2844, %v2932
    %v2934 = vmul.f32 %v2926, %v2933
    %v2935 = vmul.f32 %v2927, %v2933
    %v2936 = vmul.f32 %v2928, %v2933
    %v2937 = vmul.f32 %v2929, %v2933
    %v2938 = vadd.f32 %v2890, %v2934
    %v2939 = vadd.f32 %v2891, %v2935
    %v2940 = vadd.f32 %v2892, %v2936
    %v2941 = vadd.f32 %v2893, %v2937
    %vm2942 = vcmask 1042432
    %v2943 = vrot.slane %v2840, 5
    %v2944 = vrot.slane %v2841, 5
    %v2945 = vsel %vm2942, %v2943, %v2944
    %v2946 = vrot.slane %v2842, 5
    %v2947 = vsel %vm2942, %v2944, %v2946
    %v2948 = vrot.slane %v2843, 5
    %v2949 = vsel %vm2942, %v2946, %v2948
    %v2954 = vsel %vm2942, 0.0, %v2943
    %2956 = vset.pattern.permute.xlu0 0
    %2957 = vperm.xlu0 %2956, %v224
    %v2958 = vpop.permute.xlu0 %2957
    %2961 = vset.pattern.permute.xlu0 0
    %2962 = vperm.xlu0 %2961, %v225
    %v2963 = vpop.permute.xlu0 %2962
    %2966 = vset.pattern.permute.xlu0 0
    %2967 = vperm.xlu0 %2966, %v226
    %v2968 = vpop.permute.xlu0 %2967
    %2971 = vset.pattern.permute.xlu0 0
    %2972 = vperm.xlu0 %2971, %v227
    %v2973 = vpop.permute.xlu0 %2972
    %v2975 = vmul.f32 %v2954, %v2958
    %v2976 = vmul.f32 %v2945, %v2963
    %v2977 = vmul.f32 %v2947, %v2968
    %v2978 = vmul.f32 %v2949, %v2973
    %v2979 = vlaneseq
    %v2980 = vshrl.u32 %v2979, 7
    %v2981 = vsub.s32 2, %v2980
    %v2982 = vrot.slane %v2844, %v2981
    %v2983 = vmul.f32 %v2975, %v2982
    %v2984 = vmul.f32 %v2976, %v2982
    %v2985 = vmul.f32 %v2977, %v2982
    %v2986 = vmul.f32 %v2978, %v2982
    %v2987 = vadd.f32 %v2938, %v2983
    %v2988 = vadd.f32 %v2939, %v2984
    %v2989 = vadd.f32 %v2940, %v2985
    %v2990 = vadd.f32 %v2941, %v2986
    %v2991 = vrot.slane %v2840, 7
    %v2992 = vrot.slane %v2841, 7
    %v2993 = vsel %vm472, %v2991, %v2992
    %v2994 = vrot.slane %v2842, 7
    %v2995 = vsel %vm472, %v2992, %v2994
    %v2996 = vrot.slane %v2843, 7
    %v2997 = vsel %vm472, %v2994, %v2996
    %v3002 = vsel %vm472, 0.0, %v2991
    %3004 = vset.pattern.permute.xlu0 0
    %3005 = vperm.xlu0 %3004, %v228
    %v3006 = vpop.permute.xlu0 %3005
    %3009 = vset.pattern.permute.xlu0 0
    %3010 = vperm.xlu0 %3009, %v229
    %v3011 = vpop.permute.xlu0 %3010
    %3014 = vset.pattern.permute.xlu0 0
    %3015 = vperm.xlu0 %3014, %v230
    %v3016 = vpop.permute.xlu0 %3015
    %3019 = vset.pattern.permute.xlu0 0
    %3020 = vperm.xlu0 %3019, %v231
    %v3021 = vpop.permute.xlu0 %3020
    %v3023 = vmul.f32 %v3002, %v3006
    %v3024 = vmul.f32 %v2993, %v3011
    %v3025 = vmul.f32 %v2995, %v3016
    %v3026 = vmul.f32 %v2997, %v3021
    %v3027 = vlaneseq
    %v3028 = vshrl.u32 %v3027, 7
    %v3029 = vsub.s32 3, %v3028
    %v3030 = vrot.slane %v2844, %v3029
    %v3031 = vmul.f32 %v3023, %v3030
    %v3032 = vmul.f32 %v3024, %v3030
    %v3033 = vmul.f32 %v3025, %v3030
    %v3034 = vmul.f32 %v3026, %v3030
    %v3035 = vadd.f32 %v2987, %v3031
    %v3036 = vadd.f32 %v2988, %v3032
    %v3037 = vadd.f32 %v2989, %v3033
    %v3038 = vadd.f32 %v2990, %v3034
    %v3039 = vlaneseq
    %v3040 = vshrl.u32 %v3039, 7
    %v3041 = vsub.s32 4, %v3040
    %v3042 = vrot.slane %v2844, %v3041
    %v3043 = vmul.f32 %v2840, %v3042
    %v3044 = vmul.f32 %v2841, %v3042
    %v3045 = vmul.f32 %v2842, %v3042
    %v3046 = vmul.f32 %v2843, %v3042
    %v3047 = vadd.f32 %v3035, %v3043
    %v3048 = vadd.f32 %v3036, %v3044
    %v3049 = vadd.f32 %v3037, %v3045
    %v3050 = vadd.f32 %v3038, %v3046
    %v3051 = vrot.slane %v2840, 1
    %v3052 = vrot.slane %v2841, 1
    %v3053 = vsel %vm767, %v3051, %v3052
    %v3054 = vrot.slane %v2842, 1
    %v3055 = vsel %vm767, %v3052, %v3054
    %v3056 = vrot.slane %v2843, 1
    %v3057 = vsel %vm767, %v3054, %v3056
    %v3062 = vsel %vm767, %v3056, 0.0
    %3064 = vset.pattern.permute.xlu0 0
    %3065 = vperm.xlu0 %3064, %v232
    %v3066 = vpop.permute.xlu0 %3065
    %3069 = vset.pattern.permute.xlu0 0
    %3070 = vperm.xlu0 %3069, %v233
    %v3071 = vpop.permute.xlu0 %3070
    %3074 = vset.pattern.permute.xlu0 0
    %3075 = vperm.xlu0 %3074, %v234
    %v3076 = vpop.permute.xlu0 %3075
    %3079 = vset.pattern.permute.xlu0 0
    %3080 = vperm.xlu0 %3079, %v235
    %v3081 = vpop.permute.xlu0 %3080
    %v3083 = vmul.f32 %v3053, %v3066
    %v3084 = vmul.f32 %v3055, %v3071
    %v3085 = vmul.f32 %v3057, %v3076
    %v3086 = vmul.f32 %v3062, %v3081
    %v3087 = vlaneseq
    %v3088 = vshrl.u32 %v3087, 7
    %v3089 = vsub.s32 5, %v3088
    %v3090 = vrot.slane %v2844, %v3089
    %v3091 = vmul.f32 %v3083, %v3090
    %v3092 = vmul.f32 %v3084, %v3090
    %v3093 = vmul.f32 %v3085, %v3090
    %v3094 = vmul.f32 %v3086, %v3090
    %v3095 = vadd.f32 %v3047, %v3091
    %v3096 = vadd.f32 %v3048, %v3092
    %v3097 = vadd.f32 %v3049, %v3093
    %v3098 = vadd.f32 %v3050, %v3094
    %v3100 = vsel %vm319, %v2855, 0.0
    %3102 = vset.pattern.permute.xlu0 0
    %3103 = vperm.xlu0 %3102, %v236
    %v3104 = vpop.permute.xlu0 %3103
    %3107 = vset.pattern.permute.xlu0 0
    %3108 = vperm.xlu0 %3107, %v237
    %v3109 = vpop.permute.xlu0 %3108
    %3112 = vset.pattern.permute.xlu0 0
    %3113 = vperm.xlu0 %3112, %v238
    %v3114 = vpop.permute.xlu0 %3113
    %3117 = vset.pattern.permute.xlu0 0
    %3118 = vperm.xlu0 %3117, %v239
    %v3119 = vpop.permute.xlu0 %3118
    %v3121 = vmul.f32 %v2852, %v3104
    %v3122 = vmul.f32 %v2854, %v3109
    %v3123 = vmul.f32 %v2856, %v3114
    %v3124 = vmul.f32 %v3100, %v3119
    %v3125 = vlaneseq
    %v3126 = vshrl.u32 %v3125, 7
    %v3127 = vsub.s32 6, %v3126
    %v3128 = vrot.slane %v2844, %v3127
    %v3129 = vmul.f32 %v3121, %v3128
    %v3130 = vmul.f32 %v3122, %v3128
    %v3131 = vmul.f32 %v3123, %v3128
    %v3132 = vmul.f32 %v3124, %v3128
    %v3133 = vadd.f32 %v3095, %v3129
    %v3134 = vadd.f32 %v3096, %v3130
    %v3135 = vadd.f32 %v3097, %v3131
    %v3136 = vadd.f32 %v3098, %v3132
    %v3138 = vsel %vm1747, %v2899, 0.0
    %3140 = vset.pattern.permute.xlu0 0
    %3141 = vperm.xlu0 %3140, %v240
    %v3142 = vpop.permute.xlu0 %3141
    %3145 = vset.pattern.permute.xlu0 0
    %3146 = vperm.xlu0 %3145, %v241
    %v3147 = vpop.permute.xlu0 %3146
    %3150 = vset.pattern.permute.xlu0 0
    %3151 = vperm.xlu0 %3150, %v242
    %v3152 = vpop.permute.xlu0 %3151
    %3155 = vset.pattern.permute.xlu0 0
    %3156 = vperm.xlu0 %3155, %v243
    %v3157 = vpop.permute.xlu0 %3156
    %v3159 = vmul.f32 %v2896, %v3142
    %v3160 = vmul.f32 %v2898, %v3147
    %v3161 = vmul.f32 %v2900, %v3152
    %v3162 = vmul.f32 %v3138, %v3157
    %v3163 = vlaneseq
    %v3164 = vshrl.u32 %v3163, 7
    %v3165 = vsub.s32 7, %v3164
    %v3166 = vrot.slane %v2844, %v3165
    %v3167 = vmul.f32 %v3159, %v3166
    %v3168 = vmul.f32 %v3160, %v3166
    %v3169 = vmul.f32 %v3161, %v3166
    %v3170 = vmul.f32 %v3162, %v3166
    %v3171 = vadd.f32 %v3133, %v3167
    %v3172 = vadd.f32 %v3134, %v3168
    %v3173 = vadd.f32 %v3135, %v3169
    %v3174 = vadd.f32 %v3136, %v3170
    %v3176 = vsel %vm2942, %v2948, 0.0
    %3178 = vset.pattern.permute.xlu0 0
    %3179 = vperm.xlu0 %3178, %v244
    %v3180 = vpop.permute.xlu0 %3179
    %3183 = vset.pattern.permute.xlu0 0
    %3184 = vperm.xlu0 %3183, %v245
    %v3185 = vpop.permute.xlu0 %3184
    %3188 = vset.pattern.permute.xlu0 0
    %3189 = vperm.xlu0 %3188, %v246
    %v3190 = vpop.permute.xlu0 %3189
    %3193 = vset.pattern.permute.xlu0 0
    %3194 = vperm.xlu0 %3193, %v247
    %v3195 = vpop.permute.xlu0 %3194
    %v3197 = vmul.f32 %v2945, %v3180
    %v3198 = vmul.f32 %v2947, %v3185
    %v3199 = vmul.f32 %v2949, %v3190
    %v3200 = vmul.f32 %v3176, %v3195
    %v3201 = vlaneseq
    %v3202 = vshrl.u32 %v3201, 7
    %v3203 = vsub.s32 0, %v3202
    %v3204 = vrot.slane %v2845, %v3203
    %v3205 = vmul.f32 %v3197, %v3204
    %v3206 = vmul.f32 %v3198, %v3204
    %v3207 = vmul.f32 %v3199, %v3204
    %v3208 = vmul.f32 %v3200, %v3204
    %v3209 = vadd.f32 %v3171, %v3205
    %v3210 = vadd.f32 %v3172, %v3206
    %v3211 = vadd.f32 %v3173, %v3207
    %v3212 = vadd.f32 %v3174, %v3208
    %v3213 = vld [vmem:[%s20] sm:$0x1]
    %v3215 = vlaneseq
    %v3216 = vshrl.u32 %v3215, 7
    %v3217 = vsub.s32 0, %v3216
    %v3218 = vrot.slane %v3213, %v3217
    %v3220 = vadd.f32 %v3209, %v3218
    %v3221 = vadd.f32 %v3210, %v3218
    %v3222 = vadd.f32 %v3211, %v3218
    %v3223 = vadd.f32 %v3212, %v3218
    %v3224 = vmax.f32 %v3220, 0.0
    %v3225 = vmax.f32 %v3221, 0.0
    %v3226 = vmax.f32 %v3222, 0.0
    %v3227 = vmax.f32 %v3223, 0.0
    %v3228 = vmin.f32 %v3224, 6.0
    %v3229 = vmin.f32 %v3225, 6.0
    %v3230 = vmin.f32 %v3226, 6.0
    %v3231 = vmin.f32 %v3227, 6.0
    %v3232 = vpack.c.bf16 %v3229, %v3228
    %v3233 = vpack.c.bf16 %v3231, %v3230
    %v3234 = vld [vmem:[%s21] sm:$0xf]
    %v3235 = vld [vmem:[%s21 + $0x4] sm:$0xf]
    %v3236 = vld [vmem:[%s21 + $0x8] sm:$0xf]
    %v3237 = vld [vmem:[%s21 + $0xc] sm:$0xf]
    %v3238 = vld [vmem:[%s21 + $0x10] sm:$0xf]
    %v3239 = vld [vmem:[%s21 + $0x14] sm:$0xf]
    %v3240 = vld [vmem:[%s21 + $0x18] sm:$0xf]
    %v3241 = vld [vmem:[%s21 + $0x1c] sm:$0xf]
    %v3242 = vld [vmem:[%s21 + $0x20] sm:$0xf]
    %v3243 = vld [vmem:[%s21 + $0x24] sm:$0xf]
    %v3244 = vld [vmem:[%s21 + $0x28] sm:$0xf]
    %v3245 = vld [vmem:[%s21 + $0x2c] sm:$0xf]
    %v3246 = vld [vmem:[%s22] sm:$0x1]
    %v3248 = vlaneseq
    %v3249 = vshrl.u32 %v3248, 7
    %v3250 = vsub.s32 0, %v3249
    %v3251 = vrot.slane %v3246, %v3250
    %v3265 = vunpack.c.l.b16 %v3234
    %v3266 = vunpack.c.l.b16 %v3235
    %v3267 = vunpack.c.l.b16 %v3236
    %v3268 = vunpack.c.l.b16 %v3237
    %v3269 = vunpack.c.l.b16 %v3238
    %v3270 = vunpack.c.l.b16 %v3239
    %v3271 = vunpack.c.l.b16 %v3240
    %v3272 = vunpack.c.l.b16 %v3241
    %v3273 = vunpack.c.l.b16 %v3242
    %v3274 = vunpack.c.l.b16 %v3243
    %v3275 = vunpack.c.l.b16 %v3244
    %v3276 = vunpack.c.l.b16 %v3245
    %v3277 = vpack.c.b16 %v3266, %v3265
    %v3278 = vpack.c.b16 %v3268, %v3267
    %v3279 = vpack.c.b16 %v3270, %v3269
    %v3280 = vpack.c.b16 %v3272, %v3271
    %v3281 = vpack.c.b16 %v3274, %v3273
    %v3282 = vpack.c.b16 %v3276, %v3275
    %vm3289 = vcmask 785408
    %v3291 = vsel %vm3289, %v3232, 0
    %v3294 = vsel %vm3289, %v3233, 0
    %3296 = vmatprep.subr.bf16.mxu0 0
    %3297 = vmatpush1.bf16.msra.mxu0 %v3277
    %3298 = vmatprep.subr.bf16.mxu0 0
    %3299 = vmatpush1.bf16.msra.mxu0 %v3278
    %3300 = vmatprep.subr.bf16.mxu0 0
    %3301 = vmatpush1.bf16.msra.mxu0 %v3279
    %3302 = vmatprep.subr.bf16.mxu0 0
    %3303 = vmatpush1.bf16.msra.mxu0 %v3280
    %3304 = vmatprep.subr.bf16.mxu0 0
    %3305 = vmatpush1.bf16.msra.mxu0 %v3281
    %3306 = vmatprep.subr.bf16.mxu0 0
    %3307 = vmatpush1.bf16.msra.mxu0 %v3282
    %3308 = vmatprep.subr.bf16.mxu0 0
    %3309 = vmatpush1.bf16.msra.mxu0 0
    %3310 = vmatprep.subr.bf16.mxu0 0
    %3311 = vmatpush1.bf16.msra.mxu0 0
    %3312 = vmatprep.subr.bf16.mxu0 0
    %3313 = vmatpush1.bf16.msra.mxu0 0
    %3314 = vmatprep.subr.bf16.mxu0 0
    %3315 = vmatpush1.bf16.msra.mxu0 0
    %3316 = vmatprep.subr.bf16.mxu0 0
    %3317 = vmatpush1.bf16.msra.mxu0 0
    %3318 = vmatprep.subr.bf16.mxu0 0
    %3319 = vmatpush1.bf16.msra.mxu0 0
    %3320 = vmatprep.subr.bf16.mxu0 0
    %3321 = vmatpush1.bf16.msra.mxu0 0
    %3322 = vmatprep.subr.bf16.mxu0 0
    %3323 = vmatpush1.bf16.msra.mxu0 0
    %3324 = vmatprep.subr.bf16.mxu0 0
    %3325 = vmatpush1.bf16.msra.mxu0 0
    %3326 = vmatprep.subr.bf16.mxu0 0
    %3327 = vmatpush1.bf16.msra.mxu0 0
    %3328 = vmatprep.mubr.bf16.mxu0 0
    %3329 = vmatmul.mubr.bf16.gmra.mrb[0].mxu0 %v3291
    %v3330 = vpop.f32.mrb[0].mxu0
    %v3331 = vadd.f32 %v3251, %v3330
    %v3332 = vpop.f32.mrb[0].mxu0
    %v3333 = vpop.f32.mrb[0].mxu0
    %v3334 = vadd.f32 %v3251, %v3333
    %v3335 = vpop.f32.mrb[0].mxu0
    %3336 = vmatprep.mubr.bf16.mxu0 0
    %3337 = vmatmul.mubr.bf16.gmra.mrb[0].mxu0 %v3294
    %v3338 = vpop.f32.mrb[0].mxu0
    %v3339 = vadd.f32 %v3251, %v3338
    %v3340 = vpop.f32.mrb[0].mxu0
    %v3341 = vpop.f32.mrb[0].mxu0
    %v3342 = vadd.f32 %v3251, %v3341
    %v3343 = vpop.f32.mrb[0].mxu0
    %3344 = vdwg.mxu0
    %v3345 = vadd.f32 %v3331, %v2749
    %v3346 = vadd.f32 %v3334, %v2752
    %v3347 = vadd.f32 %v3339, %v2757
    %v3348 = vadd.f32 %v3342, %v2760
    %v3349 = vpack.c.bf16 %v3346, %v3345
    %v3350 = vpack.c.bf16 %v3348, %v3347
    %v3351 = vld [vmem:[%s23] sm:$0xf]
    %v3352 = vld [vmem:[%s23 + $0x4] sm:$0xf]
    %v3353 = vld [vmem:[%s24] sm:$0x1]
    %v3355 = vlaneseq
    %v3356 = vshrl.u32 %v3355, 7
    %v3357 = vsub.s32 0, %v3356
    %v3358 = vrot.slane %v3353, %v3357
    %v3362 = vunpack.c.l.b16 %v3351
    %v3363 = vunpack.c.l.b16 %v3352
    %v3364 = vpack.c.b16 %v3363, %v3362
    %v3367 = vsel %vm2780, %v3349, 0
    %v3370 = vsel %vm2780, %v3350, 0
    %3372 = vmatprep.subr.bf16.mxu0 0
    %3373 = vmatpush1.bf16.msra.mxu0 %v3364
    %3374 = vmatprep.subr.bf16.mxu0 0
    %3375 = vmatpush1.bf16.msra.mxu0 0
    %3376 = vmatprep.subr.bf16.mxu0 0
    %3377 = vmatpush1.bf16.msra.mxu0 0
    %3378 = vmatprep.subr.bf16.mxu0 0
    %3379 = vmatpush1.bf16.msra.mxu0 0
    %3380 = vmatprep.subr.bf16.mxu0 0
    %3381 = vmatpush1.bf16.msra.mxu0 0
    %3382 = vmatprep.subr.bf16.mxu0 0
    %3383 = vmatpush1.bf16.msra.mxu0 0
    %3384 = vmatprep.subr.bf16.mxu0 0
    %3385 = vmatpush1.bf16.msra.mxu0 0
    %3386 = vmatprep.subr.bf16.mxu0 0
    %3387 = vmatpush1.bf16.msra.mxu0 0
    %3388 = vmatprep.subr.bf16.mxu0 0
    %3389 = vmatpush1.bf16.msra.mxu0 0
    %3390 = vmatprep.subr.bf16.mxu0 0
    %3391 = vmatpush1.bf16.msra.mxu0 0
    %3392 = vmatprep.subr.bf16.mxu0 0
    %3393 = vmatpush1.bf16.msra.mxu0 0
    %3394 = vmatprep.subr.bf16.mxu0 0
    %3395 = vmatpush1.bf16.msra.mxu0 0
    %3396 = vmatprep.subr.bf16.mxu0 0
    %3397 = vmatpush1.bf16.msra.mxu0 0
    %3398 = vmatprep.subr.bf16.mxu0 0
    %3399 = vmatpush1.bf16.msra.mxu0 0
    %3400 = vmatprep.subr.bf16.mxu0 0
    %3401 = vmatpush1.bf16.msra.mxu0 0
    %3402 = vmatprep.subr.bf16.mxu0 0
    %3403 = vmatpush1.bf16.msra.mxu0 0
    %3404 = vmatprep.mubr.bf16.mxu0 0
    %3405 = vmatmul.mubr.bf16.gmra.mrb[0].mxu0 %v3367
    %v3406 = vpop.f32.mrb[0].mxu0
    %v3407 = vadd.f32 %v3358, %v3406
    %v3408 = vpop.f32.mrb[0].mxu0
    %v3409 = vpop.f32.mrb[0].mxu0
    %v3410 = vadd.f32 %v3358, %v3409
    %v3411 = vpop.f32.mrb[0].mxu0
    %3412 = vmatprep.mubr.bf16.mxu0 0
    %3413 = vmatmul.mubr.bf16.gmra.mrb[0].mxu0 %v3370
    %v3414 = vpop.f32.mrb[0].mxu0
    %v3415 = vadd.f32 %v3358, %v3414
    %v3416 = vpop.f32.mrb[0].mxu0
    %v3417 = vpop.f32.mrb[0].mxu0
    %v3418 = vadd.f32 %v3358, %v3417
    %v3419 = vpop.f32.mrb[0].mxu0
    %3420 = vdwg.mxu0
    %v3421 = vmax.f32 %v3407, 0.0
    %v3422 = vmax.f32 %v3410, 0.0
    %v3423 = vmax.f32 %v3415, 0.0
    %v3424 = vmax.f32 %v3418, 0.0
    %v3425 = vmin.f32 %v3421, 6.0
    %v3426 = vmin.f32 %v3422, 6.0
    %v3427 = vmin.f32 %v3423, 6.0
    %v3428 = vmin.f32 %v3424, 6.0
    %v3429 = vld [vmem:[%s4] sm:$0x1]
    %v3430 = vpack.c.bf16 %v3426, %v3425
    %v3431 = vpack.c.bf16 %v3428, %v3427
    %vm3432 = vcmask 261120
    %v3434 = vsel %vm3432, %v3429, 0
    %3436 = vmatprep.subr.bf16.mxu0 0
    %3437 = vmatpush1.bf16.msra.mxu0 %v3430
    %3438 = vmatprep.subr.bf16.mxu0 0
    %3439 = vmatpush1.bf16.msra.mxu0 %v3431
    %3440 = vmatprep.subr.bf16.mxu0 0
    %3441 = vmatpush1.bf16.msra.mxu0 0
    %3442 = vmatprep.subr.bf16.mxu0 0
    %3443 = vmatpush1.bf16.msra.mxu0 0
    %3444 = vmatprep.subr.bf16.mxu0 0
    %3445 = vmatpush1.bf16.msra.mxu0 0
    %3446 = vmatprep.subr.bf16.mxu0 0
    %3447 = vmatpush1.bf16.msra.mxu0 0
    %3448 = vmatprep.subr.bf16.mxu0 0
    %3449 = vmatpush1.bf16.msra.mxu0 0
    %3450 = vmatprep.subr.bf16.mxu0 0
    %3451 = vmatpush1.bf16.msra.mxu0 0
    %3452 = vmatprep.subr.bf16.mxu0 0
    %3453 = vmatpush1.bf16.msra.mxu0 0
    %3454 = vmatprep.subr.bf16.mxu0 0
    %3455 = vmatpush1.bf16.msra.mxu0 0
    %3456 = vmatprep.subr.bf16.mxu0 0
    %3457 = vmatpush1.bf16.msra.mxu0 0
    %3458 = vmatprep.subr.bf16.mxu0 0
    %3459 = vmatpush1.bf16.msra.mxu0 0
    %3460 = vmatprep.subr.bf16.mxu0 0
    %3461 = vmatpush1.bf16.msra.mxu0 0
    %3462 = vmatprep.subr.bf16.mxu0 0
    %3463 = vmatpush1.bf16.msra.mxu0 0
    %3464 = vmatprep.subr.bf16.mxu0 0
    %3465 = vmatpush1.bf16.msra.mxu0 0
    %3466 = vmatprep.subr.bf16.mxu0 0
    %3467 = vmatpush1.bf16.msra.mxu0 0
    %3468 = vmatprep.mubr.bf16.mxu0 0
    %3469 = vmatmul.mubr.bf16.gmra.mrb[0].mxu0 %v3434
    %v3470 = vpop.f32.mrb[0].mxu0
    %v3471 = vadd.f32 0.0, %v3470
    %v3472 = vpop.f32.mrb[0].mxu0
    %v3473 = vpop.f32.mrb[0].mxu0
    %v3474 = vpop.f32.mrb[0].mxu0
    %3475 = vdwg.mxu0
    %v3476 = vpack.c.bf16 %v3471, %v3471
    %v3477 = vld [vmem:[%s25] sm:$0xf]
    %v3478 = vld [vmem:[%s25 + $0x4] sm:$0xf]
    %v3479 = vld [vmem:[%s25 + $0x8] sm:$0xf]
    %v3480 = vld [vmem:[%s25 + $0xc] sm:$0xf]
    %v3481 = vld [vmem:[%s25 + $0x10] sm:$0xf]
    %v3482 = vld [vmem:[%s25 + $0x14] sm:$0xf]
    %v3483 = vld [vmem:[%s25 + $0x18] sm:$0xf]
    %v3484 = vld [vmem:[%s25 + $0x1c] sm:$0xf]
    %v3485 = vld [vmem:[%s26] sm:$0x1]
    %v3487 = vlaneseq
    %v3488 = vshrl.u32 %v3487, 7
    %v3489 = vsub.s32 0, %v3488
    %v3490 = vrot.slane %v3485, %v3489
    %v3500 = vunpack.c.l.b16 %v3477
    %v3501 = vunpack.c.l.b16 %v3478
    %v3502 = vunpack.c.l.b16 %v3479
    %v3503 = vunpack.c.l.b16 %v3480
    %v3504 = vunpack.c.l.b16 %v3481
    %v3505 = vunpack.c.l.b16 %v3482
    %v3506 = vunpack.c.l.b16 %v3483
    %v3507 = vunpack.c.l.b16 %v3484
    %v3508 = vpack.c.b16 %v3501, %v3500
    %v3509 = vpack.c.b16 %v3503, %v3502
    %v3510 = vpack.c.b16 %v3505, %v3504
    %v3511 = vpack.c.b16 %v3507, %v3506
    %vm3516 = vcmask 523264
    %v3518 = vsel %vm3516, %v3476, 0
    %3520 = vmatprep.subr.bf16.mxu0 0
    %3521 = vmatpush1.bf16.msra.mxu0 %v3508
    %3522 = vmatprep.subr.bf16.mxu0 0
    %3523 = vmatpush1.bf16.msra.mxu0 %v3509
    %3524 = vmatprep.subr.bf16.mxu0 0
    %3525 = vmatpush1.bf16.msra.mxu0 %v3510
    %3526 = vmatprep.subr.bf16.mxu0 0
    %3527 = vmatpush1.bf16.msra.mxu0 %v3511
    %3528 = vmatprep.subr.bf16.mxu0 0
    %3529 = vmatpush1.bf16.msra.mxu0 0
    %3530 = vmatprep.subr.bf16.mxu0 0
    %3531 = vmatpush1.bf16.msra.mxu0 0
    %3532 = vmatprep.subr.bf16.mxu0 0
    %3533 = vmatpush1.bf16.msra.mxu0 0
    %3534 = vmatprep.subr.bf16.mxu0 0
    %3535 = vmatpush1.bf16.msra.mxu0 0
    %3536 = vmatprep.subr.bf16.mxu0 0
    %3537 = vmatpush1.bf16.msra.mxu0 0
    %3538 = vmatprep.subr.bf16.mxu0 0
    %3539 = vmatpush1.bf16.msra.mxu0 0
    %3540 = vmatprep.subr.bf16.mxu0 0
    %3541 = vmatpush1.bf16.msra.mxu0 0
    %3542 = vmatprep.subr.bf16.mxu0 0
    %3543 = vmatpush1.bf16.msra.mxu0 0
    %3544 = vmatprep.subr.bf16.mxu0 0
    %3545 = vmatpush1.bf16.msra.mxu0 0
    %3546 = vmatprep.subr.bf16.mxu0 0
    %3547 = vmatpush1.bf16.msra.mxu0 0
    %3548 = vmatprep.subr.bf16.mxu0 0
    %3549 = vmatpush1.bf16.msra.mxu0 0
    %3550 = vmatprep.subr.bf16.mxu0 0
    %3551 = vmatpush1.bf16.msra.mxu0 0
    %3552 = vmatprep.mubr.bf16.mxu0 0
    %3553 = vmatmul.mubr.bf16.gmra.mrb[0].mxu0 %v3518
    %v3554 = vpop.f32.mrb[0].mxu0
    %v3555 = vadd.f32 %v3490, %v3554
    %v3556 = vpop.f32.mrb[0].mxu0
    %v3557 = vpop.f32.mrb[0].mxu0
    %v3558 = vpop.f32.mrb[0].mxu0
    %3559 = vdwg.mxu0
    %vm3560 = vcmask 74752
    %3561 = vst.msk [vmem:[#allocation2] sm:$0x3] %vm3560, %v3555
    // Predicated region
    $region110: #{fused_mobilenet_v2_forward.1} parent=1 // pred_check
      _
    $region111: #{fused_mobilenet_v2_forward.1} parent=1 // pred_check_branch
      %3563 = sbr.rel (0) target = $region113
    $region112: #{fused_mobilenet_v2_forward.1} parent=1 // pred_region
      %s3565 = ssub.s32 32, 32
      %3566 = vsyncadd [#allocation3], %s3565
      %s3568 = sshll.u32 [#allocation2], 4
      %s3569 = int_to_ptr.vmem [resolvable:$true] %s3568
      %3571 = dma.vmem_to_hbm [thread:$0]  %s3569, 32, %s27, [#allocation3]
    $region113: #{fused_mobilenet_v2_forward.1} parent=1 // pred_fallthru
      _
    // Predicated region
    $region114: #{fused_mobilenet_v2_forward.1} parent=1 // pred_check
      _
    $region115: #{fused_mobilenet_v2_forward.1} parent=1 // pred_check_branch
      %3573 = sbr.rel (0) target = $region117
    $region116: #{fused_mobilenet_v2_forward.1} parent=1 // pred_region
      %3574 = dma.done [#allocation3], 32
    $region117: #{fused_mobilenet_v2_forward.1} parent=1 // pred_fallthru
      _
    %3575 = vsyncpa [#allocation3], 1

</llo_original>
